<compile_context>
chip_gen: v7x
topology: tpu7x:2x2x1
jax: 0.10.0
libtpu: 0.0.40
codegen_flags: <defaults>
</compile_context>

<pallas_src>
import functools

import jax
import jax.numpy as jnp
import numpy as np
from jax.experimental import pallas as pl
from jax.experimental.pallas import tpu as pltpu

EXPANSION = 4
BN_EPS = 1e-5

_ROW_TILE = 512                      # rows per matmul tile (>=256 keeps v6e MXU full)
_VMEM_LIMIT = 48 * 1024 * 1024       # below v7x's 64 MiB budget; raises v5e's 16 MiB default


def _compiler_params(n_parallel_axes=1):
    return pltpu.CompilerParams(
        dimension_semantics=("parallel",) * n_parallel_axes,
        vmem_limit_bytes=_VMEM_LIMIT)


# --------------------------------------------------------------------------
# Kernel 1: row-tiled  y = [relu(x*scale + shift)] @ w   (+ per-tile BN stats)
# Used for both 1x1 convs and the projection shortcut. bf16 MXU, f32 accumulate.
# --------------------------------------------------------------------------
def _make_matmul_stats_kernel(tile_m, true_m, apply_affine):
    masked = true_m is not None

    def kernel(*refs):
        if apply_affine:
            x_ref, scale_ref, shift_ref, w_ref, y_ref, stats_ref = refs
        else:
            x_ref, w_ref, y_ref, stats_ref = refs

        x = x_ref[...]                                           # (tile_m, K) f32
        if apply_affine:
            # previous layer's BN folded into one FMA, then ReLU
            x = jnp.maximum(x * scale_ref[...] + shift_ref[...], 0.0)
        if masked:
            # keep BN statistics exact on zero-padded rows of the last tile
            rows = (pl.program_id(0) * tile_m
                    + jax.lax.broadcasted_iota(jnp.int32, (tile_m, 1), 0))
            x = jnp.where(rows < true_m, x, 0.0)

        y = jnp.dot(x.astype(jnp.bfloat16), w_ref[...],
                    preferred_element_type=jnp.float32)          # (tile_m, Cout) f32
        y_ref[...] = y
        stats_ref[0:1, 0:1, :] = jnp.sum(y, axis=0, keepdims=True).reshape(1, 1, -1)
        stats_ref[0:1, 1:2, :] = jnp.sum(y * y, axis=0, keepdims=True).reshape(1, 1, -1)

    return kernel


def _matmul_stats(x2, w_bf16, scale_in=None, shift_in=None):
    M, K = x2.shape
    Cout = w_bf16.shape[-1]
    tile = M if M <= _ROW_TILE else _ROW_TILE
    grid_m = -(-M // tile)
    Mp = grid_m * tile
    if Mp != M:
        x2 = jnp.pad(x2, ((0, Mp - M), (0, 0)))
    apply_affine = scale_in is not None

    kernel = _make_matmul_stats_kernel(tile, M if Mp != M else None, apply_affine)

    in_specs = [pl.BlockSpec((tile, K), lambda i: (i, 0))]
    inputs = [x2]
    if apply_affine:
        in_specs += [pl.BlockSpec((1, K), lambda i: (0, 0)),
                     pl.BlockSpec((1, K), lambda i: (0, 0))]
        inputs += [scale_in, shift_in]
    in_specs.append(pl.BlockSpec((K, Cout), lambda i: (0, 0)))
    inputs.append(w_bf16)

    y, stats = pl.pallas_call(
        kernel,
        grid=(grid_m,),
        in_specs=in_specs,
        out_specs=[pl.BlockSpec((tile, Cout), lambda i: (i, 0)),
                   pl.BlockSpec((1, 2, Cout), lambda i: (i, 0, 0))],
        out_shape=[jax.ShapeDtypeStruct((Mp, Cout), jnp.float32),
                   jax.ShapeDtypeStruct((grid_m, 2, Cout), jnp.float32)],
        compiler_params=_compiler_params(),
    )(*inputs)
    if Mp != M:
        y = y[:M]
    return y, stats


# --------------------------------------------------------------------------
# Kernel 2: 3x3 conv (stride, pad=1), gridded over the batch ("parallel").
# Fuses BN1 apply + ReLU in the prologue and emits BN2 (sum, sumsq) partials.
# --------------------------------------------------------------------------
def _make_conv3x3_kernel(H, W, Cz, stride):
    Ho, Wo = H // stride, W // stride

    def kernel(y1_ref, scale_ref, shift_ref, w2_ref, y2_ref, stats_ref,
               pad_ref, acc_ref):
        # BN1 (folded scale/shift) + ReLU fused here.
        h1 = jnp.maximum(y1_ref[0] * scale_ref[...] + shift_ref[...], 0.0)   # (H,W,Cz)

        # Zero only the 1-pixel border of the padded scratch (interior is fully
        # overwritten below).  Re-done every step so the "parallel" batch axis
        # stays safely core-splittable.
        zrow = jnp.zeros((1, W + 2, Cz), jnp.float32)
        zcol = jnp.zeros((H, 1, Cz), jnp.float32)
        pad_ref[0:1, :, :] = zrow
        pad_ref[H + 1:H + 2, :, :] = zrow
        pad_ref[1:H + 1, 0:1, :] = zcol
        pad_ref[1:H + 1, W + 1:W + 2, :] = zcol
        pad_ref[1:H + 1, 1:W + 1, :] = h1

        # 9 shifted taps -> bf16 matmuls accumulated into a VMEM scratch ref.
        # TODO(synk): a strided pl.ds read / im2col wide-K matmul would remove the
        # remaining per-tap slice+reshape copies (extra win on v6e's 256-wide MXU).
        for kh in range(3):
            for kw in range(3):
                p = pad_ref[kh:kh + H, kw:kw + W, :]              # (H, W, Cz)
                if stride > 1:
                    p = p.reshape(Ho, stride, Wo, stride, Cz)[:, 0, :, 0, :]
                contrib = jnp.dot(p.reshape(Ho * Wo, Cz).astype(jnp.bfloat16),
                                  w2_ref[kh * 3 + kw],
                                  preferred_element_type=jnp.float32)
                if kh == 0 and kw == 0:
                    acc_ref[...] = contrib        # first tap: plain store, no zero pass
                else:
                    acc_ref[...] += contrib

        y2 = acc_ref[...]                                         # (Ho*Wo, Cz) f32
        y2_ref[...] = y2.reshape(1, Ho, Wo, Cz)
        stats_ref[0:1, 0:1, :] = jnp.sum(y2, axis=0, keepdims=True).reshape(1, 1, -1)
        stats_ref[0:1, 1:2, :] = jnp.sum(y2 * y2, axis=0, keepdims=True).reshape(1, 1, -1)

    return kernel


def _conv3x3(y1, scale1, shift1, w2_bf16, stride):
    N, H, W, Cz = y1.shape
    Ho, Wo = H // stride, W // stride
    kernel = _make_conv3x3_kernel(H, W, Cz, stride)
    y2, stats = pl.pallas_call(
        kernel,
        grid=(N,),
        in_specs=[pl.BlockSpec((1, H, W, Cz), lambda n: (n, 0, 0, 0)),
                  pl.BlockSpec((1, Cz), lambda n: (0, 0)),
                  pl.BlockSpec((1, Cz), lambda n: (0, 0)),
                  pl.BlockSpec((9, Cz, Cz), lambda n: (0, 0, 0))],
        out_specs=[pl.BlockSpec((1, Ho, Wo, Cz), lambda n: (n, 0, 0, 0)),
                   pl.BlockSpec((1, 2, Cz), lambda n: (n, 0, 0))],
        out_shape=[jax.ShapeDtypeStruct((N, Ho, Wo, Cz), jnp.float32),
                   jax.ShapeDtypeStruct((N, 2, Cz), jnp.float32)],
        scratch_shapes=[pltpu.VMEM((H + 2, W + 2, Cz), jnp.float32),
                        pltpu.VMEM((Ho * Wo, Cz), jnp.float32)],
        compiler_params=_compiler_params(),
    )(y1, scale1, shift1, w2_bf16)
    return y2, stats


# --------------------------------------------------------------------------
# Kernel 3: fused epilogue  relu( (y3*s3 + b3) + (sc*ss + bs | identity) ).
# --------------------------------------------------------------------------
def _make_fuse_kernel(has_proj):
    if has_proj:
        def kernel(y3_ref, sc_ref, s3_ref, b3_ref, ss_ref, bs_ref, out_ref):
            main = y3_ref[...] * s3_ref[...] + b3_ref[...]
            short = sc_ref[...] * ss_ref[...] + bs_ref[...]
            out_ref[...] = jnp.maximum(main + short, 0.0)
    else:
        def kernel(y3_ref, sc_ref, s3_ref, b3_ref, out_ref):
            main = y3_ref[...] * s3_ref[...] + b3_ref[...]
            out_ref[...] = jnp.maximum(main + sc_ref[...], 0.0)
    return kernel


def _fuse(y3, sc, scale3, shift3, scale_s, shift_s, has_proj):
    M, Cout = y3.shape
    tile = M if M <= _ROW_TILE else _ROW_TILE
    grid_m = -(-M // tile)
    Mp = grid_m * tile
    if Mp != M:
        y3 = jnp.pad(y3, ((0, Mp - M), (0, 0)))
        sc = jnp.pad(sc, ((0, Mp - M), (0, 0)))

    row_spec = pl.BlockSpec((tile, Cout), lambda i: (i, 0))
    par_spec = pl.BlockSpec((1, Cout), lambda i: (0, 0))
    in_specs = [row_spec, row_spec, par_spec, par_spec]
    inputs = [y3, sc, scale3, shift3]
    if has_proj:
        in_specs += [par_spec, par_spec]
        inputs += [scale_s, shift_s]

    out = pl.pallas_call(
        _make_fuse_kernel(has_proj),
        grid=(grid_m,),
        in_specs=in_specs,
        out_specs=row_spec,
        out_shape=jax.ShapeDtypeStruct((Mp, Cout), jnp.float32),
        compiler_params=_compiler_params(),
    )(*inputs)
    return out[:M] if Mp != M else out


# --------------------------------------------------------------------------
# BN fold: per-tile (sum, sumsq) partials -> single per-channel scale/shift FMA.
# --------------------------------------------------------------------------
def _fold_bn(stats, count, gamma, beta):
    s = jnp.sum(stats, axis=0)                                    # (2, C)
    mean = s[0] / count
    var = jnp.maximum(s[1] / count - mean * mean, 0.0)            # biased (training-mode BN)
    scale = gamma * jax.lax.rsqrt(var + BN_EPS)
    shift = beta - mean * scale
    return scale.reshape(1, -1), shift.reshape(1, -1)


# --------------------------------------------------------------------------
# Parameter init (matches the PyTorch module's weight layout used by the ref).
# --------------------------------------------------------------------------
def init_bottleneck_params(key, in_channels, zip_channels, stride=1):
    out_channels = EXPANSION * zip_channels
    has_proj = (stride != 1) or (in_channels != out_channels)
    ks = jax.random.split(key, 10)

    def w(k, shape):
        return 0.1 * jax.random.normal(k, shape, jnp.float32)

    def bn(k, c):
        kg, kb = jax.random.split(k)
        gamma = 1.0 + 0.1 * jax.random.normal(kg, (c,), jnp.float32)
        beta = 0.1 * jax.random.normal(kb, (c,), jnp.float32)
        return gamma, beta

    p = {
        "w1": w(ks[0], (in_channels, zip_channels)),               # 1x1: (Cin, Cz)
        "w2": w(ks[1], (9, zip_channels, zip_channels)),           # 3x3: (kh*3+kw, Cin, Cout)
        "w3": w(ks[2], (zip_channels, out_channels)),              # 1x1: (Cz, Cout)
    }
    p["g1"], p["b1"] = bn(ks[3], zip_channels)
    p["g2"], p["b2"] = bn(ks[4], zip_channels)
    p["g3"], p["b3"] = bn(ks[5], out_channels)
    if has_proj:
        p["ws"] = w(ks[6], (in_channels, out_channels))            # 1x1: (Cin, Cout)
        p["gs"], p["bs"] = bn(ks[7], out_channels)
    return p, has_proj


# --------------------------------------------------------------------------
# Forward wrapper.
# --------------------------------------------------------------------------
@functools.partial(jax.jit, static_argnames=("zip_channels", "stride", "has_proj"))
def bottleneck_forward(x_nchw, params, *, zip_channels, stride, has_proj):
    N, Cin, H, W = x_nchw.shape
    Cz = zip_channels
    Cout = EXPANSION * Cz

    # TODO(synk): requires H, W divisible by stride (true for standard ResNet shapes).
    assert H % stride == 0 and W % stride == 0
    if not has_proj:
        assert stride == 1 and Cin == Cout           # identity-shortcut invariant
    Ho, Wo = H // stride, W // stride

    # NCHW -> NHWC (channels on the 128-lane axis). Kept f32 here; the dots below
    # cast to bf16 right at the MXU (bf16 HBM storage would halve this traffic).
    x_nhwc = jnp.transpose(x_nchw, (0, 2, 3, 1)).astype(jnp.float32)
    x2 = x_nhwc.reshape(N * H * W, Cin)

    w1 = params["w1"].astype(jnp.bfloat16)
    w2 = params["w2"].astype(jnp.bfloat16)
    w3 = params["w3"].astype(jnp.bfloat16)

    # ---- conv1x1 (+ BN1 stats) ------------------------------------------
    y1_2d, st1 = _matmul_stats(x2, w1)
    scale1, shift1 = _fold_bn(st1, N * H * W, params["g1"], params["b1"])

    # ---- conv3x3 (BN1 apply + ReLU fused; + BN2 stats) --------------------
    y2, st2 = _conv3x3(y1_2d.reshape(N, H, W, Cz), scale1, shift1, w2, stride)
    scale2, shift2 = _fold_bn(st2, N * Ho * Wo, params["g2"], params["b2"])

    # ---- conv1x1 (BN2 apply + ReLU fused; + BN3 stats) --------------------
    y3_2d, st3 = _matmul_stats(y2.reshape(N * Ho * Wo, Cz), w3, scale2, shift2)
    scale3, shift3 = _fold_bn(st3, N * Ho * Wo, params["g3"], params["b3"])

    # ---- shortcut ----------------------------------------------------------
    if has_proj:
        ws = params["ws"].astype(jnp.bfloat16)
        xs2 = x_nhwc[:, ::stride, ::stride, :].reshape(N * Ho * Wo, Cin)
        ysc_2d, sts = _matmul_stats(xs2, ws)
        scale_s, shift_s = _fold_bn(sts, N * Ho * Wo, params["gs"], params["bs"])
        sc_2d = ysc_2d
    else:
        sc_2d = x2
        scale_s = shift_s = None

    # ---- BN3 apply + shortcut BN apply + residual add + ReLU --------------
    out_2d = _fuse(y3_2d, sc_2d, scale3, shift3, scale_s, shift_s, has_proj)
    out_nhwc = out_2d.reshape(N, Ho, Wo, Cout)
    return jnp.transpose(out_nhwc, (0, 3, 1, 2))                  # back to NCHW


# ------------------------- pure-JAX reference (for verification) ----------
def _ref_forward(x_nchw, params, zip_channels, stride, has_proj):
    Cz = zip_channels
    Cout = EXPANSION * Cz

    def conv(x, w_oihw, s, p):
        return jax.lax.conv_general_dilated(
            x, w_oihw, (s, s), [(p, p), (p, p)],
            dimension_numbers=("NCHW", "OIHW", "NCHW"))

    def bn(x, g, b):
        mean = x.mean(axis=(0, 2, 3), keepdims=True)
        var = ((x - mean) ** 2).mean(axis=(0, 2, 3), keepdims=True)
        xn = (x - mean) / jnp.sqrt(var + BN_EPS)
        return xn * g.reshape(1, -1, 1, 1) + b.reshape(1, -1, 1, 1)

    w1 = params["w1"].T.reshape(Cz, -1, 1, 1)
    w2 = params["w2"].reshape(3, 3, Cz, Cz).transpose(3, 2, 0, 1)
    w3 = params["w3"].T.reshape(Cout, Cz, 1, 1)

    h = jax.nn.relu(bn(conv(x_nchw, w1, 1, 0), params["g1"], params["b1"]))
    h = jax.nn.relu(bn(conv(h, w2, stride, 1), params["g2"], params["b2"]))
    h = bn(conv(h, w3, 1, 0), params["g3"], params["b3"])
    if has_proj:
        ws = params["ws"].T.reshape(Cout, -1, 1, 1)
        sc = bn(conv(x_nchw, ws, stride, 0), params["gs"], params["bs"])
    else:
        sc = x_nchw
    return jax.nn.relu(h + sc)


if __name__ == "__main__":
    key = jax.random.PRNGKey(0)

    configs = [
        # (N, Cin, H, W, zip_channels, stride)
        (2, 16, 8, 8, 8, 1),    # projection shortcut
        (2, 32, 8, 8, 8, 1),    # identity shortcut
        (2, 16, 8, 8, 8, 2),    # stride-2 projection shortcut
        (3, 16, 16, 16, 8, 1),  # N*H*W = 768 > row tile -> multi-step grid + masking
    ]
    for (N, Cin, H, W, Cz, stride) in configs:
        key, kx, kp = jax.random.split(key, 3)
        x = jax.random.normal(kx, (N, Cin, H, W), jnp.float32)
        params, has_proj = init_bottleneck_params(kp, Cin, Cz, stride)

        out = bottleneck_forward(x, params, zip_channels=Cz, stride=stride,
                                 has_proj=has_proj)
        out = jax.block_until_ready(out)

        ref = _ref_forward(x, params, Cz, stride, has_proj)
        assert out.shape == (N, EXPANSION * Cz, H // stride, W // stride)
        # Tolerance sized for bf16 MXU inputs vs a pure-f32 reference across
        # four matmuls and four batch-norms.
        np.testing.assert_allclose(np.asarray(out), np.asarray(ref),
                                   rtol=4e-2, atol=4e-2)

    print("KERNEL_OK")
</pallas_src>

<mosaic_0001>
module attributes {stable_mosaic.version = 11 : i64} {
  func.func @kernel(%arg0: i32, %arg1: memref<128x16xf32, #tpu.memory_space<vmem>>, %arg2: memref<16x8xbf16, #tpu.memory_space<vmem>>, %arg3: memref<128x8xf32, #tpu.memory_space<vmem>>, %arg4: memref<1x2x8xf32, #tpu.memory_space<vmem>>) attributes {dimension_semantics = [#tpu.dimension_semantics<parallel>], iteration_bounds = array<i64: 1>, scalar_prefetch = 0 : i64, scratch_operands = 0 : i64, tpu.core_type = #tpu.core_type<tc>, window_params = [{transform_indices = @transform_0, window_bounds = array<i64: 128, 16>}, {pipeline_mode = #tpu.pipeline_mode<synchronous>, transform_indices = @transform_1, window_bounds = array<i64: 16, 8>}, {transform_indices = @transform_2, window_bounds = array<i64: 128, 8>}, {transform_indices = @transform_3, window_bounds = array<i64: 1, 2, 8>}]} {
    %c0 = arith.constant 0 : index
    %c0_0 = arith.constant 0 : index
    %0 = vector.load %arg1[%c0, %c0_0] : memref<128x16xf32, #tpu.memory_space<vmem>>, vector<128x16xf32>
    %1 = arith.truncf %0 : vector<128x16xf32> to vector<128x16xbf16>
    %c0_1 = arith.constant 0 : index
    %c0_2 = arith.constant 0 : index
    %2 = vector.load %arg2[%c0_1, %c0_2] : memref<16x8xbf16, #tpu.memory_space<vmem>>, vector<16x8xbf16>
    %cst = arith.constant dense<0.000000e+00> : vector<128x8xf32>
    %3 = tpu.matmul %1, %2, %cst {dimension_numbers = #tpu.dot_dimension_numbers<[1], [0], [0], [1], [0, 0, 1, 1], [], []>} : vector<128x16xbf16>, vector<16x8xbf16>, vector<128x8xf32> -> vector<128x8xf32>
    %c0_3 = arith.constant 0 : index
    %c0_4 = arith.constant 0 : index
    %4 = vector.load %arg3[%c0_3, %c0_4] : memref<128x8xf32, #tpu.memory_space<vmem>>, vector<128x8xf32>
    tpu.vector_store %arg3[%c0_3, %c0_4], %3 {strides = array<i32>} : memref<128x8xf32, #tpu.memory_space<vmem>>, vector<128x8xf32>,
    %cst_5 = arith.constant dense<0.000000e+00> : vector<8xf32>
    %5 = vector.multi_reduction <add>, %3, %cst_5 [0] : vector<128x8xf32> to vector<8xf32>
    %6 = vector.shape_cast %5 : vector<8xf32> to vector<1x8xf32>
    %7 = vector.shape_cast %6 : vector<1x8xf32> to vector<1x1x8xf32>
    %c0_6 = arith.constant 0 : index
    %c0_7 = arith.constant 0 : index
    %c0_8 = arith.constant 0 : index
    %8 = vector.load %arg4[%c0_6, %c0_7, %c0_8] : memref<1x2x8xf32, #tpu.memory_space<vmem>>, vector<1x1x8xf32>
    tpu.vector_store %arg4[%c0_6, %c0_7, %c0_8], %7 {strides = array<i32>} : memref<1x2x8xf32, #tpu.memory_space<vmem>>, vector<1x1x8xf32>,
    %9 = arith.mulf %3, %3 : vector<128x8xf32>
    %cst_9 = arith.constant dense<0.000000e+00> : vector<8xf32>
    %10 = vector.multi_reduction <add>, %9, %cst_9 [0] : vector<128x8xf32> to vector<8xf32>
    %11 = vector.shape_cast %10 : vector<8xf32> to vector<1x8xf32>
    %12 = vector.shape_cast %11 : vector<1x8xf32> to vector<1x1x8xf32>
    %c0_10 = arith.constant 0 : index
    %c1 = arith.constant 1 : index
    %c0_11 = arith.constant 0 : index
    %13 = vector.load %arg4[%c0_10, %c1, %c0_11] : memref<1x2x8xf32, #tpu.memory_space<vmem>>, vector<1x1x8xf32>
    tpu.vector_store %arg4[%c0_10, %c1, %c0_11], %12 {strides = array<i32>} : memref<1x2x8xf32, #tpu.memory_space<vmem>>, vector<1x1x8xf32>,
    return
  }
  func.func @transform_0(%arg0: i32) -> (i32, i32) {
    %c0_i32 = arith.constant 0 : i32
    %c0_i32_0 = arith.constant 0 : i32
    return %arg0, %c0_i32 : i32, i32
  }
  func.func @transform_1(%arg0: i32) -> (i32, i32) {
    %c0_i32 = arith.constant 0 : i32
    %c0_i32_0 = arith.constant 0 : i32
    %c0_i32_1 = arith.constant 0 : i32
    return %c0_i32, %c0_i32_0 : i32, i32
  }
  func.func @transform_2(%arg0: i32) -> (i32, i32) {
    %c0_i32 = arith.constant 0 : i32
    %c0_i32_0 = arith.constant 0 : i32
    return %arg0, %c0_i32 : i32, i32
  }
  func.func @transform_3(%arg0: i32) -> (i32, i32, i32) {
    %c0_i32 = arith.constant 0 : i32
    %c0_i32_0 = arith.constant 0 : i32
    %c0_i32_1 = arith.constant 0 : i32
    return %arg0, %c0_i32, %c0_i32_0 : i32, i32, i32
  }
}

module attributes {stable_mosaic.version = 11 : i64} {
  func.func @kernel(%arg0: i32, %arg1: memref<1x8x8x8xf32, #tpu.memory_space<vmem>>, %arg2: memref<1x8xf32, #tpu.memory_space<vmem>>, %arg3: memref<1x8xf32, #tpu.memory_space<vmem>>, %arg4: memref<9x8x8xbf16, #tpu.memory_space<vmem>>, %arg5: memref<1x8x8x8xf32, #tpu.memory_space<vmem>>, %arg6: memref<1x2x8xf32, #tpu.memory_space<vmem>>, %arg7: memref<10x10x8xf32, #tpu.memory_space<vmem>>, %arg8: memref<64x8xf32, #tpu.memory_space<vmem>>) attributes {dimension_semantics = [#tpu.dimension_semantics<parallel>], iteration_bounds = array<i64: 2>, scalar_prefetch = 0 : i64, scratch_operands = 2 : i64, tpu.core_type = #tpu.core_type<tc>, window_params = [{transform_indices = @transform_0, window_bounds = array<i64: 1, 8, 8, 8>}, {pipeline_mode = #tpu.pipeline_mode<synchronous>, transform_indices = @transform_1, window_bounds = array<i64: 1, 8>}, {pipeline_mode = #tpu.pipeline_mode<synchronous>, transform_indices = @transform_2, window_bounds = array<i64: 1, 8>}, {pipeline_mode = #tpu.pipeline_mode<synchronous>, transform_indices = @transform_3, window_bounds = array<i64: 9, 8, 8>}, {transform_indices = @transform_4, window_bounds = array<i64: 1, 8, 8, 8>}, {transform_indices = @transform_5, window_bounds = array<i64: 1, 2, 8>}]} {
    %c0 = arith.constant 0 : index
    %c0_0 = arith.constant 0 : index
    %c0_1 = arith.constant 0 : index
    %c0_2 = arith.constant 0 : index
    %0 = vector.load %arg1[%c0, %c0_0, %c0_1, %c0_2] : memref<1x8x8x8xf32, #tpu.memory_space<vmem>>, vector<1x8x8x8xf32>
    %1 = vector.shape_cast %0 : vector<1x8x8x8xf32> to vector<8x8x8xf32>
    %c0_3 = arith.constant 0 : index
    %c0_4 = arith.constant 0 : index
    %2 = vector.load %arg2[%c0_3, %c0_4] : memref<1x8xf32, #tpu.memory_space<vmem>>, vector<1x8xf32>
    %3 = vector.shape_cast %2 : vector<1x8xf32> to vector<1x1x8xf32>
    %4 = vector.broadcast %3 : vector<1x1x8xf32> to vector<8x8x8xf32>
    %5 = arith.mulf %1, %4 : vector<8x8x8xf32>
    %c0_5 = arith.constant 0 : index
    %c0_6 = arith.constant 0 : index
    %6 = vector.load %arg3[%c0_5, %c0_6] : memref<1x8xf32, #tpu.memory_space<vmem>>, vector<1x8xf32>
    %7 = vector.shape_cast %6 : vector<1x8xf32> to vector<1x1x8xf32>
    %8 = vector.broadcast %7 : vector<1x1x8xf32> to vector<8x8x8xf32>
    %9 = arith.addf %5, %8 : vector<8x8x8xf32>
    %cst = arith.constant 0.000000e+00 : f32
    %10 = vector.broadcast %cst : f32 to vector<8x8x8xf32>
    %11 = arith.maximumf %9, %10 : vector<8x8x8xf32>
    %cst_7 = arith.constant 0.000000e+00 : f32
    %12 = vector.broadcast %cst_7 : f32 to vector<1x10x8xf32>
    %cst_8 = arith.constant 0.000000e+00 : f32
    %13 = vector.broadcast %cst_8 : f32 to vector<8x1x8xf32>
    %c0_9 = arith.constant 0 : index
    %c0_10 = arith.constant 0 : index
    %c0_11 = arith.constant 0 : index
    %14 = vector.load %arg7[%c0_9, %c0_10, %c0_11] : memref<10x10x8xf32, #tpu.memory_space<vmem>>, vector<1x10x8xf32>
    tpu.vector_store %arg7[%c0_9, %c0_10, %c0_11], %12 {strides = array<i32>} : memref<10x10x8xf32, #tpu.memory_space<vmem>>, vector<1x10x8xf32>,
    %c9 = arith.constant 9 : index
    %c0_12 = arith.constant 0 : index
    %c0_13 = arith.constant 0 : index
    %15 = vector.load %arg7[%c9, %c0_12, %c0_13] : memref<10x10x8xf32, #tpu.memory_space<vmem>>, vector<1x10x8xf32>
    tpu.vector_store %arg7[%c9, %c0_12, %c0_13], %12 {strides = array<i32>} : memref<10x10x8xf32, #tpu.memory_space<vmem>>, vector<1x10x8xf32>,
    %c1 = arith.constant 1 : index
    %c0_14 = arith.constant 0 : index
    %c0_15 = arith.constant 0 : index
    %16 = vector.load %arg7[%c1, %c0_14, %c0_15] : memref<10x10x8xf32, #tpu.memory_space<vmem>>, vector<8x1x8xf32>
    tpu.vector_store %arg7[%c1, %c0_14, %c0_15], %13 {strides = array<i32>} : memref<10x10x8xf32, #tpu.memory_space<vmem>>, vector<8x1x8xf32>,
    %c1_16 = arith.constant 1 : index
    %c9_17 = arith.constant 9 : index
    %c0_18 = arith.constant 0 : index
    %17 = vector.load %arg7[%c1_16, %c9_17, %c0_18] : memref<10x10x8xf32, #tpu.memory_space<vmem>>, vector<8x1x8xf32>
    tpu.vector_store %arg7[%c1_16, %c9_17, %c0_18], %13 {strides = array<i32>} : memref<10x10x8xf32, #tpu.memory_space<vmem>>, vector<8x1x8xf32>,
    %c1_19 = arith.constant 1 : index
    %c1_20 = arith.constant 1 : index
    %c0_21 = arith.constant 0 : index
    %18 = vector.load %arg7[%c1_19, %c1_20, %c0_21] : memref<10x10x8xf32, #tpu.memory_space<vmem>>, vector<8x8x8xf32>
    tpu.vector_store %arg7[%c1_19, %c1_20, %c0_21], %11 {strides = array<i32>} : memref<10x10x8xf32, #tpu.memory_space<vmem>>, vector<8x8x8xf32>,
    %c0_22 = arith.constant 0 : index
    %c0_23 = arith.constant 0 : index
    %c0_24 = arith.constant 0 : index
    %19 = vector.load %arg7[%c0_22, %c0_23, %c0_24] : memref<10x10x8xf32, #tpu.memory_space<vmem>>, vector<8x8x8xf32>
    %20 = vector.shape_cast %19 : vector<8x8x8xf32> to vector<64x8xf32>
    %21 = arith.truncf %20 : vector<64x8xf32> to vector<64x8xbf16>
    %c0_25 = arith.constant 0 : index
    %c0_26 = arith.constant 0 : index
    %c0_27 = arith.constant 0 : index
    %22 = vector.load %arg4[%c0_25, %c0_26, %c0_27] : memref<9x8x8xbf16, #tpu.memory_space<vmem>>, vector<1x8x8xbf16>
    %23 = vector.shape_cast %22 : vector<1x8x8xbf16> to vector<8x8xbf16>
    %cst_28 = arith.constant dense<0.000000e+00> : vector<64x8xf32>
    %24 = tpu.matmul %21, %23, %cst_28 {dimension_numbers = #tpu.dot_dimension_numbers<[1], [0], [0], [1], [0, 0, 1, 1], [], []>} : vector<64x8xbf16>, vector<8x8xbf16>, vector<64x8xf32> -> vector<64x8xf32>
    %c0_29 = arith.constant 0 : index
    %c0_30 = arith.constant 0 : index
    %25 = vector.load %arg8[%c0_29, %c0_30] : memref<64x8xf32, #tpu.memory_space<vmem>>, vector<64x8xf32>
    tpu.vector_store %arg8[%c0_29, %c0_30], %24 {strides = array<i32>} : memref<64x8xf32, #tpu.memory_space<vmem>>, vector<64x8xf32>,
    %c0_31 = arith.constant 0 : index
    %c1_32 = arith.constant 1 : index
    %c0_33 = arith.constant 0 : index
    %26 = vector.load %arg7[%c0_31, %c1_32, %c0_33] : memref<10x10x8xf32, #tpu.memory_space<vmem>>, vector<8x8x8xf32>
    %27 = vector.shape_cast %26 : vector<8x8x8xf32> to vector<64x8xf32>
    %28 = arith.truncf %27 : vector<64x8xf32> to vector<64x8xbf16>
    %c1_34 = arith.constant 1 : index
    %c0_35 = arith.constant 0 : index
    %c0_36 = arith.constant 0 : index
    %29 = vector.load %arg4[%c1_34, %c0_35, %c0_36] : memref<9x8x8xbf16, #tpu.memory_space<vmem>>, vector<1x8x8xbf16>
    %30 = vector.shape_cast %29 : vector<1x8x8xbf16> to vector<8x8xbf16>
    %cst_37 = arith.constant dense<0.000000e+00> : vector<64x8xf32>
    %31 = tpu.matmul %28, %30, %cst_37 {dimension_numbers = #tpu.dot_dimension_numbers<[1], [0], [0], [1], [0, 0, 1, 1], [], []>} : vector<64x8xbf16>, vector<8x8xbf16>, vector<64x8xf32> -> vector<64x8xf32>
    %c0_38 = arith.constant 0 : index
    %c0_39 = arith.constant 0 : index
    %32 = vector.load %arg8[%c0_38, %c0_39] : memref<64x8xf32, #tpu.memory_space<vmem>>, vector<64x8xf32>
    %33 = arith.addf %32, %31 : vector<64x8xf32>
    %c0_40 = arith.constant 0 : index
    %c0_41 = arith.constant 0 : index
    %34 = vector.load %arg8[%c0_40, %c0_41] : memref<64x8xf32, #tpu.memory_space<vmem>>, vector<64x8xf32>
    tpu.vector_store %arg8[%c0_40, %c0_41], %33 {strides = array<i32>} : memref<64x8xf32, #tpu.memory_space<vmem>>, vector<64x8xf32>,
    %c0_42 = arith.constant 0 : index
    %c2 = arith.constant 2 : index
    %c0_43 = arith.constant 0 : index
    %35 = vector.load %arg7[%c0_42, %c2, %c0_43] : memref<10x10x8xf32, #tpu.memory_space<vmem>>, vector<8x8x8xf32>
    %36 = vector.shape_cast %35 : vector<8x8x8xf32> to vector<64x8xf32>
    %37 = arith.truncf %36 : vector<64x8xf32> to vector<64x8xbf16>
    %c2_44 = arith.constant 2 : index
    %c0_45 = arith.constant 0 : index
    %c0_46 = arith.constant 0 : index
    %38 = vector.load %arg4[%c2_44, %c0_45, %c0_46] : memref<9x8x8xbf16, #tpu.memory_space<vmem>>, vector<1x8x8xbf16>
    %39 = vector.shape_cast %38 : vector<1x8x8xbf16> to vector<8x8xbf16>
    %cst_47 = arith.constant dense<0.000000e+00> : vector<64x8xf32>
    %40 = tpu.matmul %37, %39, %cst_47 {dimension_numbers = #tpu.dot_dimension_numbers<[1], [0], [0], [1], [0, 0, 1, 1], [], []>} : vector<64x8xbf16>, vector<8x8xbf16>, vector<64x8xf32> -> vector<64x8xf32>
    %c0_48 = arith.constant 0 : index
    %c0_49 = arith.constant 0 : index
    %41 = vector.load %arg8[%c0_48, %c0_49] : memref<64x8xf32, #tpu.memory_space<vmem>>, vector<64x8xf32>
    %42 = arith.addf %41, %40 : vector<64x8xf32>
    %c0_50 = arith.constant 0 : index
    %c0_51 = arith.constant 0 : index
    %43 = vector.load %arg8[%c0_50, %c0_51] : memref<64x8xf32, #tpu.memory_space<vmem>>, vector<64x8xf32>
    tpu.vector_store %arg8[%c0_50, %c0_51], %42 {strides = array<i32>} : memref<64x8xf32, #tpu.memory_space<vmem>>, vector<64x8xf32>,
    %c1_52 = arith.constant 1 : index
    %c0_53 = arith.constant 0 : index
    %c0_54 = arith.constant 0 : index
    %44 = vector.load %arg7[%c1_52, %c0_53, %c0_54] : memref<10x10x8xf32, #tpu.memory_space<vmem>>, vector<8x8x8xf32>
    %45 = vector.shape_cast %44 : vector<8x8x8xf32> to vector<64x8xf32>
    %46 = arith.truncf %45 : vector<64x8xf32> to vector<64x8xbf16>
    %c3 = arith.constant 3 : index
    %c0_55 = arith.constant 0 : index
    %c0_56 = arith.constant 0 : index
    %47 = vector.load %arg4[%c3, %c0_55, %c0_56] : memref<9x8x8xbf16, #tpu.memory_space<vmem>>, vector<1x8x8xbf16>
    %48 = vector.shape_cast %47 : vector<1x8x8xbf16> to vector<8x8xbf16>
    %cst_57 = arith.constant dense<0.000000e+00> : vector<64x8xf32>
    %49 = tpu.matmul %46, %48, %cst_57 {dimension_numbers = #tpu.dot_dimension_numbers<[1], [0], [0], [1], [0, 0, 1, 1], [], []>} : vector<64x8xbf16>, vector<8x8xbf16>, vector<64x8xf32> -> vector<64x8xf32>
    %c0_58 = arith.constant 0 : index
    %c0_59 = arith.constant 0 : index
    %50 = vector.load %arg8[%c0_58, %c0_59] : memref<64x8xf32, #tpu.memory_space<vmem>>, vector<64x8xf32>
    %51 = arith.addf %50, %49 : vector<64x8xf32>
    %c0_60 = arith.constant 0 : index
    %c0_61 = arith.constant 0 : index
    %52 = vector.load %arg8[%c0_60, %c0_61] : memref<64x8xf32, #tpu.memory_space<vmem>>, vector<64x8xf32>
    tpu.vector_store %arg8[%c0_60, %c0_61], %51 {strides = array<i32>} : memref<64x8xf32, #tpu.memory_space<vmem>>, vector<64x8xf32>,
    %c1_62 = arith.constant 1 : index
    %c1_63 = arith.constant 1 : index
    %c0_64 = arith.constant 0 : index
    %53 = vector.load %arg7[%c1_62, %c1_63, %c0_64] : memref<10x10x8xf32, #tpu.memory_space<vmem>>, vector<8x8x8xf32>
    %54 = vector.shape_cast %53 : vector<8x8x8xf32> to vector<64x8xf32>
    %55 = arith.truncf %54 : vector<64x8xf32> to vector<64x8xbf16>
    %c4 = arith.constant 4 : index
    %c0_65 = arith.constant 0 : index
    %c0_66 = arith.constant 0 : index
    %56 = vector.load %arg4[%c4, %c0_65, %c0_66] : memref<9x8x8xbf16, #tpu.memory_space<vmem>>, vector<1x8x8xbf16>
    %57 = vector.shape_cast %56 : vector<1x8x8xbf16> to vector<8x8xbf16>
    %cst_67 = arith.constant dense<0.000000e+00> : vector<64x8xf32>
    %58 = tpu.matmul %55, %57, %cst_67 {dimension_numbers = #tpu.dot_dimension_numbers<[1], [0], [0], [1], [0, 0, 1, 1], [], []>} : vector<64x8xbf16>, vector<8x8xbf16>, vector<64x8xf32> -> vector<64x8xf32>
    %c0_68 = arith.constant 0 : index
    %c0_69 = arith.constant 0 : index
    %59 = vector.load %arg8[%c0_68, %c0_69] : memref<64x8xf32, #tpu.memory_space<vmem>>, vector<64x8xf32>
    %60 = arith.addf %59, %58 : vector<64x8xf32>
    %c0_70 = arith.constant 0 : index
    %c0_71 = arith.constant 0 : index
    %61 = vector.load %arg8[%c0_70, %c0_71] : memref<64x8xf32, #tpu.memory_space<vmem>>, vector<64x8xf32>
    tpu.vector_store %arg8[%c0_70, %c0_71], %60 {strides = array<i32>} : memref<64x8xf32, #tpu.memory_space<vmem>>, vector<64x8xf32>,
    %c1_72 = arith.constant 1 : index
    %c2_73 = arith.constant 2 : index
    %c0_74 = arith.constant 0 : index
    %62 = vector.load %arg7[%c1_72, %c2_73, %c0_74] : memref<10x10x8xf32, #tpu.memory_space<vmem>>, vector<8x8x8xf32>
    %63 = vector.shape_cast %62 : vector<8x8x8xf32> to vector<64x8xf32>
    %64 = arith.truncf %63 : vector<64x8xf32> to vector<64x8xbf16>
    %c5 = arith.constant 5 : index
    %c0_75 = arith.constant 0 : index
    %c0_76 = arith.constant 0 : index
    %65 = vector.load %arg4[%c5, %c0_75, %c0_76] : memref<9x8x8xbf16, #tpu.memory_space<vmem>>, vector<1x8x8xbf16>
    %66 = vector.shape_cast %65 : vector<1x8x8xbf16> to vector<8x8xbf16>
    %cst_77 = arith.constant dense<0.000000e+00> : vector<64x8xf32>
    %67 = tpu.matmul %64, %66, %cst_77 {dimension_numbers = #tpu.dot_dimension_numbers<[1], [0], [0], [1], [0, 0, 1, 1], [], []>} : vector<64x8xbf16>, vector<8x8xbf16>, vector<64x8xf32> -> vector<64x8xf32>
    %c0_78 = arith.constant 0 : index
    %c0_79 = arith.constant 0 : index
    %68 = vector.load %arg8[%c0_78, %c0_79] : memref<64x8xf32, #tpu.memory_space<vmem>>, vector<64x8xf32>
    %69 = arith.addf %68, %67 : vector<64x8xf32>
    %c0_80 = arith.constant 0 : index
    %c0_81 = arith.constant 0 : index
    %70 = vector.load %arg8[%c0_80, %c0_81] : memref<64x8xf32, #tpu.memory_space<vmem>>, vector<64x8xf32>
    tpu.vector_store %arg8[%c0_80, %c0_81], %69 {strides = array<i32>} : memref<64x8xf32, #tpu.memory_space<vmem>>, vector<64x8xf32>,
    %c2_82 = arith.constant 2 : index
    %c0_83 = arith.constant 0 : index
    %c0_84 = arith.constant 0 : index
    %71 = vector.load %arg7[%c2_82, %c0_83, %c0_84] : memref<10x10x8xf32, #tpu.memory_space<vmem>>, vector<8x8x8xf32>
    %72 = vector.shape_cast %71 : vector<8x8x8xf32> to vector<64x8xf32>
    %73 = arith.truncf %72 : vector<64x8xf32> to vector<64x8xbf16>
    %c6 = arith.constant 6 : index
    %c0_85 = arith.constant 0 : index
    %c0_86 = arith.constant 0 : index
    %74 = vector.load %arg4[%c6, %c0_85, %c0_86] : memref<9x8x8xbf16, #tpu.memory_space<vmem>>, vector<1x8x8xbf16>
    %75 = vector.shape_cast %74 : vector<1x8x8xbf16> to vector<8x8xbf16>
    %cst_87 = arith.constant dense<0.000000e+00> : vector<64x8xf32>
    %76 = tpu.matmul %73, %75, %cst_87 {dimension_numbers = #tpu.dot_dimension_numbers<[1], [0], [0], [1], [0, 0, 1, 1], [], []>} : vector<64x8xbf16>, vector<8x8xbf16>, vector<64x8xf32> -> vector<64x8xf32>
    %c0_88 = arith.constant 0 : index
    %c0_89 = arith.constant 0 : index
    %77 = vector.load %arg8[%c0_88, %c0_89] : memref<64x8xf32, #tpu.memory_space<vmem>>, vector<64x8xf32>
    %78 = arith.addf %77, %76 : vector<64x8xf32>
    %c0_90 = arith.constant 0 : index
    %c0_91 = arith.constant 0 : index
    %79 = vector.load %arg8[%c0_90, %c0_91] : memref<64x8xf32, #tpu.memory_space<vmem>>, vector<64x8xf32>
    tpu.vector_store %arg8[%c0_90, %c0_91], %78 {strides = array<i32>} : memref<64x8xf32, #tpu.memory_space<vmem>>, vector<64x8xf32>,
    %c2_92 = arith.constant 2 : index
    %c1_93 = arith.constant 1 : index
    %c0_94 = arith.constant 0 : index
    %80 = vector.load %arg7[%c2_92, %c1_93, %c0_94] : memref<10x10x8xf32, #tpu.memory_space<vmem>>, vector<8x8x8xf32>
    %81 = vector.shape_cast %80 : vector<8x8x8xf32> to vector<64x8xf32>
    %82 = arith.truncf %81 : vector<64x8xf32> to vector<64x8xbf16>
    %c7 = arith.constant 7 : index
    %c0_95 = arith.constant 0 : index
    %c0_96 = arith.constant 0 : index
    %83 = vector.load %arg4[%c7, %c0_95, %c0_96] : memref<9x8x8xbf16, #tpu.memory_space<vmem>>, vector<1x8x8xbf16>
    %84 = vector.shape_cast %83 : vector<1x8x8xbf16> to vector<8x8xbf16>
    %cst_97 = arith.constant dense<0.000000e+00> : vector<64x8xf32>
    %85 = tpu.matmul %82, %84, %cst_97 {dimension_numbers = #tpu.dot_dimension_numbers<[1], [0], [0], [1], [0, 0, 1, 1], [], []>} : vector<64x8xbf16>, vector<8x8xbf16>, vector<64x8xf32> -> vector<64x8xf32>
    %c0_98 = arith.constant 0 : index
    %c0_99 = arith.constant 0 : index
    %86 = vector.load %arg8[%c0_98, %c0_99] : memref<64x8xf32, #tpu.memory_space<vmem>>, vector<64x8xf32>
    %87 = arith.addf %86, %85 : vector<64x8xf32>
    %c0_100 = arith.constant 0 : index
    %c0_101 = arith.constant 0 : index
    %88 = vector.load %arg8[%c0_100, %c0_101] : memref<64x8xf32, #tpu.memory_space<vmem>>, vector<64x8xf32>
    tpu.vector_store %arg8[%c0_100, %c0_101], %87 {strides = array<i32>} : memref<64x8xf32, #tpu.memory_space<vmem>>, vector<64x8xf32>,
    %c2_102 = arith.constant 2 : index
    %c2_103 = arith.constant 2 : index
    %c0_104 = arith.constant 0 : index
    %89 = vector.load %arg7[%c2_102, %c2_103, %c0_104] : memref<10x10x8xf32, #tpu.memory_space<vmem>>, vector<8x8x8xf32>
    %90 = vector.shape_cast %89 : vector<8x8x8xf32> to vector<64x8xf32>
    %91 = arith.truncf %90 : vector<64x8xf32> to vector<64x8xbf16>
    %c8 = arith.constant 8 : index
    %c0_105 = arith.constant 0 : index
    %c0_106 = arith.constant 0 : index
    %92 = vector.load %arg4[%c8, %c0_105, %c0_106] : memref<9x8x8xbf16, #tpu.memory_space<vmem>>, vector<1x8x8xbf16>
    %93 = vector.shape_cast %92 : vector<1x8x8xbf16> to vector<8x8xbf16>
    %cst_107 = arith.constant dense<0.000000e+00> : vector<64x8xf32>
    %94 = tpu.matmul %91, %93, %cst_107 {dimension_numbers = #tpu.dot_dimension_numbers<[1], [0], [0], [1], [0, 0, 1, 1], [], []>} : vector<64x8xbf16>, vector<8x8xbf16>, vector<64x8xf32> -> vector<64x8xf32>
    %c0_108 = arith.constant 0 : index
    %c0_109 = arith.constant 0 : index
    %95 = vector.load %arg8[%c0_108, %c0_109] : memref<64x8xf32, #tpu.memory_space<vmem>>, vector<64x8xf32>
    %96 = arith.addf %95, %94 : vector<64x8xf32>
    %c0_110 = arith.constant 0 : index
    %c0_111 = arith.constant 0 : index
    %97 = vector.load %arg8[%c0_110, %c0_111] : memref<64x8xf32, #tpu.memory_space<vmem>>, vector<64x8xf32>
    tpu.vector_store %arg8[%c0_110, %c0_111], %96 {strides = array<i32>} : memref<64x8xf32, #tpu.memory_space<vmem>>, vector<64x8xf32>,
    %c0_112 = arith.constant 0 : index
    %c0_113 = arith.constant 0 : index
    %98 = vector.load %arg8[%c0_112, %c0_113] : memref<64x8xf32, #tpu.memory_space<vmem>>, vector<64x8xf32>
    %99 = vector.shape_cast %98 : vector<64x8xf32> to vector<1x8x8x8xf32>
    %c0_114 = arith.constant 0 : index
    %c0_115 = arith.constant 0 : index
    %c0_116 = arith.constant 0 : index
    %c0_117 = arith.constant 0 : index
    %100 = vector.load %arg5[%c0_114, %c0_115, %c0_116, %c0_117] : memref<1x8x8x8xf32, #tpu.memory_space<vmem>>, vector<1x8x8x8xf32>
    tpu.vector_store %arg5[%c0_114, %c0_115, %c0_116, %c0_117], %99 {strides = array<i32>} : memref<1x8x8x8xf32, #tpu.memory_space<vmem>>, vector<1x8x8x8xf32>,
    %cst_118 = arith.constant dense<0.000000e+00> : vector<8xf32>
    %101 = vector.multi_reduction <add>, %98, %cst_118 [0] : vector<64x8xf32> to vector<8xf32>
    %102 = vector.shape_cast %101 : vector<8xf32> to vector<1x8xf32>
    %103 = vector.shape_cast %102 : vector<1x8xf32> to vector<1x1x8xf32>
    %c0_119 = arith.constant 0 : index
    %c0_120 = arith.constant 0 : index
    %c0_121 = arith.constant 0 : index
    %104 = vector.load %arg6[%c0_119, %c0_120, %c0_121] : memref<1x2x8xf32, #tpu.memory_space<vmem>>, vector<1x1x8xf32>
    tpu.vector_store %arg6[%c0_119, %c0_120, %c0_121], %103 {strides = array<i32>} : memref<1x2x8xf32, #tpu.memory_space<vmem>>, vector<1x1x8xf32>,
    %105 = arith.mulf %98, %98 : vector<64x8xf32>
    %cst_122 = arith.constant dense<0.000000e+00> : vector<8xf32>
    %106 = vector.multi_reduction <add>, %105, %cst_122 [0] : vector<64x8xf32> to vector<8xf32>
    %107 = vector.shape_cast %106 : vector<8xf32> to vector<1x8xf32>
    %108 = vector.shape_cast %107 : vector<1x8xf32> to vector<1x1x8xf32>
    %c0_123 = arith.constant 0 : index
    %c1_124 = arith.constant 1 : index
    %c0_125 = arith.constant 0 : index
    %109 = vector.load %arg6[%c0_123, %c1_124, %c0_125] : memref<1x2x8xf32, #tpu.memory_space<vmem>>, vector<1x1x8xf32>
    tpu.vector_store %arg6[%c0_123, %c1_124, %c0_125], %108 {strides = array<i32>} : memref<1x2x8xf32, #tpu.memory_space<vmem>>, vector<1x1x8xf32>,
    return
  }
  func.func @transform_0(%arg0: i32) -> (i32, i32, i32, i32) {
    %c0_i32 = arith.constant 0 : i32
    %c0_i32_0 = arith.constant 0 : i32
    %c0_i32_1 = arith.constant 0 : i32
    %c0_i32_2 = arith.constant 0 : i32
    return %arg0, %c0_i32, %c0_i32_0, %c0_i32_1 : i32, i32, i32, i32
  }
  func.func @transform_1(%arg0: i32) -> (i32, i32) {
    %c0_i32 = arith.constant 0 : i32
    %c0_i32_0 = arith.constant 0 : i32
    %c0_i32_1 = arith.constant 0 : i32
    return %c0_i32, %c0_i32_0 : i32, i32
  }
  func.func @transform_2(%arg0: i32) -> (i32, i32) {
    %c0_i32 = arith.constant 0 : i32
    %c0_i32_0 = arith.constant 0 : i32
    %c0_i32_1 = arith.constant 0 : i32
    return %c0_i32, %c0_i32_0 : i32, i32
  }
  func.func @transform_3(%arg0: i32) -> (i32, i32, i32) {
    %c0_i32 = arith.constant 0 : i32
    %c0_i32_0 = arith.constant 0 : i32
    %c0_i32_1 = arith.constant 0 : i32
    %c0_i32_2 = arith.constant 0 : i32
    return %c0_i32, %c0_i32_0, %c0_i32_1 : i32, i32, i32
  }
  func.func @transform_4(%arg0: i32) -> (i32, i32, i32, i32) {
    %c0_i32 = arith.constant 0 : i32
    %c0_i32_0 = arith.constant 0 : i32
    %c0_i32_1 = arith.constant 0 : i32
    %c0_i32_2 = arith.constant 0 : i32
    return %arg0, %c0_i32, %c0_i32_0, %c0_i32_1 : i32, i32, i32, i32
  }
  func.func @transform_5(%arg0: i32) -> (i32, i32, i32) {
    %c0_i32 = arith.constant 0 : i32
    %c0_i32_0 = arith.constant 0 : i32
    %c0_i32_1 = arith.constant 0 : i32
    return %arg0, %c0_i32, %c0_i32_0 : i32, i32, i32
  }
}

module attributes {stable_mosaic.version = 11 : i64} {
  func.func @kernel(%arg0: i32, %arg1: memref<128x8xf32, #tpu.memory_space<vmem>>, %arg2: memref<1x8xf32, #tpu.memory_space<vmem>>, %arg3: memref<1x8xf32, #tpu.memory_space<vmem>>, %arg4: memref<8x32xbf16, #tpu.memory_space<vmem>>, %arg5: memref<128x32xf32, #tpu.memory_space<vmem>>, %arg6: memref<1x2x32xf32, #tpu.memory_space<vmem>>) attributes {dimension_semantics = [#tpu.dimension_semantics<parallel>], iteration_bounds = array<i64: 1>, scalar_prefetch = 0 : i64, scratch_operands = 0 : i64, tpu.core_type = #tpu.core_type<tc>, window_params = [{transform_indices = @transform_0, window_bounds = array<i64: 128, 8>}, {pipeline_mode = #tpu.pipeline_mode<synchronous>, transform_indices = @transform_1, window_bounds = array<i64: 1, 8>}, {pipeline_mode = #tpu.pipeline_mode<synchronous>, transform_indices = @transform_2, window_bounds = array<i64: 1, 8>}, {pipeline_mode = #tpu.pipeline_mode<synchronous>, transform_indices = @transform_3, window_bounds = array<i64: 8, 32>}, {transform_indices = @transform_4, window_bounds = array<i64: 128, 32>}, {transform_indices = @transform_5, window_bounds = array<i64: 1, 2, 32>}]} {
    %c0 = arith.constant 0 : index
    %c0_0 = arith.constant 0 : index
    %0 = vector.load %arg1[%c0, %c0_0] : memref<128x8xf32, #tpu.memory_space<vmem>>, vector<128x8xf32>
    %c0_1 = arith.constant 0 : index
    %c0_2 = arith.constant 0 : index
    %1 = vector.load %arg2[%c0_1, %c0_2] : memref<1x8xf32, #tpu.memory_space<vmem>>, vector<1x8xf32>
    %2 = vector.broadcast %1 : vector<1x8xf32> to vector<128x8xf32>
    %3 = arith.mulf %0, %2 : vector<128x8xf32>
    %c0_3 = arith.constant 0 : index
    %c0_4 = arith.constant 0 : index
    %4 = vector.load %arg3[%c0_3, %c0_4] : memref<1x8xf32, #tpu.memory_space<vmem>>, vector<1x8xf32>
    %5 = vector.broadcast %4 : vector<1x8xf32> to vector<128x8xf32>
    %6 = arith.addf %3, %5 : vector<128x8xf32>
    %cst = arith.constant 0.000000e+00 : f32
    %7 = vector.broadcast %cst : f32 to vector<128x8xf32>
    %8 = arith.maximumf %6, %7 : vector<128x8xf32>
    %9 = arith.truncf %8 : vector<128x8xf32> to vector<128x8xbf16>
    %c0_5 = arith.constant 0 : index
    %c0_6 = arith.constant 0 : index
    %10 = vector.load %arg4[%c0_5, %c0_6] : memref<8x32xbf16, #tpu.memory_space<vmem>>, vector<8x32xbf16>
    %cst_7 = arith.constant dense<0.000000e+00> : vector<128x32xf32>
    %11 = tpu.matmul %9, %10, %cst_7 {dimension_numbers = #tpu.dot_dimension_numbers<[1], [0], [0], [1], [0, 0, 1, 1], [], []>} : vector<128x8xbf16>, vector<8x32xbf16>, vector<128x32xf32> -> vector<128x32xf32>
    %c0_8 = arith.constant 0 : index
    %c0_9 = arith.constant 0 : index
    %12 = vector.load %arg5[%c0_8, %c0_9] : memref<128x32xf32, #tpu.memory_space<vmem>>, vector<128x32xf32>
    tpu.vector_store %arg5[%c0_8, %c0_9], %11 {strides = array<i32>} : memref<128x32xf32, #tpu.memory_space<vmem>>, vector<128x32xf32>,
    %cst_10 = arith.constant dense<0.000000e+00> : vector<32xf32>
    %13 = vector.multi_reduction <add>, %11, %cst_10 [0] : vector<128x32xf32> to vector<32xf32>
    %14 = vector.shape_cast %13 : vector<32xf32> to vector<1x32xf32>
    %15 = vector.shape_cast %14 : vector<1x32xf32> to vector<1x1x32xf32>
    %c0_11 = arith.constant 0 : index
    %c0_12 = arith.constant 0 : index
    %c0_13 = arith.constant 0 : index
    %16 = vector.load %arg6[%c0_11, %c0_12, %c0_13] : memref<1x2x32xf32, #tpu.memory_space<vmem>>, vector<1x1x32xf32>
    tpu.vector_store %arg6[%c0_11, %c0_12, %c0_13], %15 {strides = array<i32>} : memref<1x2x32xf32, #tpu.memory_space<vmem>>, vector<1x1x32xf32>,
    %17 = arith.mulf %11, %11 : vector<128x32xf32>
    %cst_14 = arith.constant dense<0.000000e+00> : vector<32xf32>
    %18 = vector.multi_reduction <add>, %17, %cst_14 [0] : vector<128x32xf32> to vector<32xf32>
    %19 = vector.shape_cast %18 : vector<32xf32> to vector<1x32xf32>
    %20 = vector.shape_cast %19 : vector<1x32xf32> to vector<1x1x32xf32>
    %c0_15 = arith.constant 0 : index
    %c1 = arith.constant 1 : index
    %c0_16 = arith.constant 0 : index
    %21 = vector.load %arg6[%c0_15, %c1, %c0_16] : memref<1x2x32xf32, #tpu.memory_space<vmem>>, vector<1x1x32xf32>
    tpu.vector_store %arg6[%c0_15, %c1, %c0_16], %20 {strides = array<i32>} : memref<1x2x32xf32, #tpu.memory_space<vmem>>, vector<1x1x32xf32>,
    return
  }
  func.func @transform_0(%arg0: i32) -> (i32, i32) {
    %c0_i32 = arith.constant 0 : i32
    %c0_i32_0 = arith.constant 0 : i32
    return %arg0, %c0_i32 : i32, i32
  }
  func.func @transform_1(%arg0: i32) -> (i32, i32) {
    %c0_i32 = arith.constant 0 : i32
    %c0_i32_0 = arith.constant 0 : i32
    %c0_i32_1 = arith.constant 0 : i32
    return %c0_i32, %c0_i32_0 : i32, i32
  }
  func.func @transform_2(%arg0: i32) -> (i32, i32) {
    %c0_i32 = arith.constant 0 : i32
    %c0_i32_0 = arith.constant 0 : i32
    %c0_i32_1 = arith.constant 0 : i32
    return %c0_i32, %c0_i32_0 : i32, i32
  }
  func.func @transform_3(%arg0: i32) -> (i32, i32) {
    %c0_i32 = arith.constant 0 : i32
    %c0_i32_0 = arith.constant 0 : i32
    %c0_i32_1 = arith.constant 0 : i32
    return %c0_i32, %c0_i32_0 : i32, i32
  }
  func.func @transform_4(%arg0: i32) -> (i32, i32) {
    %c0_i32 = arith.constant 0 : i32
    %c0_i32_0 = arith.constant 0 : i32
    return %arg0, %c0_i32 : i32, i32
  }
  func.func @transform_5(%arg0: i32) -> (i32, i32, i32) {
    %c0_i32 = arith.constant 0 : i32
    %c0_i32_0 = arith.constant 0 : i32
    %c0_i32_1 = arith.constant 0 : i32
    return %arg0, %c0_i32, %c0_i32_0 : i32, i32, i32
  }
}

module attributes {stable_mosaic.version = 11 : i64} {
  func.func @kernel(%arg0: i32, %arg1: memref<128x16xf32, #tpu.memory_space<vmem>>, %arg2: memref<16x32xbf16, #tpu.memory_space<vmem>>, %arg3: memref<128x32xf32, #tpu.memory_space<vmem>>, %arg4: memref<1x2x32xf32, #tpu.memory_space<vmem>>) attributes {dimension_semantics = [#tpu.dimension_semantics<parallel>], iteration_bounds = array<i64: 1>, scalar_prefetch = 0 : i64, scratch_operands = 0 : i64, tpu.core_type = #tpu.core_type<tc>, window_params = [{transform_indices = @transform_0, window_bounds = array<i64: 128, 16>}, {pipeline_mode = #tpu.pipeline_mode<synchronous>, transform_indices = @transform_1, window_bounds = array<i64: 16, 32>}, {transform_indices = @transform_2, window_bounds = array<i64: 128, 32>}, {transform_indices = @transform_3, window_bounds = array<i64: 1, 2, 32>}]} {
    %c0 = arith.constant 0 : index
    %c0_0 = arith.constant 0 : index
    %0 = vector.load %arg1[%c0, %c0_0] : memref<128x16xf32, #tpu.memory_space<vmem>>, vector<128x16xf32>
    %1 = arith.truncf %0 : vector<128x16xf32> to vector<128x16xbf16>
    %c0_1 = arith.constant 0 : index
    %c0_2 = arith.constant 0 : index
    %2 = vector.load %arg2[%c0_1, %c0_2] : memref<16x32xbf16, #tpu.memory_space<vmem>>, vector<16x32xbf16>
    %cst = arith.constant dense<0.000000e+00> : vector<128x32xf32>
    %3 = tpu.matmul %1, %2, %cst {dimension_numbers = #tpu.dot_dimension_numbers<[1], [0], [0], [1], [0, 0, 1, 1], [], []>} : vector<128x16xbf16>, vector<16x32xbf16>, vector<128x32xf32> -> vector<128x32xf32>
    %c0_3 = arith.constant 0 : index
    %c0_4 = arith.constant 0 : index
    %4 = vector.load %arg3[%c0_3, %c0_4] : memref<128x32xf32, #tpu.memory_space<vmem>>, vector<128x32xf32>
    tpu.vector_store %arg3[%c0_3, %c0_4], %3 {strides = array<i32>} : memref<128x32xf32, #tpu.memory_space<vmem>>, vector<128x32xf32>,
    %cst_5 = arith.constant dense<0.000000e+00> : vector<32xf32>
    %5 = vector.multi_reduction <add>, %3, %cst_5 [0] : vector<128x32xf32> to vector<32xf32>
    %6 = vector.shape_cast %5 : vector<32xf32> to vector<1x32xf32>
    %7 = vector.shape_cast %6 : vector<1x32xf32> to vector<1x1x32xf32>
    %c0_6 = arith.constant 0 : index
    %c0_7 = arith.constant 0 : index
    %c0_8 = arith.constant 0 : index
    %8 = vector.load %arg4[%c0_6, %c0_7, %c0_8] : memref<1x2x32xf32, #tpu.memory_space<vmem>>, vector<1x1x32xf32>
    tpu.vector_store %arg4[%c0_6, %c0_7, %c0_8], %7 {strides = array<i32>} : memref<1x2x32xf32, #tpu.memory_space<vmem>>, vector<1x1x32xf32>,
    %9 = arith.mulf %3, %3 : vector<128x32xf32>
    %cst_9 = arith.constant dense<0.000000e+00> : vector<32xf32>
    %10 = vector.multi_reduction <add>, %9, %cst_9 [0] : vector<128x32xf32> to vector<32xf32>
    %11 = vector.shape_cast %10 : vector<32xf32> to vector<1x32xf32>
    %12 = vector.shape_cast %11 : vector<1x32xf32> to vector<1x1x32xf32>
    %c0_10 = arith.constant 0 : index
    %c1 = arith.constant 1 : index
    %c0_11 = arith.constant 0 : index
    %13 = vector.load %arg4[%c0_10, %c1, %c0_11] : memref<1x2x32xf32, #tpu.memory_space<vmem>>, vector<1x1x32xf32>
    tpu.vector_store %arg4[%c0_10, %c1, %c0_11], %12 {strides = array<i32>} : memref<1x2x32xf32, #tpu.memory_space<vmem>>, vector<1x1x32xf32>,
    return
  }
  func.func @transform_0(%arg0: i32) -> (i32, i32) {
    %c0_i32 = arith.constant 0 : i32
    %c0_i32_0 = arith.constant 0 : i32
    return %arg0, %c0_i32 : i32, i32
  }
  func.func @transform_1(%arg0: i32) -> (i32, i32) {
    %c0_i32 = arith.constant 0 : i32
    %c0_i32_0 = arith.constant 0 : i32
    %c0_i32_1 = arith.constant 0 : i32
    return %c0_i32, %c0_i32_0 : i32, i32
  }
  func.func @transform_2(%arg0: i32) -> (i32, i32) {
    %c0_i32 = arith.constant 0 : i32
    %c0_i32_0 = arith.constant 0 : i32
    return %arg0, %c0_i32 : i32, i32
  }
  func.func @transform_3(%arg0: i32) -> (i32, i32, i32) {
    %c0_i32 = arith.constant 0 : i32
    %c0_i32_0 = arith.constant 0 : i32
    %c0_i32_1 = arith.constant 0 : i32
    return %arg0, %c0_i32, %c0_i32_0 : i32, i32, i32
  }
}

module attributes {stable_mosaic.version = 11 : i64} {
  func.func @kernel(%arg0: i32, %arg1: memref<128x32xf32, #tpu.memory_space<vmem>>, %arg2: memref<128x32xf32, #tpu.memory_space<vmem>>, %arg3: memref<1x32xf32, #tpu.memory_space<vmem>>, %arg4: memref<1x32xf32, #tpu.memory_space<vmem>>, %arg5: memref<1x32xf32, #tpu.memory_space<vmem>>, %arg6: memref<1x32xf32, #tpu.memory_space<vmem>>, %arg7: memref<128x32xf32, #tpu.memory_space<vmem>>) attributes {dimension_semantics = [#tpu.dimension_semantics<parallel>], iteration_bounds = array<i64: 1>, scalar_prefetch = 0 : i64, scratch_operands = 0 : i64, tpu.core_type = #tpu.core_type<tc>, window_params = [{transform_indices = @transform_0, window_bounds = array<i64: 128, 32>}, {transform_indices = @transform_1, window_bounds = array<i64: 128, 32>}, {pipeline_mode = #tpu.pipeline_mode<synchronous>, transform_indices = @transform_2, window_bounds = array<i64: 1, 32>}, {pipeline_mode = #tpu.pipeline_mode<synchronous>, transform_indices = @transform_3, window_bounds = array<i64: 1, 32>}, {pipeline_mode = #tpu.pipeline_mode<synchronous>, transform_indices = @transform_4, window_bounds = array<i64: 1, 32>}, {pipeline_mode = #tpu.pipeline_mode<synchronous>, transform_indices = @transform_5, window_bounds = array<i64: 1, 32>}, {transform_indices = @transform_6, window_bounds = array<i64: 128, 32>}]} {
    %c0 = arith.constant 0 : index
    %c0_0 = arith.constant 0 : index
    %0 = vector.load %arg1[%c0, %c0_0] : memref<128x32xf32, #tpu.memory_space<vmem>>, vector<128x32xf32>
    %c0_1 = arith.constant 0 : index
    %c0_2 = arith.constant 0 : index
    %1 = vector.load %arg3[%c0_1, %c0_2] : memref<1x32xf32, #tpu.memory_space<vmem>>, vector<1x32xf32>
    %2 = vector.broadcast %1 : vector<1x32xf32> to vector<128x32xf32>
    %3 = arith.mulf %0, %2 : vector<128x32xf32>
    %c0_3 = arith.constant 0 : index
    %c0_4 = arith.constant 0 : index
    %4 = vector.load %arg4[%c0_3, %c0_4] : memref<1x32xf32, #tpu.memory_space<vmem>>, vector<1x32xf32>
    %5 = vector.broadcast %4 : vector<1x32xf32> to vector<128x32xf32>
    %6 = arith.addf %3, %5 : vector<128x32xf32>
    %c0_5 = arith.constant 0 : index
    %c0_6 = arith.constant 0 : index
    %7 = vector.load %arg2[%c0_5, %c0_6] : memref<128x32xf32, #tpu.memory_space<vmem>>, vector<128x32xf32>
    %c0_7 = arith.constant 0 : index
    %c0_8 = arith.constant 0 : index
    %8 = vector.load %arg5[%c0_7, %c0_8] : memref<1x32xf32, #tpu.memory_space<vmem>>, vector<1x32xf32>
    %9 = vector.broadcast %8 : vector<1x32xf32> to vector<128x32xf32>
    %10 = arith.mulf %7, %9 : vector<128x32xf32>
    %c0_9 = arith.constant 0 : index
    %c0_10 = arith.constant 0 : index
    %11 = vector.load %arg6[%c0_9, %c0_10] : memref<1x32xf32, #tpu.memory_space<vmem>>, vector<1x32xf32>
    %12 = vector.broadcast %11 : vector<1x32xf32> to vector<128x32xf32>
    %13 = arith.addf %10, %12 : vector<128x32xf32>
    %14 = arith.addf %6, %13 : vector<128x32xf32>
    %cst = arith.constant 0.000000e+00 : f32
    %15 = vector.broadcast %cst : f32 to vector<128x32xf32>
    %16 = arith.maximumf %14, %15 : vector<128x32xf32>
    %c0_11 = arith.constant 0 : index
    %c0_12 = arith.constant 0 : index
    %17 = vector.load %arg7[%c0_11, %c0_12] : memref<128x32xf32, #tpu.memory_space<vmem>>, vector<128x32xf32>
    tpu.vector_store %arg7[%c0_11, %c0_12], %16 {strides = array<i32>} : memref<128x32xf32, #tpu.memory_space<vmem>>, vector<128x32xf32>,
    return
  }
  func.func @transform_0(%arg0: i32) -> (i32, i32) {
    %c0_i32 = arith.constant 0 : i32
    %c0_i32_0 = arith.constant 0 : i32
    return %arg0, %c0_i32 : i32, i32
  }
  func.func @transform_1(%arg0: i32) -> (i32, i32) {
    %c0_i32 = arith.constant 0 : i32
    %c0_i32_0 = arith.constant 0 : i32
    return %arg0, %c0_i32 : i32, i32
  }
  func.func @transform_2(%arg0: i32) -> (i32, i32) {
    %c0_i32 = arith.constant 0 : i32
    %c0_i32_0 = arith.constant 0 : i32
    %c0_i32_1 = arith.constant 0 : i32
    return %c0_i32, %c0_i32_0 : i32, i32
  }
  func.func @transform_3(%arg0: i32) -> (i32, i32) {
    %c0_i32 = arith.constant 0 : i32
    %c0_i32_0 = arith.constant 0 : i32
    %c0_i32_1 = arith.constant 0 : i32
    return %c0_i32, %c0_i32_0 : i32, i32
  }
  func.func @transform_4(%arg0: i32) -> (i32, i32) {
    %c0_i32 = arith.constant 0 : i32
    %c0_i32_0 = arith.constant 0 : i32
    %c0_i32_1 = arith.constant 0 : i32
    return %c0_i32, %c0_i32_0 : i32, i32
  }
  func.func @transform_5(%arg0: i32) -> (i32, i32) {
    %c0_i32 = arith.constant 0 : i32
    %c0_i32_0 = arith.constant 0 : i32
    %c0_i32_1 = arith.constant 0 : i32
    return %c0_i32, %c0_i32_0 : i32, i32
  }
  func.func @transform_6(%arg0: i32) -> (i32, i32) {
    %c0_i32 = arith.constant 0 : i32
    %c0_i32_0 = arith.constant 0 : i32
    return %arg0, %c0_i32 : i32, i32
  }
}

</mosaic_0001>

<llo_original>
// kernel: bottleneck_forward.7
$region0: #{bottleneck_forward.7}
  #allocation0 [shape = 'u32[]', space=smem, size = 0x4, offset = 0x4, fixed_abs, tag = 'smem constant byte address 0x4 - core index']
  #allocation1 [shape = 'u32[144,128]{1,0:T(1,128)}', space=vmem, size = 0x12000, scoped, tag = 'internal scratch']
  %s0 = inlined_call_operand.vmem [shape: f32[128,8], index: 0, kind: input, shape index: {}]
  %s1 = inlined_call_operand.vmem [shape: f32[1,8], index: 1, kind: input, shape index: {}]
  %s2 = inlined_call_operand.vmem [shape: f32[1,8], index: 2, kind: input, shape index: {}]
  %s3 = inlined_call_operand.vmem [shape: bf16[8,32], index: 3, kind: input, shape index: {}]
  %s4 = inlined_call_operand.vmem [shape: f32[128,32], index: 4, kind: output, shape index: {0}]
  %s5 = inlined_call_operand.vmem [shape: f32[1,2,32], index: 5, kind: output, shape index: {1}]
  %6 = xla_tuple %s4, %s5
  %s7 = sld [smem:[#allocation0]]
  $region34: #{bottleneck_forward.7} parent=0
    _
  %s9 = ssub.s32 1, %s7
  %s10 = scalar_select 0, %s9, %s7
  // Predicated region
  $region2: #{bottleneck_forward.7} parent=0 // pred_check
    _
  $region3: #{bottleneck_forward.7} parent=0 // pred_check_branch
    %12 = sbr.rel (0) target = $region5
  $region4: #{bottleneck_forward.7} parent=0 // pred_region
    _
  $region5: #{bottleneck_forward.7} parent=0 // pred_fallthru
    _
  // Predicated region
  $region6: #{bottleneck_forward.7} parent=0 // pred_check
    _
  $region7: #{bottleneck_forward.7} parent=0 // pred_check_branch
    %14 = sbr.rel (0) target = $region9
  $region8: #{bottleneck_forward.7} parent=0 // pred_region
    _
  $region9: #{bottleneck_forward.7} parent=0 // pred_fallthru
    _
  // Predicated region
  $region10: #{bottleneck_forward.7} parent=0 // pred_check
    _
  $region11: #{bottleneck_forward.7} parent=0 // pred_check_branch
    %16 = sbr.rel (0) target = $region13
  $region12: #{bottleneck_forward.7} parent=0 // pred_region
    _
  $region13: #{bottleneck_forward.7} parent=0 // pred_fallthru
    _
  // Predicated region
  $region14: #{bottleneck_forward.7} parent=0 // pred_check
    _
  $region15: #{bottleneck_forward.7} parent=0 // pred_check_branch
    %18 = sbr.rel (0) target = $region17
  $region16: #{bottleneck_forward.7} parent=0 // pred_region
    _
  $region17: #{bottleneck_forward.7} parent=0 // pred_fallthru
    _
  %v20 = vld [vmem:[%s0] sm:$0xff]
  %v21 = vld [vmem:[%s0 + $0x8] sm:$0xff]
  %v22 = vld [vmem:[%s0 + $0x10] sm:$0xff]
  %v23 = vld [vmem:[%s0 + $0x18] sm:$0xff]
  %v24 = vld [vmem:[%s0 + $0x20] sm:$0xff]
  %v25 = vld [vmem:[%s0 + $0x28] sm:$0xff]
  %v26 = vld [vmem:[%s0 + $0x30] sm:$0xff]
  %v27 = vld [vmem:[%s0 + $0x38] sm:$0xff]
  %v28 = vld [vmem:[%s0 + $0x40] sm:$0xff]
  %v29 = vld [vmem:[%s0 + $0x48] sm:$0xff]
  %v30 = vld [vmem:[%s0 + $0x50] sm:$0xff]
  %v31 = vld [vmem:[%s0 + $0x58] sm:$0xff]
  %v32 = vld [vmem:[%s0 + $0x60] sm:$0xff]
  %v33 = vld [vmem:[%s0 + $0x68] sm:$0xff]
  %v34 = vld [vmem:[%s0 + $0x70] sm:$0xff]
  %v35 = vld [vmem:[%s0 + $0x78] sm:$0xff]
  %v36 = vld [vmem:[%s1] sm:$0x1]
  %v38 = vlaneseq
  %v39 = vshrl.u32 %v38, 7
  %v40 = vsub.s32 0, %v39
  %v41 = vrot.slane %v36, %v40
  %v43 = vmul.f32 %v20, %v41
  %v44 = vmul.f32 %v21, %v41
  %v45 = vmul.f32 %v22, %v41
  %v46 = vmul.f32 %v23, %v41
  %v47 = vmul.f32 %v24, %v41
  %v48 = vmul.f32 %v25, %v41
  %v49 = vmul.f32 %v26, %v41
  %v50 = vmul.f32 %v27, %v41
  %v51 = vmul.f32 %v28, %v41
  %v52 = vmul.f32 %v29, %v41
  %v53 = vmul.f32 %v30, %v41
  %v54 = vmul.f32 %v31, %v41
  %v55 = vmul.f32 %v32, %v41
  %v56 = vmul.f32 %v33, %v41
  %v57 = vmul.f32 %v34, %v41
  %v58 = vmul.f32 %v35, %v41
  %v59 = vld [vmem:[%s2] sm:$0x1]
  %v61 = vlaneseq
  %v62 = vshrl.u32 %v61, 7
  %v63 = vsub.s32 0, %v62
  %v64 = vrot.slane %v59, %v63
  %v66 = vadd.f32 %v43, %v64
  %v67 = vadd.f32 %v44, %v64
  %v68 = vadd.f32 %v45, %v64
  %v69 = vadd.f32 %v46, %v64
  %v70 = vadd.f32 %v47, %v64
  %v71 = vadd.f32 %v48, %v64
  %v72 = vadd.f32 %v49, %v64
  %v73 = vadd.f32 %v50, %v64
  %v74 = vadd.f32 %v51, %v64
  %v75 = vadd.f32 %v52, %v64
  %v76 = vadd.f32 %v53, %v64
  %v77 = vadd.f32 %v54, %v64
  %v78 = vadd.f32 %v55, %v64
  %v79 = vadd.f32 %v56, %v64
  %v80 = vadd.f32 %v57, %v64
  %v81 = vadd.f32 %v58, %v64
  %v82 = vmax.f32 %v66, 0.0
  %v83 = vmax.f32 %v67, 0.0
  %v84 = vmax.f32 %v68, 0.0
  %v85 = vmax.f32 %v69, 0.0
  %v86 = vmax.f32 %v70, 0.0
  %v87 = vmax.f32 %v71, 0.0
  %v88 = vmax.f32 %v72, 0.0
  %v89 = vmax.f32 %v73, 0.0
  %v90 = vmax.f32 %v74, 0.0
  %v91 = vmax.f32 %v75, 0.0
  %v92 = vmax.f32 %v76, 0.0
  %v93 = vmax.f32 %v77, 0.0
  %v94 = vmax.f32 %v78, 0.0
  %v95 = vmax.f32 %v79, 0.0
  %v96 = vmax.f32 %v80, 0.0
  %v97 = vmax.f32 %v81, 0.0
  %v98 = vpack.c.bf16 %v83, %v82
  %v99 = vpack.c.bf16 %v85, %v84
  %v100 = vpack.c.bf16 %v87, %v86
  %v101 = vpack.c.bf16 %v89, %v88
  %v102 = vpack.c.bf16 %v91, %v90
  %v103 = vpack.c.bf16 %v93, %v92
  %v104 = vpack.c.bf16 %v95, %v94
  %v105 = vpack.c.bf16 %v97, %v96
  %v106 = vld [vmem:[%s3] sm:$0xf]
  %vm107 = vcmask 64512
  %v109 = vsel %vm107, %v98, 0
  %v112 = vsel %vm107, %v99, 0
  %v115 = vsel %vm107, %v100, 0
  %v118 = vsel %vm107, %v101, 0
  %v121 = vsel %vm107, %v102, 0
  %v124 = vsel %vm107, %v103, 0
  %v127 = vsel %vm107, %v104, 0
  %v130 = vsel %vm107, %v105, 0
  %vm132 = vcmask 1043456
  %v134 = vsel %vm132, %v106, 0
  %136 = vmatprep.subr.bf16.mxu0 0
  %137 = vmatpush1.bf16.msra.mxu0 %v134
  %138 = vmatprep.subr.bf16.mxu0 0
  %139 = vmatpush1.bf16.msra.mxu0 0
  %140 = vmatprep.subr.bf16.mxu0 0
  %141 = vmatpush1.bf16.msra.mxu0 0
  %142 = vmatprep.subr.bf16.mxu0 0
  %143 = vmatpush1.bf16.msra.mxu0 0
  %144 = vmatprep.subr.bf16.mxu0 0
  %145 = vmatpush1.bf16.msra.mxu0 0
  %146 = vmatprep.subr.bf16.mxu0 0
  %147 = vmatpush1.bf16.msra.mxu0 0
  %148 = vmatprep.subr.bf16.mxu0 0
  %149 = vmatpush1.bf16.msra.mxu0 0
  %150 = vmatprep.subr.bf16.mxu0 0
  %151 = vmatpush1.bf16.msra.mxu0 0
  %152 = vmatprep.subr.bf16.mxu0 0
  %153 = vmatpush1.bf16.msra.mxu0 0
  %154 = vmatprep.subr.bf16.mxu0 0
  %155 = vmatpush1.bf16.msra.mxu0 0
  %156 = vmatprep.subr.bf16.mxu0 0
  %157 = vmatpush1.bf16.msra.mxu0 0
  %158 = vmatprep.subr.bf16.mxu0 0
  %159 = vmatpush1.bf16.msra.mxu0 0
  %160 = vmatprep.subr.bf16.mxu0 0
  %161 = vmatpush1.bf16.msra.mxu0 0
  %162 = vmatprep.subr.bf16.mxu0 0
  %163 = vmatpush1.bf16.msra.mxu0 0
  %164 = vmatprep.subr.bf16.mxu0 0
  %165 = vmatpush1.bf16.msra.mxu0 0
  %166 = vmatprep.subr.bf16.mxu0 0
  %167 = vmatpush1.bf16.msra.mxu0 0
  %168 = vmatprep.mubr.bf16.mxu0 0
  %169 = vmatmul.mubr.bf16.gmra.mrb[0].mxu0 %v109
  %v170 = vpop.f32.mrb[0].mxu0
  %v171 = vadd.f32 0.0, %v170
  %v172 = vpop.f32.mrb[0].mxu0
  %v173 = vpop.f32.mrb[0].mxu0
  %v174 = vadd.f32 0.0, %v173
  %v175 = vpop.f32.mrb[0].mxu0
  %176 = vmatprep.mubr.bf16.mxu0 0
  %177 = vmatmul.mubr.bf16.gmra.mrb[0].mxu0 %v112
  %v178 = vpop.f32.mrb[0].mxu0
  %v179 = vadd.f32 0.0, %v178
  %v180 = vpop.f32.mrb[0].mxu0
  %v181 = vpop.f32.mrb[0].mxu0
  %v182 = vadd.f32 0.0, %v181
  %v183 = vpop.f32.mrb[0].mxu0
  %184 = vmatprep.mubr.bf16.mxu0 0
  %185 = vmatmul.mubr.bf16.gmra.mrb[0].mxu0 %v115
  %v186 = vpop.f32.mrb[0].mxu0
  %v187 = vadd.f32 0.0, %v186
  %v188 = vpop.f32.mrb[0].mxu0
  %v189 = vpop.f32.mrb[0].mxu0
  %v190 = vadd.f32 0.0, %v189
  %v191 = vpop.f32.mrb[0].mxu0
  %192 = vmatprep.mubr.bf16.mxu0 0
  %193 = vmatmul.mubr.bf16.gmra.mrb[0].mxu0 %v118
  %v194 = vpop.f32.mrb[0].mxu0
  %v195 = vadd.f32 0.0, %v194
  %v196 = vpop.f32.mrb[0].mxu0
  %v197 = vpop.f32.mrb[0].mxu0
  %v198 = vadd.f32 0.0, %v197
  %v199 = vpop.f32.mrb[0].mxu0
  %200 = vmatprep.mubr.bf16.mxu0 0
  %201 = vmatmul.mubr.bf16.gmra.mrb[0].mxu0 %v121
  %v202 = vpop.f32.mrb[0].mxu0
  %v203 = vadd.f32 0.0, %v202
  %v204 = vpop.f32.mrb[0].mxu0
  %v205 = vpop.f32.mrb[0].mxu0
  %v206 = vadd.f32 0.0, %v205
  %v207 = vpop.f32.mrb[0].mxu0
  %208 = vmatprep.mubr.bf16.mxu0 0
  %209 = vmatmul.mubr.bf16.gmra.mrb[0].mxu0 %v124
  %v210 = vpop.f32.mrb[0].mxu0
  %v211 = vadd.f32 0.0, %v210
  %v212 = vpop.f32.mrb[0].mxu0
  %v213 = vpop.f32.mrb[0].mxu0
  %v214 = vadd.f32 0.0, %v213
  %v215 = vpop.f32.mrb[0].mxu0
  %216 = vmatprep.mubr.bf16.mxu0 0
  %217 = vmatmul.mubr.bf16.gmra.mrb[0].mxu0 %v127
  %v218 = vpop.f32.mrb[0].mxu0
  %v219 = vadd.f32 0.0, %v218
  %v220 = vpop.f32.mrb[0].mxu0
  %v221 = vpop.f32.mrb[0].mxu0
  %v222 = vadd.f32 0.0, %v221
  %v223 = vpop.f32.mrb[0].mxu0
  %224 = vmatprep.mubr.bf16.mxu0 0
  %225 = vmatmul.mubr.bf16.gmra.mrb[0].mxu0 %v130
  %v226 = vpop.f32.mrb[0].mxu0
  %v227 = vadd.f32 0.0, %v226
  %v228 = vpop.f32.mrb[0].mxu0
  %v229 = vpop.f32.mrb[0].mxu0
  %v230 = vadd.f32 0.0, %v229
  %v231 = vpop.f32.mrb[0].mxu0
  %232 = vdwg.mxu0
  %vm233 = vcmask 261120
  %234 = vst.msk [vmem:[%s4] sm:$0xff] %vm233, %v171
  %235 = vst.msk [vmem:[%s4 + $0x8] sm:$0xff] %vm233, %v174
  %236 = vst.msk [vmem:[%s4 + $0x10] sm:$0xff] %vm233, %v179
  %237 = vst.msk [vmem:[%s4 + $0x18] sm:$0xff] %vm233, %v182
  %238 = vst.msk [vmem:[%s4 + $0x20] sm:$0xff] %vm233, %v187
  %239 = vst.msk [vmem:[%s4 + $0x28] sm:$0xff] %vm233, %v190
  %240 = vst.msk [vmem:[%s4 + $0x30] sm:$0xff] %vm233, %v195
  %241 = vst.msk [vmem:[%s4 + $0x38] sm:$0xff] %vm233, %v198
  %242 = vst.msk [vmem:[%s4 + $0x40] sm:$0xff] %vm233, %v203
  %243 = vst.msk [vmem:[%s4 + $0x48] sm:$0xff] %vm233, %v206
  %244 = vst.msk [vmem:[%s4 + $0x50] sm:$0xff] %vm233, %v211
  %245 = vst.msk [vmem:[%s4 + $0x58] sm:$0xff] %vm233, %v214
  %246 = vst.msk [vmem:[%s4 + $0x60] sm:$0xff] %vm233, %v219
  %247 = vst.msk [vmem:[%s4 + $0x68] sm:$0xff] %vm233, %v222
  %248 = vst.msk [vmem:[%s4 + $0x70] sm:$0xff] %vm233, %v227
  %249 = vst.msk [vmem:[%s4 + $0x78] sm:$0xff] %vm233, %v230
  %v250 = vsel %vm233, %v171, 0.0
  %v251 = vsel %vm233, %v174, 0.0
  %v252 = vadd.f32 %v250, %v251
  %v253 = vsel %vm233, %v179, 0.0
  %v254 = vadd.f32 %v252, %v253
  %v255 = vsel %vm233, %v182, 0.0
  %v256 = vadd.f32 %v254, %v255
  %v257 = vsel %vm233, %v187, 0.0
  %v258 = vadd.f32 %v256, %v257
  %v259 = vsel %vm233, %v190, 0.0
  %v260 = vadd.f32 %v258, %v259
  %v261 = vsel %vm233, %v195, 0.0
  %v262 = vadd.f32 %v260, %v261
  %v263 = vsel %vm233, %v198, 0.0
  %v264 = vadd.f32 %v262, %v263
  %v265 = vsel %vm233, %v203, 0.0
  %v266 = vadd.f32 %v264, %v265
  %v267 = vsel %vm233, %v206, 0.0
  %v268 = vadd.f32 %v266, %v267
  %v269 = vsel %vm233, %v211, 0.0
  %v270 = vadd.f32 %v268, %v269
  %v271 = vsel %vm233, %v214, 0.0
  %v272 = vadd.f32 %v270, %v271
  %v273 = vsel %vm233, %v219, 0.0
  %v274 = vadd.f32 %v272, %v273
  %v275 = vsel %vm233, %v222, 0.0
  %v276 = vadd.f32 %v274, %v275
  %v277 = vsel %vm233, %v227, 0.0
  %v278 = vadd.f32 %v276, %v277
  %v279 = vsel %vm233, %v230, 0.0
  %v280 = vadd.f32 %v278, %v279
  %v281 = vrot.slane %v280, 4
  %v282 = vadd.f32 %v280, %v281
  %v283 = vrot.slane %v282, 2
  %v284 = vadd.f32 %v282, %v283
  %v285 = vrot.slane %v284, 1
  %v286 = vadd.f32 %v284, %v285
  %vm287 = vcmask 253952
  %288 = vst.msk [vmem:[%s5] sm:$0x1] %vm287, %v286
  %v289 = vmul.f32 %v171, %v171
  %v290 = vmul.f32 %v174, %v174
  %v291 = vmul.f32 %v179, %v179
  %v292 = vmul.f32 %v182, %v182
  %v293 = vmul.f32 %v187, %v187
  %v294 = vmul.f32 %v190, %v190
  %v295 = vmul.f32 %v195, %v195
  %v296 = vmul.f32 %v198, %v198
  %v297 = vmul.f32 %v203, %v203
  %v298 = vmul.f32 %v206, %v206
  %v299 = vmul.f32 %v211, %v211
  %v300 = vmul.f32 %v214, %v214
  %v301 = vmul.f32 %v219, %v219
  %v302 = vmul.f32 %v222, %v222
  %v303 = vmul.f32 %v227, %v227
  %v304 = vmul.f32 %v230, %v230
  %v305 = vsel %vm233, %v289, 0.0
  %v306 = vsel %vm233, %v290, 0.0
  %v307 = vadd.f32 %v305, %v306
  %v308 = vsel %vm233, %v291, 0.0
  %v309 = vadd.f32 %v307, %v308
  %v310 = vsel %vm233, %v292, 0.0
  %v311 = vadd.f32 %v309, %v310
  %v312 = vsel %vm233, %v293, 0.0
  %v313 = vadd.f32 %v311, %v312
  %v314 = vsel %vm233, %v294, 0.0
  %v315 = vadd.f32 %v313, %v314
  %v316 = vsel %vm233, %v295, 0.0
  %v317 = vadd.f32 %v315, %v316
  %v318 = vsel %vm233, %v296, 0.0
  %v319 = vadd.f32 %v317, %v318
  %v320 = vsel %vm233, %v297, 0.0
  %v321 = vadd.f32 %v319, %v320
  %v322 = vsel %vm233, %v298, 0.0
  %v323 = vadd.f32 %v321, %v322
  %v324 = vsel %vm233, %v299, 0.0
  %v325 = vadd.f32 %v323, %v324
  %v326 = vsel %vm233, %v300, 0.0
  %v327 = vadd.f32 %v325, %v326
  %v328 = vsel %vm233, %v301, 0.0
  %v329 = vadd.f32 %v327, %v328
  %v330 = vsel %vm233, %v302, 0.0
  %v331 = vadd.f32 %v329, %v330
  %v332 = vsel %vm233, %v303, 0.0
  %v333 = vadd.f32 %v331, %v332
  %v334 = vsel %vm233, %v304, 0.0
  %v335 = vadd.f32 %v333, %v334
  %v336 = vrot.slane %v335, 4
  %v337 = vadd.f32 %v335, %v336
  %v338 = vrot.slane %v337, 2
  %v339 = vadd.f32 %v337, %v338
  %v340 = vrot.slane %v339, 1
  %v341 = vadd.f32 %v339, %v340
  %342 = vst.msk [vmem:[%s5 + $0x1] sm:$0x1] %vm287, %v341
  // Predicated region
  $region18: #{bottleneck_forward.7} parent=0 // pred_check
    _
  $region19: #{bottleneck_forward.7} parent=0 // pred_check_branch
    %344 = sbr.rel (0) target = $region21
  $region20: #{bottleneck_forward.7} parent=0 // pred_region
    _
  $region21: #{bottleneck_forward.7} parent=0 // pred_fallthru
    _
  // Predicated region
  $region22: #{bottleneck_forward.7} parent=0 // pred_check
    _
  $region23: #{bottleneck_forward.7} parent=0 // pred_check_branch
    %346 = sbr.rel (0) target = $region25
  $region24: #{bottleneck_forward.7} parent=0 // pred_region
    _
  $region25: #{bottleneck_forward.7} parent=0 // pred_fallthru
    _
  // Predicated region
  $region26: #{bottleneck_forward.7} parent=0 // pred_check
    _
  $region27: #{bottleneck_forward.7} parent=0 // pred_check_branch
    %348 = sbr.rel (0) target = $region29
  $region28: #{bottleneck_forward.7} parent=0 // pred_region
    _
  $region29: #{bottleneck_forward.7} parent=0 // pred_fallthru
    _
  // Predicated region
  $region30: #{bottleneck_forward.7} parent=0 // pred_check
    _
  $region31: #{bottleneck_forward.7} parent=0 // pred_check_branch
    %350 = sbr.rel (0) target = $region33
  $region32: #{bottleneck_forward.7} parent=0 // pred_region
    _
  $region33: #{bottleneck_forward.7} parent=0 // pred_fallthru
    _

// kernel: bottleneck_forward.5
$region0: #{bottleneck_forward.5}
  #allocation0 [shape = 'u32[]', space=smem, size = 0x4, offset = 0x4, fixed_abs, tag = 'smem constant byte address 0x4 - core index']
  #allocation1 [shape = 'u32[144,128]{1,0:T(1,128)}', space=vmem, size = 0x12000, scoped, tag = 'internal scratch']
  %s0 = inlined_call_operand.hbm [shape: f32[128,16], index: 0, kind: input, shape index: {}]
  %s1 = inlined_call_operand.vmem [shape: bf16[16,8], index: 1, kind: input, shape index: {}]
  %s2 = inlined_call_operand.vmem [shape: f32[128,8], index: 2, kind: output, shape index: {0}]
  %s3 = inlined_call_operand.vmem [shape: f32[1,2,8], index: 3, kind: output, shape index: {1}]
  %4 = xla_tuple %s2, %s3
  %s5 = sld [smem:[#allocation0]]
  $region30: #{bottleneck_forward.5} parent=0
    _
  %s7 = ssub.s32 1, %s5
  %s8 = scalar_select 0, %s7, %s5
  $region1: #{bottleneck_forward.5} parent=0
    #allocation2 [shape = 'u8[65536]{0}', space=vmem, size = 0x10000, scoped, tag = 'input window, operand 0, single buffered']
    #allocation3 [shape = 's32[1]{0}', space=sflag, size = 0x4, scoped, tag = 'scoped memory for bottleneck_forward.5']
    %9 = vsyncpa [#allocation3], 0
    // Predicated region
    $region2: #{bottleneck_forward.5} parent=1 // pred_check
      _
    $region3: #{bottleneck_forward.5} parent=1 // pred_check_branch
      %11 = sbr.rel (0) target = $region5
    $region4: #{bottleneck_forward.5} parent=1 // pred_region
      %s13 = ssub.s32 2048, 2048
      %14 = vsyncadd [#allocation3], %s13
      %s15 = sshll.u32 [#allocation2], 4
      %s16 = int_to_ptr.vmem [resolvable:$true] %s15
      %21 = dma.hbm_to_vmem [thread:$0]  %s0, 2048, %s16, [#allocation3], 128, 128, 8
    $region5: #{bottleneck_forward.5} parent=1 // pred_fallthru
      _
    // Predicated region
    $region6: #{bottleneck_forward.5} parent=1 // pred_check
      _
    $region7: #{bottleneck_forward.5} parent=1 // pred_check_branch
      %23 = sbr.rel (0) target = $region9
    $region8: #{bottleneck_forward.5} parent=1 // pred_region
      _
    $region9: #{bottleneck_forward.5} parent=1 // pred_fallthru
      _
    // Predicated region
    $region10: #{bottleneck_forward.5} parent=1 // pred_check
      _
    $region11: #{bottleneck_forward.5} parent=1 // pred_check_branch
      %25 = sbr.rel (0) target = $region13
    $region12: #{bottleneck_forward.5} parent=1 // pred_region
      %26 = dma.done [#allocation3], 2048
    $region13: #{bottleneck_forward.5} parent=1 // pred_fallthru
      _
    %v28 = vld [vmem:[#allocation2] sm:$0xff]
    %v29 = vld [vmem:[#allocation2 + $0x8] sm:$0xff]
    %v30 = vld [vmem:[#allocation2 + $0x10] sm:$0xff]
    %v31 = vld [vmem:[#allocation2 + $0x18] sm:$0xff]
    %v32 = vld [vmem:[#allocation2 + $0x20] sm:$0xff]
    %v33 = vld [vmem:[#allocation2 + $0x28] sm:$0xff]
    %v34 = vld [vmem:[#allocation2 + $0x30] sm:$0xff]
    %v35 = vld [vmem:[#allocation2 + $0x38] sm:$0xff]
    %v36 = vld [vmem:[#allocation2 + $0x40] sm:$0xff]
    %v37 = vld [vmem:[#allocation2 + $0x48] sm:$0xff]
    %v38 = vld [vmem:[#allocation2 + $0x50] sm:$0xff]
    %v39 = vld [vmem:[#allocation2 + $0x58] sm:$0xff]
    %v40 = vld [vmem:[#allocation2 + $0x60] sm:$0xff]
    %v41 = vld [vmem:[#allocation2 + $0x68] sm:$0xff]
    %v42 = vld [vmem:[#allocation2 + $0x70] sm:$0xff]
    %v43 = vld [vmem:[#allocation2 + $0x78] sm:$0xff]
    %v44 = vpack.c.bf16 %v29, %v28
    %v45 = vpack.c.bf16 %v31, %v30
    %v46 = vpack.c.bf16 %v33, %v32
    %v47 = vpack.c.bf16 %v35, %v34
    %v48 = vpack.c.bf16 %v37, %v36
    %v49 = vpack.c.bf16 %v39, %v38
    %v50 = vpack.c.bf16 %v41, %v40
    %v51 = vpack.c.bf16 %v43, %v42
    %v52 = vld [vmem:[%s1] sm:$0xf]
    %v53 = vld [vmem:[%s1 + $0x4] sm:$0xf]
    %v56 = vunpack.c.l.b16 %v52
    %v57 = vunpack.c.l.b16 %v53
    %v58 = vpack.c.b16 %v57, %v56
    %vm60 = vcmask 130048
    %v62 = vsel %vm60, %v44, 0
    %v65 = vsel %vm60, %v45, 0
    %v68 = vsel %vm60, %v46, 0
    %v71 = vsel %vm60, %v47, 0
    %v74 = vsel %vm60, %v48, 0
    %v77 = vsel %vm60, %v49, 0
    %v80 = vsel %vm60, %v50, 0
    %v83 = vsel %vm60, %v51, 0
    %85 = vmatprep.subr.bf16.mxu0 0
    %86 = vmatpush1.bf16.msra.mxu0 %v58
    %87 = vmatprep.subr.bf16.mxu0 0
    %88 = vmatpush1.bf16.msra.mxu0 0
    %89 = vmatprep.subr.bf16.mxu0 0
    %90 = vmatpush1.bf16.msra.mxu0 0
    %91 = vmatprep.subr.bf16.mxu0 0
    %92 = vmatpush1.bf16.msra.mxu0 0
    %93 = vmatprep.subr.bf16.mxu0 0
    %94 = vmatpush1.bf16.msra.mxu0 0
    %95 = vmatprep.subr.bf16.mxu0 0
    %96 = vmatpush1.bf16.msra.mxu0 0
    %97 = vmatprep.subr.bf16.mxu0 0
    %98 = vmatpush1.bf16.msra.mxu0 0
    %99 = vmatprep.subr.bf16.mxu0 0
    %100 = vmatpush1.bf16.msra.mxu0 0
    %101 = vmatprep.subr.bf16.mxu0 0
    %102 = vmatpush1.bf16.msra.mxu0 0
    %103 = vmatprep.subr.bf16.mxu0 0
    %104 = vmatpush1.bf16.msra.mxu0 0
    %105 = vmatprep.subr.bf16.mxu0 0
    %106 = vmatpush1.bf16.msra.mxu0 0
    %107 = vmatprep.subr.bf16.mxu0 0
    %108 = vmatpush1.bf16.msra.mxu0 0
    %109 = vmatprep.subr.bf16.mxu0 0
    %110 = vmatpush1.bf16.msra.mxu0 0
    %111 = vmatprep.subr.bf16.mxu0 0
    %112 = vmatpush1.bf16.msra.mxu0 0
    %113 = vmatprep.subr.bf16.mxu0 0
    %114 = vmatpush1.bf16.msra.mxu0 0
    %115 = vmatprep.subr.bf16.mxu0 0
    %116 = vmatpush1.bf16.msra.mxu0 0
    %117 = vmatprep.mubr.bf16.mxu0 0
    %118 = vmatmul.mubr.bf16.gmra.mrb[0].mxu0 %v62
    %v119 = vpop.f32.mrb[0].mxu0
    %v120 = vadd.f32 0.0, %v119
    %v121 = vpop.f32.mrb[0].mxu0
    %v122 = vpop.f32.mrb[0].mxu0
    %v123 = vadd.f32 0.0, %v122
    %v124 = vpop.f32.mrb[0].mxu0
    %125 = vmatprep.mubr.bf16.mxu0 0
    %126 = vmatmul.mubr.bf16.gmra.mrb[0].mxu0 %v65
    %v127 = vpop.f32.mrb[0].mxu0
    %v128 = vadd.f32 0.0, %v127
    %v129 = vpop.f32.mrb[0].mxu0
    %v130 = vpop.f32.mrb[0].mxu0
    %v131 = vadd.f32 0.0, %v130
    %v132 = vpop.f32.mrb[0].mxu0
    %133 = vmatprep.mubr.bf16.mxu0 0
    %134 = vmatmul.mubr.bf16.gmra.mrb[0].mxu0 %v68
    %v135 = vpop.f32.mrb[0].mxu0
    %v136 = vadd.f32 0.0, %v135
    %v137 = vpop.f32.mrb[0].mxu0
    %v138 = vpop.f32.mrb[0].mxu0
    %v139 = vadd.f32 0.0, %v138
    %v140 = vpop.f32.mrb[0].mxu0
    %141 = vmatprep.mubr.bf16.mxu0 0
    %142 = vmatmul.mubr.bf16.gmra.mrb[0].mxu0 %v71
    %v143 = vpop.f32.mrb[0].mxu0
    %v144 = vadd.f32 0.0, %v143
    %v145 = vpop.f32.mrb[0].mxu0
    %v146 = vpop.f32.mrb[0].mxu0
    %v147 = vadd.f32 0.0, %v146
    %v148 = vpop.f32.mrb[0].mxu0
    %149 = vmatprep.mubr.bf16.mxu0 0
    %150 = vmatmul.mubr.bf16.gmra.mrb[0].mxu0 %v74
    %v151 = vpop.f32.mrb[0].mxu0
    %v152 = vadd.f32 0.0, %v151
    %v153 = vpop.f32.mrb[0].mxu0
    %v154 = vpop.f32.mrb[0].mxu0
    %v155 = vadd.f32 0.0, %v154
    %v156 = vpop.f32.mrb[0].mxu0
    %157 = vmatprep.mubr.bf16.mxu0 0
    %158 = vmatmul.mubr.bf16.gmra.mrb[0].mxu0 %v77
    %v159 = vpop.f32.mrb[0].mxu0
    %v160 = vadd.f32 0.0, %v159
    %v161 = vpop.f32.mrb[0].mxu0
    %v162 = vpop.f32.mrb[0].mxu0
    %v163 = vadd.f32 0.0, %v162
    %v164 = vpop.f32.mrb[0].mxu0
    %165 = vmatprep.mubr.bf16.mxu0 0
    %166 = vmatmul.mubr.bf16.gmra.mrb[0].mxu0 %v80
    %v167 = vpop.f32.mrb[0].mxu0
    %v168 = vadd.f32 0.0, %v167
    %v169 = vpop.f32.mrb[0].mxu0
    %v170 = vpop.f32.mrb[0].mxu0
    %v171 = vadd.f32 0.0, %v170
    %v172 = vpop.f32.mrb[0].mxu0
    %173 = vmatprep.mubr.bf16.mxu0 0
    %174 = vmatmul.mubr.bf16.gmra.mrb[0].mxu0 %v83
    %v175 = vpop.f32.mrb[0].mxu0
    %v176 = vadd.f32 0.0, %v175
    %v177 = vpop.f32.mrb[0].mxu0
    %v178 = vpop.f32.mrb[0].mxu0
    %v179 = vadd.f32 0.0, %v178
    %v180 = vpop.f32.mrb[0].mxu0
    %181 = vdwg.mxu0
    %vm182 = vcmask 64512
    %183 = vst.msk [vmem:[%s2] sm:$0xff] %vm182, %v120
    %184 = vst.msk [vmem:[%s2 + $0x8] sm:$0xff] %vm182, %v123
    %185 = vst.msk [vmem:[%s2 + $0x10] sm:$0xff] %vm182, %v128
    %186 = vst.msk [vmem:[%s2 + $0x18] sm:$0xff] %vm182, %v131
    %187 = vst.msk [vmem:[%s2 + $0x20] sm:$0xff] %vm182, %v136
    %188 = vst.msk [vmem:[%s2 + $0x28] sm:$0xff] %vm182, %v139
    %189 = vst.msk [vmem:[%s2 + $0x30] sm:$0xff] %vm182, %v144
    %190 = vst.msk [vmem:[%s2 + $0x38] sm:$0xff] %vm182, %v147
    %191 = vst.msk [vmem:[%s2 + $0x40] sm:$0xff] %vm182, %v152
    %192 = vst.msk [vmem:[%s2 + $0x48] sm:$0xff] %vm182, %v155
    %193 = vst.msk [vmem:[%s2 + $0x50] sm:$0xff] %vm182, %v160
    %194 = vst.msk [vmem:[%s2 + $0x58] sm:$0xff] %vm182, %v163
    %195 = vst.msk [vmem:[%s2 + $0x60] sm:$0xff] %vm182, %v168
    %196 = vst.msk [vmem:[%s2 + $0x68] sm:$0xff] %vm182, %v171
    %197 = vst.msk [vmem:[%s2 + $0x70] sm:$0xff] %vm182, %v176
    %198 = vst.msk [vmem:[%s2 + $0x78] sm:$0xff] %vm182, %v179
    %v199 = vsel %vm182, %v120, 0.0
    %v200 = vsel %vm182, %v123, 0.0
    %v201 = vadd.f32 %v199, %v200
    %v202 = vsel %vm182, %v128, 0.0
    %v203 = vadd.f32 %v201, %v202
    %v204 = vsel %vm182, %v131, 0.0
    %v205 = vadd.f32 %v203, %v204
    %v206 = vsel %vm182, %v136, 0.0
    %v207 = vadd.f32 %v205, %v206
    %v208 = vsel %vm182, %v139, 0.0
    %v209 = vadd.f32 %v207, %v208
    %v210 = vsel %vm182, %v144, 0.0
    %v211 = vadd.f32 %v209, %v210
    %v212 = vsel %vm182, %v147, 0.0
    %v213 = vadd.f32 %v211, %v212
    %v214 = vsel %vm182, %v152, 0.0
    %v215 = vadd.f32 %v213, %v214
    %v216 = vsel %vm182, %v155, 0.0
    %v217 = vadd.f32 %v215, %v216
    %v218 = vsel %vm182, %v160, 0.0
    %v219 = vadd.f32 %v217, %v218
    %v220 = vsel %vm182, %v163, 0.0
    %v221 = vadd.f32 %v219, %v220
    %v222 = vsel %vm182, %v168, 0.0
    %v223 = vadd.f32 %v221, %v222
    %v224 = vsel %vm182, %v171, 0.0
    %v225 = vadd.f32 %v223, %v224
    %v226 = vsel %vm182, %v176, 0.0
    %v227 = vadd.f32 %v225, %v226
    %v228 = vsel %vm182, %v179, 0.0
    %v229 = vadd.f32 %v227, %v228
    %v230 = vrot.slane %v229, 4
    %v231 = vadd.f32 %v229, %v230
    %v232 = vrot.slane %v231, 2
    %v233 = vadd.f32 %v231, %v232
    %v234 = vrot.slane %v233, 1
    %v235 = vadd.f32 %v233, %v234
    %vm236 = vcmask 57344
    %237 = vst.msk [vmem:[%s3] sm:$0x1] %vm236, %v235
    %v238 = vmul.f32 %v120, %v120
    %v239 = vmul.f32 %v123, %v123
    %v240 = vmul.f32 %v128, %v128
    %v241 = vmul.f32 %v131, %v131
    %v242 = vmul.f32 %v136, %v136
    %v243 = vmul.f32 %v139, %v139
    %v244 = vmul.f32 %v144, %v144
    %v245 = vmul.f32 %v147, %v147
    %v246 = vmul.f32 %v152, %v152
    %v247 = vmul.f32 %v155, %v155
    %v248 = vmul.f32 %v160, %v160
    %v249 = vmul.f32 %v163, %v163
    %v250 = vmul.f32 %v168, %v168
    %v251 = vmul.f32 %v171, %v171
    %v252 = vmul.f32 %v176, %v176
    %v253 = vmul.f32 %v179, %v179
    %v254 = vsel %vm182, %v238, 0.0
    %v255 = vsel %vm182, %v239, 0.0
    %v256 = vadd.f32 %v254, %v255
    %v257 = vsel %vm182, %v240, 0.0
    %v258 = vadd.f32 %v256, %v257
    %v259 = vsel %vm182, %v241, 0.0
    %v260 = vadd.f32 %v258, %v259
    %v261 = vsel %vm182, %v242, 0.0
    %v262 = vadd.f32 %v260, %v261
    %v263 = vsel %vm182, %v243, 0.0
    %v264 = vadd.f32 %v262, %v263
    %v265 = vsel %vm182, %v244, 0.0
    %v266 = vadd.f32 %v264, %v265
    %v267 = vsel %vm182, %v245, 0.0
    %v268 = vadd.f32 %v266, %v267
    %v269 = vsel %vm182, %v246, 0.0
    %v270 = vadd.f32 %v268, %v269
    %v271 = vsel %vm182, %v247, 0.0
    %v272 = vadd.f32 %v270, %v271
    %v273 = vsel %vm182, %v248, 0.0
    %v274 = vadd.f32 %v272, %v273
    %v275 = vsel %vm182, %v249, 0.0
    %v276 = vadd.f32 %v274, %v275
    %v277 = vsel %vm182, %v250, 0.0
    %v278 = vadd.f32 %v276, %v277
    %v279 = vsel %vm182, %v251, 0.0
    %v280 = vadd.f32 %v278, %v279
    %v281 = vsel %vm182, %v252, 0.0
    %v282 = vadd.f32 %v280, %v281
    %v283 = vsel %vm182, %v253, 0.0
    %v284 = vadd.f32 %v282, %v283
    %v285 = vrot.slane %v284, 4
    %v286 = vadd.f32 %v284, %v285
    %v287 = vrot.slane %v286, 2
    %v288 = vadd.f32 %v286, %v287
    %v289 = vrot.slane %v288, 1
    %v290 = vadd.f32 %v288, %v289
    %291 = vst.msk [vmem:[%s3 + $0x1] sm:$0x1] %vm236, %v290
    // Predicated region
    $region14: #{bottleneck_forward.5} parent=1 // pred_check
      _
    $region15: #{bottleneck_forward.5} parent=1 // pred_check_branch
      %293 = sbr.rel (0) target = $region17
    $region16: #{bottleneck_forward.5} parent=1 // pred_region
      _
    $region17: #{bottleneck_forward.5} parent=1 // pred_fallthru
      _
    // Predicated region
    $region18: #{bottleneck_forward.5} parent=1 // pred_check
      _
    $region19: #{bottleneck_forward.5} parent=1 // pred_check_branch
      %295 = sbr.rel (0) target = $region21
    $region20: #{bottleneck_forward.5} parent=1 // pred_region
      _
    $region21: #{bottleneck_forward.5} parent=1 // pred_fallthru
      _
    // Predicated region
    $region22: #{bottleneck_forward.5} parent=1 // pred_check
      _
    $region23: #{bottleneck_forward.5} parent=1 // pred_check_branch
      %297 = sbr.rel (0) target = $region25
    $region24: #{bottleneck_forward.5} parent=1 // pred_region
      _
    $region25: #{bottleneck_forward.5} parent=1 // pred_fallthru
      _
    // Predicated region
    $region26: #{bottleneck_forward.5} parent=1 // pred_check
      _
    $region27: #{bottleneck_forward.5} parent=1 // pred_check_branch
      %299 = sbr.rel (0) target = $region29
    $region28: #{bottleneck_forward.5} parent=1 // pred_region
      _
    $region29: #{bottleneck_forward.5} parent=1 // pred_fallthru
      _
    %300 = vsyncpa [#allocation3], 1

// kernel: bottleneck_forward.8
$region0: #{bottleneck_forward.8}
  #allocation0 [shape = 'u32[]', space=smem, size = 0x4, offset = 0x4, fixed_abs, tag = 'smem constant byte address 0x4 - core index']
  #allocation1 [shape = 'u32[144,128]{1,0:T(1,128)}', space=vmem, size = 0x12000, scoped, tag = 'internal scratch']
  %s0 = inlined_call_operand.vmem [shape: f32[128,16], index: 0, kind: input, shape index: {}]
  %s1 = inlined_call_operand.vmem [shape: bf16[16,32], index: 1, kind: input, shape index: {}]
  %s2 = inlined_call_operand.vmem [shape: f32[128,32], index: 2, kind: output, shape index: {0}]
  %s3 = inlined_call_operand.vmem [shape: f32[1,2,32], index: 3, kind: output, shape index: {1}]
  %4 = xla_tuple %s2, %s3
  %s5 = sld [smem:[#allocation0]]
  $region26: #{bottleneck_forward.8} parent=0
    _
  %s7 = ssub.s32 1, %s5
  %s8 = scalar_select 0, %s7, %s5
  // Predicated region
  $region2: #{bottleneck_forward.8} parent=0 // pred_check
    _
  $region3: #{bottleneck_forward.8} parent=0 // pred_check_branch
    %10 = sbr.rel (0) target = $region5
  $region4: #{bottleneck_forward.8} parent=0 // pred_region
    _
  $region5: #{bottleneck_forward.8} parent=0 // pred_fallthru
    _
  // Predicated region
  $region6: #{bottleneck_forward.8} parent=0 // pred_check
    _
  $region7: #{bottleneck_forward.8} parent=0 // pred_check_branch
    %12 = sbr.rel (0) target = $region9
  $region8: #{bottleneck_forward.8} parent=0 // pred_region
    _
  $region9: #{bottleneck_forward.8} parent=0 // pred_fallthru
    _
  %v14 = vld [vmem:[%s0] sm:$0xff]
  %v15 = vld [vmem:[%s0 + $0x8] sm:$0xff]
  %v16 = vld [vmem:[%s0 + $0x10] sm:$0xff]
  %v17 = vld [vmem:[%s0 + $0x18] sm:$0xff]
  %v18 = vld [vmem:[%s0 + $0x20] sm:$0xff]
  %v19 = vld [vmem:[%s0 + $0x28] sm:$0xff]
  %v20 = vld [vmem:[%s0 + $0x30] sm:$0xff]
  %v21 = vld [vmem:[%s0 + $0x38] sm:$0xff]
  %v22 = vld [vmem:[%s0 + $0x40] sm:$0xff]
  %v23 = vld [vmem:[%s0 + $0x48] sm:$0xff]
  %v24 = vld [vmem:[%s0 + $0x50] sm:$0xff]
  %v25 = vld [vmem:[%s0 + $0x58] sm:$0xff]
  %v26 = vld [vmem:[%s0 + $0x60] sm:$0xff]
  %v27 = vld [vmem:[%s0 + $0x68] sm:$0xff]
  %v28 = vld [vmem:[%s0 + $0x70] sm:$0xff]
  %v29 = vld [vmem:[%s0 + $0x78] sm:$0xff]
  %v30 = vpack.c.bf16 %v15, %v14
  %v31 = vpack.c.bf16 %v17, %v16
  %v32 = vpack.c.bf16 %v19, %v18
  %v33 = vpack.c.bf16 %v21, %v20
  %v34 = vpack.c.bf16 %v23, %v22
  %v35 = vpack.c.bf16 %v25, %v24
  %v36 = vpack.c.bf16 %v27, %v26
  %v37 = vpack.c.bf16 %v29, %v28
  %v38 = vld [vmem:[%s1] sm:$0xf]
  %v39 = vld [vmem:[%s1 + $0x4] sm:$0xf]
  %v42 = vunpack.c.l.b16 %v38
  %v43 = vunpack.c.l.b16 %v39
  %v44 = vpack.c.b16 %v43, %v42
  %vm46 = vcmask 130048
  %v48 = vsel %vm46, %v30, 0
  %v51 = vsel %vm46, %v31, 0
  %v54 = vsel %vm46, %v32, 0
  %v57 = vsel %vm46, %v33, 0
  %v60 = vsel %vm46, %v34, 0
  %v63 = vsel %vm46, %v35, 0
  %v66 = vsel %vm46, %v36, 0
  %v69 = vsel %vm46, %v37, 0
  %71 = vmatprep.subr.bf16.mxu0 0
  %72 = vmatpush1.bf16.msra.mxu0 %v44
  %73 = vmatprep.subr.bf16.mxu0 0
  %74 = vmatpush1.bf16.msra.mxu0 0
  %75 = vmatprep.subr.bf16.mxu0 0
  %76 = vmatpush1.bf16.msra.mxu0 0
  %77 = vmatprep.subr.bf16.mxu0 0
  %78 = vmatpush1.bf16.msra.mxu0 0
  %79 = vmatprep.subr.bf16.mxu0 0
  %80 = vmatpush1.bf16.msra.mxu0 0
  %81 = vmatprep.subr.bf16.mxu0 0
  %82 = vmatpush1.bf16.msra.mxu0 0
  %83 = vmatprep.subr.bf16.mxu0 0
  %84 = vmatpush1.bf16.msra.mxu0 0
  %85 = vmatprep.subr.bf16.mxu0 0
  %86 = vmatpush1.bf16.msra.mxu0 0
  %87 = vmatprep.subr.bf16.mxu0 0
  %88 = vmatpush1.bf16.msra.mxu0 0
  %89 = vmatprep.subr.bf16.mxu0 0
  %90 = vmatpush1.bf16.msra.mxu0 0
  %91 = vmatprep.subr.bf16.mxu0 0
  %92 = vmatpush1.bf16.msra.mxu0 0
  %93 = vmatprep.subr.bf16.mxu0 0
  %94 = vmatpush1.bf16.msra.mxu0 0
  %95 = vmatprep.subr.bf16.mxu0 0
  %96 = vmatpush1.bf16.msra.mxu0 0
  %97 = vmatprep.subr.bf16.mxu0 0
  %98 = vmatpush1.bf16.msra.mxu0 0
  %99 = vmatprep.subr.bf16.mxu0 0
  %100 = vmatpush1.bf16.msra.mxu0 0
  %101 = vmatprep.subr.bf16.mxu0 0
  %102 = vmatpush1.bf16.msra.mxu0 0
  %103 = vmatprep.mubr.bf16.mxu0 0
  %104 = vmatmul.mubr.bf16.gmra.mrb[0].mxu0 %v48
  %v105 = vpop.f32.mrb[0].mxu0
  %v106 = vadd.f32 0.0, %v105
  %v107 = vpop.f32.mrb[0].mxu0
  %v108 = vpop.f32.mrb[0].mxu0
  %v109 = vadd.f32 0.0, %v108
  %v110 = vpop.f32.mrb[0].mxu0
  %111 = vmatprep.mubr.bf16.mxu0 0
  %112 = vmatmul.mubr.bf16.gmra.mrb[0].mxu0 %v51
  %v113 = vpop.f32.mrb[0].mxu0
  %v114 = vadd.f32 0.0, %v113
  %v115 = vpop.f32.mrb[0].mxu0
  %v116 = vpop.f32.mrb[0].mxu0
  %v117 = vadd.f32 0.0, %v116
  %v118 = vpop.f32.mrb[0].mxu0
  %119 = vmatprep.mubr.bf16.mxu0 0
  %120 = vmatmul.mubr.bf16.gmra.mrb[0].mxu0 %v54
  %v121 = vpop.f32.mrb[0].mxu0
  %v122 = vadd.f32 0.0, %v121
  %v123 = vpop.f32.mrb[0].mxu0
  %v124 = vpop.f32.mrb[0].mxu0
  %v125 = vadd.f32 0.0, %v124
  %v126 = vpop.f32.mrb[0].mxu0
  %127 = vmatprep.mubr.bf16.mxu0 0
  %128 = vmatmul.mubr.bf16.gmra.mrb[0].mxu0 %v57
  %v129 = vpop.f32.mrb[0].mxu0
  %v130 = vadd.f32 0.0, %v129
  %v131 = vpop.f32.mrb[0].mxu0
  %v132 = vpop.f32.mrb[0].mxu0
  %v133 = vadd.f32 0.0, %v132
  %v134 = vpop.f32.mrb[0].mxu0
  %135 = vmatprep.mubr.bf16.mxu0 0
  %136 = vmatmul.mubr.bf16.gmra.mrb[0].mxu0 %v60
  %v137 = vpop.f32.mrb[0].mxu0
  %v138 = vadd.f32 0.0, %v137
  %v139 = vpop.f32.mrb[0].mxu0
  %v140 = vpop.f32.mrb[0].mxu0
  %v141 = vadd.f32 0.0, %v140
  %v142 = vpop.f32.mrb[0].mxu0
  %143 = vmatprep.mubr.bf16.mxu0 0
  %144 = vmatmul.mubr.bf16.gmra.mrb[0].mxu0 %v63
  %v145 = vpop.f32.mrb[0].mxu0
  %v146 = vadd.f32 0.0, %v145
  %v147 = vpop.f32.mrb[0].mxu0
  %v148 = vpop.f32.mrb[0].mxu0
  %v149 = vadd.f32 0.0, %v148
  %v150 = vpop.f32.mrb[0].mxu0
  %151 = vmatprep.mubr.bf16.mxu0 0
  %152 = vmatmul.mubr.bf16.gmra.mrb[0].mxu0 %v66
  %v153 = vpop.f32.mrb[0].mxu0
  %v154 = vadd.f32 0.0, %v153
  %v155 = vpop.f32.mrb[0].mxu0
  %v156 = vpop.f32.mrb[0].mxu0
  %v157 = vadd.f32 0.0, %v156
  %v158 = vpop.f32.mrb[0].mxu0
  %159 = vmatprep.mubr.bf16.mxu0 0
  %160 = vmatmul.mubr.bf16.gmra.mrb[0].mxu0 %v69
  %v161 = vpop.f32.mrb[0].mxu0
  %v162 = vadd.f32 0.0, %v161
  %v163 = vpop.f32.mrb[0].mxu0
  %v164 = vpop.f32.mrb[0].mxu0
  %v165 = vadd.f32 0.0, %v164
  %v166 = vpop.f32.mrb[0].mxu0
  %167 = vdwg.mxu0
  %vm168 = vcmask 261120
  %169 = vst.msk [vmem:[%s2] sm:$0xff] %vm168, %v106
  %170 = vst.msk [vmem:[%s2 + $0x8] sm:$0xff] %vm168, %v109
  %171 = vst.msk [vmem:[%s2 + $0x10] sm:$0xff] %vm168, %v114
  %172 = vst.msk [vmem:[%s2 + $0x18] sm:$0xff] %vm168, %v117
  %173 = vst.msk [vmem:[%s2 + $0x20] sm:$0xff] %vm168, %v122
  %174 = vst.msk [vmem:[%s2 + $0x28] sm:$0xff] %vm168, %v125
  %175 = vst.msk [vmem:[%s2 + $0x30] sm:$0xff] %vm168, %v130
  %176 = vst.msk [vmem:[%s2 + $0x38] sm:$0xff] %vm168, %v133
  %177 = vst.msk [vmem:[%s2 + $0x40] sm:$0xff] %vm168, %v138
  %178 = vst.msk [vmem:[%s2 + $0x48] sm:$0xff] %vm168, %v141
  %179 = vst.msk [vmem:[%s2 + $0x50] sm:$0xff] %vm168, %v146
  %180 = vst.msk [vmem:[%s2 + $0x58] sm:$0xff] %vm168, %v149
  %181 = vst.msk [vmem:[%s2 + $0x60] sm:$0xff] %vm168, %v154
  %182 = vst.msk [vmem:[%s2 + $0x68] sm:$0xff] %vm168, %v157
  %183 = vst.msk [vmem:[%s2 + $0x70] sm:$0xff] %vm168, %v162
  %184 = vst.msk [vmem:[%s2 + $0x78] sm:$0xff] %vm168, %v165
  %v185 = vsel %vm168, %v106, 0.0
  %v186 = vsel %vm168, %v109, 0.0
  %v187 = vadd.f32 %v185, %v186
  %v188 = vsel %vm168, %v114, 0.0
  %v189 = vadd.f32 %v187, %v188
  %v190 = vsel %vm168, %v117, 0.0
  %v191 = vadd.f32 %v189, %v190
  %v192 = vsel %vm168, %v122, 0.0
  %v193 = vadd.f32 %v191, %v192
  %v194 = vsel %vm168, %v125, 0.0
  %v195 = vadd.f32 %v193, %v194
  %v196 = vsel %vm168, %v130, 0.0
  %v197 = vadd.f32 %v195, %v196
  %v198 = vsel %vm168, %v133, 0.0
  %v199 = vadd.f32 %v197, %v198
  %v200 = vsel %vm168, %v138, 0.0
  %v201 = vadd.f32 %v199, %v200
  %v202 = vsel %vm168, %v141, 0.0
  %v203 = vadd.f32 %v201, %v202
  %v204 = vsel %vm168, %v146, 0.0
  %v205 = vadd.f32 %v203, %v204
  %v206 = vsel %vm168, %v149, 0.0
  %v207 = vadd.f32 %v205, %v206
  %v208 = vsel %vm168, %v154, 0.0
  %v209 = vadd.f32 %v207, %v208
  %v210 = vsel %vm168, %v157, 0.0
  %v211 = vadd.f32 %v209, %v210
  %v212 = vsel %vm168, %v162, 0.0
  %v213 = vadd.f32 %v211, %v212
  %v214 = vsel %vm168, %v165, 0.0
  %v215 = vadd.f32 %v213, %v214
  %v216 = vrot.slane %v215, 4
  %v217 = vadd.f32 %v215, %v216
  %v218 = vrot.slane %v217, 2
  %v219 = vadd.f32 %v217, %v218
  %v220 = vrot.slane %v219, 1
  %v221 = vadd.f32 %v219, %v220
  %vm222 = vcmask 253952
  %223 = vst.msk [vmem:[%s3] sm:$0x1] %vm222, %v221
  %v224 = vmul.f32 %v106, %v106
  %v225 = vmul.f32 %v109, %v109
  %v226 = vmul.f32 %v114, %v114
  %v227 = vmul.f32 %v117, %v117
  %v228 = vmul.f32 %v122, %v122
  %v229 = vmul.f32 %v125, %v125
  %v230 = vmul.f32 %v130, %v130
  %v231 = vmul.f32 %v133, %v133
  %v232 = vmul.f32 %v138, %v138
  %v233 = vmul.f32 %v141, %v141
  %v234 = vmul.f32 %v146, %v146
  %v235 = vmul.f32 %v149, %v149
  %v236 = vmul.f32 %v154, %v154
  %v237 = vmul.f32 %v157, %v157
  %v238 = vmul.f32 %v162, %v162
  %v239 = vmul.f32 %v165, %v165
  %v240 = vsel %vm168, %v224, 0.0
  %v241 = vsel %vm168, %v225, 0.0
  %v242 = vadd.f32 %v240, %v241
  %v243 = vsel %vm168, %v226, 0.0
  %v244 = vadd.f32 %v242, %v243
  %v245 = vsel %vm168, %v227, 0.0
  %v246 = vadd.f32 %v244, %v245
  %v247 = vsel %vm168, %v228, 0.0
  %v248 = vadd.f32 %v246, %v247
  %v249 = vsel %vm168, %v229, 0.0
  %v250 = vadd.f32 %v248, %v249
  %v251 = vsel %vm168, %v230, 0.0
  %v252 = vadd.f32 %v250, %v251
  %v253 = vsel %vm168, %v231, 0.0
  %v254 = vadd.f32 %v252, %v253
  %v255 = vsel %vm168, %v232, 0.0
  %v256 = vadd.f32 %v254, %v255
  %v257 = vsel %vm168, %v233, 0.0
  %v258 = vadd.f32 %v256, %v257
  %v259 = vsel %vm168, %v234, 0.0
  %v260 = vadd.f32 %v258, %v259
  %v261 = vsel %vm168, %v235, 0.0
  %v262 = vadd.f32 %v260, %v261
  %v263 = vsel %vm168, %v236, 0.0
  %v264 = vadd.f32 %v262, %v263
  %v265 = vsel %vm168, %v237, 0.0
  %v266 = vadd.f32 %v264, %v265
  %v267 = vsel %vm168, %v238, 0.0
  %v268 = vadd.f32 %v266, %v267
  %v269 = vsel %vm168, %v239, 0.0
  %v270 = vadd.f32 %v268, %v269
  %v271 = vrot.slane %v270, 4
  %v272 = vadd.f32 %v270, %v271
  %v273 = vrot.slane %v272, 2
  %v274 = vadd.f32 %v272, %v273
  %v275 = vrot.slane %v274, 1
  %v276 = vadd.f32 %v274, %v275
  %277 = vst.msk [vmem:[%s3 + $0x1] sm:$0x1] %vm222, %v276
  // Predicated region
  $region10: #{bottleneck_forward.8} parent=0 // pred_check
    _
  $region11: #{bottleneck_forward.8} parent=0 // pred_check_branch
    %279 = sbr.rel (0) target = $region13
  $region12: #{bottleneck_forward.8} parent=0 // pred_region
    _
  $region13: #{bottleneck_forward.8} parent=0 // pred_fallthru
    _
  // Predicated region
  $region14: #{bottleneck_forward.8} parent=0 // pred_check
    _
  $region15: #{bottleneck_forward.8} parent=0 // pred_check_branch
    %281 = sbr.rel (0) target = $region17
  $region16: #{bottleneck_forward.8} parent=0 // pred_region
    _
  $region17: #{bottleneck_forward.8} parent=0 // pred_fallthru
    _
  // Predicated region
  $region18: #{bottleneck_forward.8} parent=0 // pred_check
    _
  $region19: #{bottleneck_forward.8} parent=0 // pred_check_branch
    %283 = sbr.rel (0) target = $region21
  $region20: #{bottleneck_forward.8} parent=0 // pred_region
    _
  $region21: #{bottleneck_forward.8} parent=0 // pred_fallthru
    _
  // Predicated region
  $region22: #{bottleneck_forward.8} parent=0 // pred_check
    _
  $region23: #{bottleneck_forward.8} parent=0 // pred_check_branch
    %285 = sbr.rel (0) target = $region25
  $region24: #{bottleneck_forward.8} parent=0 // pred_region
    _
  $region25: #{bottleneck_forward.8} parent=0 // pred_fallthru
    _

// kernel: bottleneck_forward.6
$region0: #{bottleneck_forward.6}
  #allocation0 [shape = 'u32[]', space=smem, size = 0x4, offset = 0x4, fixed_abs, tag = 'smem constant byte address 0x4 - core index']
  #allocation1 [shape = 'u32[144,128]{1,0:T(1,128)}', space=vmem, size = 0x12000, scoped, tag = 'internal scratch']
  #allocation2 [shape = 'f32[10,10,8]{2,1,0:T(8,128)}', space=vmem, size = 0x14000, scoped, tag = 'scratch operand']
  #allocation3 [shape = 'f32[64,8]{1,0:T(8,128)}', space=vmem, size = 0x8000, scoped, tag = 'scratch operand']
  %s0 = inlined_call_operand.vmem [shape: f32[2,8,8,8], index: 0, kind: input, shape index: {}]
  %s1 = inlined_call_operand.vmem [shape: f32[1,8], index: 1, kind: input, shape index: {}]
  %s2 = inlined_call_operand.vmem [shape: f32[1,8], index: 2, kind: input, shape index: {}]
  %s3 = inlined_call_operand.vmem [shape: bf16[9,8,8], index: 3, kind: input, shape index: {}]
  %s4 = inlined_call_operand.vmem [shape: f32[2,8,8,8], index: 4, kind: output, shape index: {0}]
  %s5 = inlined_call_operand.vmem [shape: f32[2,2,8], index: 5, kind: output, shape index: {1}]
  %6 = xla_tuple %s4, %s5
  %s7 = sld [smem:[#allocation0]]
  $region57: #{bottleneck_forward.6} parent=0
    _
  %s9 = ssub.s32 1, %s7
  %s10 = scalar_select 0, %s9, %s7
  loop: start=0, step=1, limit=4
  $region2: #{bottleneck_forward.6} parent=0 // loop_pre_header
    _
  $region3: #{bottleneck_forward.6} parent=0 // loop_header
    %s12 = sphi 0, %s16
    %p13 = scmp.ge.s32.totalorder %s12, 4
    %s22 = sphi 0, %s24
    %s25 = sphi 0, %s22
    %s26 = sphi 0, %s25
    %s42 = sphi 0, %s26
    %s46 = sphi 0, %s46
    %s48 = sphi 0, %s46
    %s49 = sphi 0, %s48
    %s63 = sphi 0, %s49
    %s67 = sphi 0, %s67
    %s69 = sphi 0, %s67
    %s70 = sphi 0, %s69
    %s84 = sphi 0, %s70
    %s88 = sphi 0, %s88
    %s90 = sphi 0, %s88
    %s91 = sphi 0, %s90
    %s105 = sphi 0, %s91
    %s111 = sphi 0, %s113
    %s114 = sphi 0, %s111
    %s115 = sphi 0, %s114
    %s131 = sphi 0, %s115
    %s137 = sphi 0, %s139
    %s140 = sphi 0, %s137
    %s141 = sphi 0, %s140
    %s157 = sphi 0, %s141
  $region4: #{bottleneck_forward.6} parent=0 // loop_header_branch
    %15 = sbr.rel (%p13) target = $region8
  $region5: #{bottleneck_forward.6} parent=0 // loop_body
    %s17 = ssub.s32 %s12, 1
    %s18 = ssub.s32 %s12, 2
    %s19 = sadd.s32 %s12, 1
    %s20 = ssub.s32 %s12, %s19
    %p21 = scmp.eq.s32.totalorder %s20, 0
    %s23 = sadd.s32 %s22, 1
    %s24 = scalar_select %p21, %s22, %s23
    %p27 = pneg %p21
    %p28 = scmp.eq.s32.totalorder %s12, 1
    %p29 = por %p27, %p28
    %p30 = scmp.ne.s32.totalorder %s22, %s25
    %p31 = scmp.eq.s32.totalorder %s12, 0
    %p32 = por %p30, %p31
    %p33 = scmp.ne.s32.totalorder %s22, %s25
    %p34 = scmp.eq.s32.totalorder %s17, 1
    %p35 = por %p33, %p34
    %p36 = scmp.ne.s32.totalorder %s25, %s26
    %p37 = scmp.eq.s32.totalorder %s17, 0
    %p38 = por %p36, %p37
    %p39 = scmp.ne.s32.totalorder %s25, %s26
    %p40 = scmp.eq.s32.totalorder %s18, 1
    %p41 = por %p39, %p40
    %p43 = scmp.ne.s32.totalorder %s26, %s42
    %p44 = scmp.eq.s32.totalorder %s18, 0
    %p45 = por %p43, %p44
    %s47 = sadd.s32 %s46, 1
    %p50 = scmp.eq.s32.totalorder %s12, 1
    %p51 = scmp.ne.s32.totalorder %s46, %s48
    %p52 = scmp.eq.s32.totalorder %s12, 0
    %p53 = por %p51, %p52
    %p54 = scmp.ne.s32.totalorder %s46, %s48
    %p55 = scmp.eq.s32.totalorder %s17, 1
    %p56 = por %p54, %p55
    %p57 = scmp.ne.s32.totalorder %s48, %s49
    %p58 = scmp.eq.s32.totalorder %s17, 0
    %p59 = por %p57, %p58
    %p60 = scmp.ne.s32.totalorder %s48, %s49
    %p61 = scmp.eq.s32.totalorder %s18, 1
    %p62 = por %p60, %p61
    %p64 = scmp.ne.s32.totalorder %s49, %s63
    %p65 = scmp.eq.s32.totalorder %s18, 0
    %p66 = por %p64, %p65
    %s68 = sadd.s32 %s67, 1
    %p71 = scmp.eq.s32.totalorder %s12, 1
    %p72 = scmp.ne.s32.totalorder %s67, %s69
    %p73 = scmp.eq.s32.totalorder %s12, 0
    %p74 = por %p72, %p73
    %p75 = scmp.ne.s32.totalorder %s67, %s69
    %p76 = scmp.eq.s32.totalorder %s17, 1
    %p77 = por %p75, %p76
    %p78 = scmp.ne.s32.totalorder %s69, %s70
    %p79 = scmp.eq.s32.totalorder %s17, 0
    %p80 = por %p78, %p79
    %p81 = scmp.ne.s32.totalorder %s69, %s70
    %p82 = scmp.eq.s32.totalorder %s18, 1
    %p83 = por %p81, %p82
    %p85 = scmp.ne.s32.totalorder %s70, %s84
    %p86 = scmp.eq.s32.totalorder %s18, 0
    %p87 = por %p85, %p86
    %s89 = sadd.s32 %s88, 1
    %p92 = scmp.eq.s32.totalorder %s12, 1
    %p93 = scmp.ne.s32.totalorder %s88, %s90
    %p94 = scmp.eq.s32.totalorder %s12, 0
    %p95 = por %p93, %p94
    %p96 = scmp.ne.s32.totalorder %s88, %s90
    %p97 = scmp.eq.s32.totalorder %s17, 1
    %p98 = por %p96, %p97
    %p99 = scmp.ne.s32.totalorder %s90, %s91
    %p100 = scmp.eq.s32.totalorder %s17, 0
    %p101 = por %p99, %p100
    %p102 = scmp.ne.s32.totalorder %s90, %s91
    %p103 = scmp.eq.s32.totalorder %s18, 1
    %p104 = por %p102, %p103
    %p106 = scmp.ne.s32.totalorder %s91, %s105
    %p107 = scmp.eq.s32.totalorder %s18, 0
    %p108 = por %p106, %p107
    %s109 = ssub.s32 %s12, %s19
    %p110 = scmp.eq.s32.totalorder %s109, 0
    %s112 = sadd.s32 %s111, 1
    %s113 = scalar_select %p110, %s111, %s112
    %p116 = pneg %p110
    %p117 = scmp.eq.s32.totalorder %s12, 1
    %p118 = por %p116, %p117
    %p119 = scmp.ne.s32.totalorder %s111, %s114
    %p120 = scmp.eq.s32.totalorder %s12, 0
    %p121 = por %p119, %p120
    %p122 = scmp.ne.s32.totalorder %s111, %s114
    %p123 = scmp.eq.s32.totalorder %s17, 1
    %p124 = por %p122, %p123
    %p125 = scmp.ne.s32.totalorder %s114, %s115
    %p126 = scmp.eq.s32.totalorder %s17, 0
    %p127 = por %p125, %p126
    %p128 = scmp.ne.s32.totalorder %s114, %s115
    %p129 = scmp.eq.s32.totalorder %s18, 1
    %p130 = por %p128, %p129
    %p132 = scmp.ne.s32.totalorder %s115, %s131
    %p133 = scmp.eq.s32.totalorder %s18, 0
    %p134 = por %p132, %p133
    %s135 = ssub.s32 %s12, %s19
    %p136 = scmp.eq.s32.totalorder %s135, 0
    %s138 = sadd.s32 %s137, 1
    %s139 = scalar_select %p136, %s137, %s138
    %p142 = pneg %p136
    %p143 = scmp.eq.s32.totalorder %s12, 1
    %p144 = por %p142, %p143
    %p145 = scmp.ne.s32.totalorder %s137, %s140
    %p146 = scmp.eq.s32.totalorder %s12, 0
    %p147 = por %p145, %p146
    %p148 = scmp.ne.s32.totalorder %s137, %s140
    %p149 = scmp.eq.s32.totalorder %s17, 1
    %p150 = por %p148, %p149
    %p151 = scmp.ne.s32.totalorder %s140, %s141
    %p152 = scmp.eq.s32.totalorder %s17, 0
    %p153 = por %p151, %p152
    %p154 = scmp.ne.s32.totalorder %s140, %s141
    %p155 = scmp.eq.s32.totalorder %s18, 1
    %p156 = por %p154, %p155
    %p158 = scmp.ne.s32.totalorder %s141, %s157
    %p159 = scmp.eq.s32.totalorder %s18, 0
    %p160 = por %p158, %p159
    %p161 = scmp.le.s32.totalorder 1, %s12
    %p162 = scmp.lt.s32.totalorder %s12, 3
    %p163 = pnand %p161, %p162
    %p164 = pneg %p163
    // Predicated region
    $region9: #{bottleneck_forward.6} parent=5 // pred_check
      _
    $region10: #{bottleneck_forward.6} parent=5 // pred_check_branch
      %166 = sbr.rel (%p163) target = $region12
    $region11: #{bottleneck_forward.6} parent=5 // pred_region
      %s167 = ssub.s32 %s12, 1
      // Predicated region
      $region13: #{bottleneck_forward.6} parent=11 // pred_check
        %p168 = pneg %p59
      $region14: #{bottleneck_forward.6} parent=11 // pred_check_branch
        %170 = sbr.rel (%p168) target = $region16
      $region15: #{bottleneck_forward.6} parent=11 // pred_region
        _
      $region16: #{bottleneck_forward.6} parent=11 // pred_fallthru
        _
      // Predicated region
      $region17: #{bottleneck_forward.6} parent=11 // pred_check
        %p171 = pneg %p80
      $region18: #{bottleneck_forward.6} parent=11 // pred_check_branch
        %173 = sbr.rel (%p171) target = $region20
      $region19: #{bottleneck_forward.6} parent=11 // pred_region
        _
      $region20: #{bottleneck_forward.6} parent=11 // pred_fallthru
        _
      // Predicated region
      $region21: #{bottleneck_forward.6} parent=11 // pred_check
        %p174 = pneg %p101
      $region22: #{bottleneck_forward.6} parent=11 // pred_check_branch
        %176 = sbr.rel (%p174) target = $region24
      $region23: #{bottleneck_forward.6} parent=11 // pred_region
        _
      $region24: #{bottleneck_forward.6} parent=11 // pred_fallthru
        _
    $region12: #{bottleneck_forward.6} parent=5 // pred_fallthru
      _
    %p177 = scmp.lt.s32.totalorder %s12, 2
    // Predicated region
    $region25: #{bottleneck_forward.6} parent=5 // pred_check
      %p178 = pneg %p177
    $region26: #{bottleneck_forward.6} parent=5 // pred_check_branch
      %180 = sbr.rel (%p178) target = $region28
    $region27: #{bottleneck_forward.6} parent=5 // pred_region
      // Predicated region
      $region29: #{bottleneck_forward.6} parent=27 // pred_check
        %p181 = pneg %p32
      $region30: #{bottleneck_forward.6} parent=27 // pred_check_branch
        %183 = sbr.rel (%p181) target = $region32
      $region31: #{bottleneck_forward.6} parent=27 // pred_region
        %p184 = scmp.lt.s32.totalorder %s12, 1
        %s185 = scalar_select %p184, %s12, 1
        %s186 = smul.addr %s185, 8
        %s187 = smul.addr %s186, 8
        %s188 = scalar_lea.vmem %s0, %s187
      $region32: #{bottleneck_forward.6} parent=27 // pred_fallthru
        _
    $region28: #{bottleneck_forward.6} parent=5 // pred_fallthru
      _
    %p189 = scmp.le.s32.totalorder 1, %s12
    %p190 = scmp.lt.s32.totalorder %s12, 3
    %p191 = pnand %p189, %p190
    %p192 = pneg %p191
    // Predicated region
    $region33: #{bottleneck_forward.6} parent=5 // pred_check
      _
    $region34: #{bottleneck_forward.6} parent=5 // pred_check_branch
      %194 = sbr.rel (%p191) target = $region36
    $region35: #{bottleneck_forward.6} parent=5 // pred_region
      %s195 = ssub.s32 %s12, 1
      %p196 = scmp.lt.s32.totalorder %s17, 1
      %s197 = scalar_select %p196, %s17, 1
      %s198 = smul.addr %s197, 8
      %s199 = smul.addr %s198, 8
      %s200 = scalar_lea.vmem %s0, %s199
      %p201 = pneg %p38
      %p202 = pneg %p35
      %p203 = pneg %p59
      %p204 = pneg %p56
      %p205 = pneg %p80
      %p206 = pneg %p77
      %p207 = pneg %p101
      %p208 = pneg %p98
      %p209 = pneg %p127
      %p210 = pneg %p124
      %p211 = scmp.lt.s32.totalorder %s17, 1
      %s212 = scalar_select %p211, %s17, 1
      %s213 = smul.addr %s212, 8
      %s214 = smul.addr %s213, 8
      %s215 = scalar_lea.vmem %s4, %s214
      %p216 = pneg %p153
      %p217 = pneg %p150
      %p218 = scmp.lt.s32.totalorder %s17, 1
      %s219 = scalar_select %p218, %s17, 1
      %s220 = smul.addr %s219, 2
      %s221 = scalar_lea.vmem %s5, %s220
      %p222 = scmp.lt.s32.totalorder %s17, 1
      %s223 = scalar_select %p222, %s17, 1
      %s224 = smul.addr %s223, 8
      %s225 = smul.addr %s224, 8
      %s226 = scalar_lea.vmem %s0, %s225
      %p227 = scmp.lt.s32.totalorder %s17, 1
      %s228 = scalar_select %p227, %s17, 1
      %s229 = smul.addr %s228, 8
      %s230 = smul.addr %s229, 8
      %s231 = scalar_lea.vmem %s4, %s230
      %p232 = scmp.lt.s32.totalorder %s17, 1
      %s233 = scalar_select %p232, %s17, 1
      %s234 = smul.addr %s233, 2
      %s235 = scalar_lea.vmem %s5, %s234
      %v237 = vld [vmem:[%s226] sm:$0xff]
      %v238 = vld [vmem:[%s226 + $0x8] sm:$0xff]
      %v239 = vld [vmem:[%s226 + $0x10] sm:$0xff]
      %v240 = vld [vmem:[%s226 + $0x18] sm:$0xff]
      %v241 = vld [vmem:[%s226 + $0x20] sm:$0xff]
      %v242 = vld [vmem:[%s226 + $0x28] sm:$0xff]
      %v243 = vld [vmem:[%s226 + $0x30] sm:$0xff]
      %v244 = vld [vmem:[%s226 + $0x38] sm:$0xff]
      %v245 = vld [vmem:[%s1] sm:$0x1]
      %v247 = vlaneseq
      %v248 = vshrl.u32 %v247, 7
      %v249 = vsub.s32 0, %v248
      %v250 = vrot.slane %v245, %v249
      %v252 = vmul.f32 %v237, %v250
      %v253 = vmul.f32 %v238, %v250
      %v254 = vmul.f32 %v239, %v250
      %v255 = vmul.f32 %v240, %v250
      %v256 = vmul.f32 %v241, %v250
      %v257 = vmul.f32 %v242, %v250
      %v258 = vmul.f32 %v243, %v250
      %v259 = vmul.f32 %v244, %v250
      %v260 = vld [vmem:[%s2] sm:$0x1]
      %v262 = vlaneseq
      %v263 = vshrl.u32 %v262, 7
      %v264 = vsub.s32 0, %v263
      %v265 = vrot.slane %v260, %v264
      %v267 = vadd.f32 %v252, %v265
      %v268 = vadd.f32 %v253, %v265
      %v269 = vadd.f32 %v254, %v265
      %v270 = vadd.f32 %v255, %v265
      %v271 = vadd.f32 %v256, %v265
      %v272 = vadd.f32 %v257, %v265
      %v273 = vadd.f32 %v258, %v265
      %v274 = vadd.f32 %v259, %v265
      %v275 = vmax.f32 %v267, 0.0
      %v276 = vmax.f32 %v268, 0.0
      %v277 = vmax.f32 %v269, 0.0
      %v278 = vmax.f32 %v270, 0.0
      %v279 = vmax.f32 %v271, 0.0
      %v280 = vmax.f32 %v272, 0.0
      %v281 = vmax.f32 %v273, 0.0
      %v282 = vmax.f32 %v274, 0.0
      %vm283 = vcmask 64512
      %284 = vst.msk [vmem:[#allocation2] sm:$0xff] %vm283, 0.0
      %vm285 = vcmask 58368
      %286 = vst.msk [vmem:[#allocation2 + $0x8] sm:$0x3] %vm285, 0.0
      %s287 = scalar_lea.vmem [#allocation2], 144
      %288 = vst.msk [vmem:[%s287] sm:$0xff] %vm283, 0.0
      %289 = vst.msk [vmem:[%s287 + $0x8] sm:$0x3] %vm285, 0.0
      %s290 = scalar_lea.vmem [#allocation2], 16
      %vm291 = vcmask 57344
      %292 = vst.msk [vmem:[%s290] sm:$0x1] %vm291, 0.0
      %293 = vst.msk [vmem:[%s290 + $0x10] sm:$0x1] %vm291, 0.0
      %294 = vst.msk [vmem:[%s290 + $0x20] sm:$0x1] %vm291, 0.0
      %295 = vst.msk [vmem:[%s290 + $0x30] sm:$0x1] %vm291, 0.0
      %296 = vst.msk [vmem:[%s290 + $0x40] sm:$0x1] %vm291, 0.0
      %297 = vst.msk [vmem:[%s290 + $0x50] sm:$0x1] %vm291, 0.0
      %298 = vst.msk [vmem:[%s290 + $0x60] sm:$0x1] %vm291, 0.0
      %299 = vst.msk [vmem:[%s290 + $0x70] sm:$0x1] %vm291, 0.0
      %300 = vst.msk [vmem:[%s290 + $0x9] sm:$0x1] %vm291, 0.0
      %301 = vst.msk [vmem:[%s290 + $0x19] sm:$0x1] %vm291, 0.0
      %302 = vst.msk [vmem:[%s290 + $0x29] sm:$0x1] %vm291, 0.0
      %303 = vst.msk [vmem:[%s290 + $0x39] sm:$0x1] %vm291, 0.0
      %304 = vst.msk [vmem:[%s290 + $0x49] sm:$0x1] %vm291, 0.0
      %305 = vst.msk [vmem:[%s290 + $0x59] sm:$0x1] %vm291, 0.0
      %306 = vst.msk [vmem:[%s290 + $0x69] sm:$0x1] %vm291, 0.0
      %307 = vst.msk [vmem:[%s290 + $0x79] sm:$0x1] %vm291, 0.0
      %308 = vst.msk [vmem:[%s290 + $0x1] sm:$0xff] %vm283, %v275
      %309 = vst.msk [vmem:[%s290 + $0x11] sm:$0xff] %vm283, %v276
      %310 = vst.msk [vmem:[%s290 + $0x21] sm:$0xff] %vm283, %v277
      %311 = vst.msk [vmem:[%s290 + $0x31] sm:$0xff] %vm283, %v278
      %312 = vst.msk [vmem:[%s290 + $0x41] sm:$0xff] %vm283, %v279
      %313 = vst.msk [vmem:[%s290 + $0x51] sm:$0xff] %vm283, %v280
      %314 = vst.msk [vmem:[%s290 + $0x61] sm:$0xff] %vm283, %v281
      %315 = vst.msk [vmem:[%s290 + $0x71] sm:$0xff] %vm283, %v282
      %v316 = vld [vmem:[#allocation2] sm:$0xff]
      %v317 = vld [vmem:[#allocation2 + $0x10] sm:$0xff]
      %v318 = vld [vmem:[#allocation2 + $0x20] sm:$0xff]
      %v319 = vld [vmem:[#allocation2 + $0x30] sm:$0xff]
      %v320 = vld [vmem:[#allocation2 + $0x40] sm:$0xff]
      %v321 = vld [vmem:[#allocation2 + $0x50] sm:$0xff]
      %v322 = vld [vmem:[#allocation2 + $0x60] sm:$0xff]
      %v323 = vld [vmem:[#allocation2 + $0x70] sm:$0xff]
      %v324 = vpack.c.bf16 %v317, %v316
      %v325 = vpack.c.bf16 %v319, %v318
      %v326 = vpack.c.bf16 %v321, %v320
      %v327 = vpack.c.bf16 %v323, %v322
      %v328 = vld [vmem:[%s3] sm:$0xf]
      %v330 = vsel %vm283, %v324, 0
      %v333 = vsel %vm283, %v325, 0
      %v336 = vsel %vm283, %v326, 0
      %v339 = vsel %vm283, %v327, 0
      %vm341 = vcmask 1043456
      %v343 = vsel %vm341, %v328, 0
      %345 = vmatprep.subr.bf16.mxu0 0
      %346 = vmatpush1.bf16.msra.mxu0 %v343
      %347 = vmatprep.subr.bf16.mxu0 0
      %348 = vmatpush1.bf16.msra.mxu0 0
      %349 = vmatprep.subr.bf16.mxu0 0
      %350 = vmatpush1.bf16.msra.mxu0 0
      %351 = vmatprep.subr.bf16.mxu0 0
      %352 = vmatpush1.bf16.msra.mxu0 0
      %353 = vmatprep.subr.bf16.mxu0 0
      %354 = vmatpush1.bf16.msra.mxu0 0
      %355 = vmatprep.subr.bf16.mxu0 0
      %356 = vmatpush1.bf16.msra.mxu0 0
      %357 = vmatprep.subr.bf16.mxu0 0
      %358 = vmatpush1.bf16.msra.mxu0 0
      %359 = vmatprep.subr.bf16.mxu0 0
      %360 = vmatpush1.bf16.msra.mxu0 0
      %361 = vmatprep.subr.bf16.mxu0 0
      %362 = vmatpush1.bf16.msra.mxu0 0
      %363 = vmatprep.subr.bf16.mxu0 0
      %364 = vmatpush1.bf16.msra.mxu0 0
      %365 = vmatprep.subr.bf16.mxu0 0
      %366 = vmatpush1.bf16.msra.mxu0 0
      %367 = vmatprep.subr.bf16.mxu0 0
      %368 = vmatpush1.bf16.msra.mxu0 0
      %369 = vmatprep.subr.bf16.mxu0 0
      %370 = vmatpush1.bf16.msra.mxu0 0
      %371 = vmatprep.subr.bf16.mxu0 0
      %372 = vmatpush1.bf16.msra.mxu0 0
      %373 = vmatprep.subr.bf16.mxu0 0
      %374 = vmatpush1.bf16.msra.mxu0 0
      %375 = vmatprep.subr.bf16.mxu0 0
      %376 = vmatpush1.bf16.msra.mxu0 0
      %377 = vmatprep.mubr.bf16.mxu0 0
      %378 = vmatmul.mubr.bf16.gmra.mrb[0].mxu0 %v330
      %v379 = vpop.f32.mrb[0].mxu0
      %v380 = vadd.f32 0.0, %v379
      %v381 = vpop.f32.mrb[0].mxu0
      %v382 = vpop.f32.mrb[0].mxu0
      %v383 = vadd.f32 0.0, %v382
      %v384 = vpop.f32.mrb[0].mxu0
      %385 = vmatprep.mubr.bf16.mxu0 0
      %386 = vmatmul.mubr.bf16.gmra.mrb[0].mxu0 %v333
      %v387 = vpop.f32.mrb[0].mxu0
      %v388 = vadd.f32 0.0, %v387
      %v389 = vpop.f32.mrb[0].mxu0
      %v390 = vpop.f32.mrb[0].mxu0
      %v391 = vadd.f32 0.0, %v390
      %v392 = vpop.f32.mrb[0].mxu0
      %393 = vmatprep.mubr.bf16.mxu0 0
      %394 = vmatmul.mubr.bf16.gmra.mrb[0].mxu0 %v336
      %v395 = vpop.f32.mrb[0].mxu0
      %v396 = vadd.f32 0.0, %v395
      %v397 = vpop.f32.mrb[0].mxu0
      %v398 = vpop.f32.mrb[0].mxu0
      %v399 = vadd.f32 0.0, %v398
      %v400 = vpop.f32.mrb[0].mxu0
      %401 = vmatprep.mubr.bf16.mxu0 0
      %402 = vmatmul.mubr.bf16.gmra.mrb[0].mxu0 %v339
      %v403 = vpop.f32.mrb[0].mxu0
      %v404 = vadd.f32 0.0, %v403
      %v405 = vpop.f32.mrb[0].mxu0
      %v406 = vpop.f32.mrb[0].mxu0
      %v407 = vadd.f32 0.0, %v406
      %v408 = vpop.f32.mrb[0].mxu0
      %409 = vdwg.mxu0
      %410 = vst.msk [vmem:[#allocation3] sm:$0xff] %vm283, %v380
      %411 = vst.msk [vmem:[#allocation3 + $0x8] sm:$0xff] %vm283, %v383
      %412 = vst.msk [vmem:[#allocation3 + $0x10] sm:$0xff] %vm283, %v388
      %413 = vst.msk [vmem:[#allocation3 + $0x18] sm:$0xff] %vm283, %v391
      %414 = vst.msk [vmem:[#allocation3 + $0x20] sm:$0xff] %vm283, %v396
      %415 = vst.msk [vmem:[#allocation3 + $0x28] sm:$0xff] %vm283, %v399
      %416 = vst.msk [vmem:[#allocation3 + $0x30] sm:$0xff] %vm283, %v404
      %417 = vst.msk [vmem:[#allocation3 + $0x38] sm:$0xff] %vm283, %v407
      %v418 = vld [vmem:[#allocation2 + $0x1] sm:$0xff]
      %v419 = vld [vmem:[#allocation2 + $0x11] sm:$0xff]
      %v420 = vld [vmem:[#allocation2 + $0x21] sm:$0xff]
      %v421 = vld [vmem:[#allocation2 + $0x31] sm:$0xff]
      %v422 = vld [vmem:[#allocation2 + $0x41] sm:$0xff]
      %v423 = vld [vmem:[#allocation2 + $0x51] sm:$0xff]
      %v424 = vld [vmem:[#allocation2 + $0x61] sm:$0xff]
      %v425 = vld [vmem:[#allocation2 + $0x71] sm:$0xff]
      %v426 = vpack.c.bf16 %v419, %v418
      %v427 = vpack.c.bf16 %v421, %v420
      %v428 = vpack.c.bf16 %v423, %v422
      %v429 = vpack.c.bf16 %v425, %v424
      %s430 = scalar_lea.vmem %s3, 4
      %v431 = vld [vmem:[%s430] sm:$0xf]
      %v433 = vsel %vm283, %v426, 0
      %v436 = vsel %vm283, %v427, 0
      %v439 = vsel %vm283, %v428, 0
      %v442 = vsel %vm283, %v429, 0
      %v445 = vsel %vm341, %v431, 0
      %447 = vmatprep.subr.bf16.mxu0 0
      %448 = vmatpush1.bf16.msra.mxu0 %v445
      %449 = vmatprep.subr.bf16.mxu0 0
      %450 = vmatpush1.bf16.msra.mxu0 0
      %451 = vmatprep.subr.bf16.mxu0 0
      %452 = vmatpush1.bf16.msra.mxu0 0
      %453 = vmatprep.subr.bf16.mxu0 0
      %454 = vmatpush1.bf16.msra.mxu0 0
      %455 = vmatprep.subr.bf16.mxu0 0
      %456 = vmatpush1.bf16.msra.mxu0 0
      %457 = vmatprep.subr.bf16.mxu0 0
      %458 = vmatpush1.bf16.msra.mxu0 0
      %459 = vmatprep.subr.bf16.mxu0 0
      %460 = vmatpush1.bf16.msra.mxu0 0
      %461 = vmatprep.subr.bf16.mxu0 0
      %462 = vmatpush1.bf16.msra.mxu0 0
      %463 = vmatprep.subr.bf16.mxu0 0
      %464 = vmatpush1.bf16.msra.mxu0 0
      %465 = vmatprep.subr.bf16.mxu0 0
      %466 = vmatpush1.bf16.msra.mxu0 0
      %467 = vmatprep.subr.bf16.mxu0 0
      %468 = vmatpush1.bf16.msra.mxu0 0
      %469 = vmatprep.subr.bf16.mxu0 0
      %470 = vmatpush1.bf16.msra.mxu0 0
      %471 = vmatprep.subr.bf16.mxu0 0
      %472 = vmatpush1.bf16.msra.mxu0 0
      %473 = vmatprep.subr.bf16.mxu0 0
      %474 = vmatpush1.bf16.msra.mxu0 0
      %475 = vmatprep.subr.bf16.mxu0 0
      %476 = vmatpush1.bf16.msra.mxu0 0
      %477 = vmatprep.subr.bf16.mxu0 0
      %478 = vmatpush1.bf16.msra.mxu0 0
      %479 = vmatprep.mubr.bf16.mxu0 0
      %480 = vmatmul.mubr.bf16.gmra.mrb[0].mxu0 %v433
      %v481 = vpop.f32.mrb[0].mxu0
      %v482 = vadd.f32 0.0, %v481
      %v483 = vpop.f32.mrb[0].mxu0
      %v484 = vpop.f32.mrb[0].mxu0
      %v485 = vadd.f32 0.0, %v484
      %v486 = vpop.f32.mrb[0].mxu0
      %487 = vmatprep.mubr.bf16.mxu0 0
      %488 = vmatmul.mubr.bf16.gmra.mrb[0].mxu0 %v436
      %v489 = vpop.f32.mrb[0].mxu0
      %v490 = vadd.f32 0.0, %v489
      %v491 = vpop.f32.mrb[0].mxu0
      %v492 = vpop.f32.mrb[0].mxu0
      %v493 = vadd.f32 0.0, %v492
      %v494 = vpop.f32.mrb[0].mxu0
      %495 = vmatprep.mubr.bf16.mxu0 0
      %496 = vmatmul.mubr.bf16.gmra.mrb[0].mxu0 %v439
      %v497 = vpop.f32.mrb[0].mxu0
      %v498 = vadd.f32 0.0, %v497
      %v499 = vpop.f32.mrb[0].mxu0
      %v500 = vpop.f32.mrb[0].mxu0
      %v501 = vadd.f32 0.0, %v500
      %v502 = vpop.f32.mrb[0].mxu0
      %503 = vmatprep.mubr.bf16.mxu0 0
      %504 = vmatmul.mubr.bf16.gmra.mrb[0].mxu0 %v442
      %v505 = vpop.f32.mrb[0].mxu0
      %v506 = vadd.f32 0.0, %v505
      %v507 = vpop.f32.mrb[0].mxu0
      %v508 = vpop.f32.mrb[0].mxu0
      %v509 = vadd.f32 0.0, %v508
      %v510 = vpop.f32.mrb[0].mxu0
      %511 = vdwg.mxu0
      %v512 = vld [vmem:[#allocation3] sm:$0xff]
      %v513 = vld [vmem:[#allocation3 + $0x8] sm:$0xff]
      %v514 = vld [vmem:[#allocation3 + $0x10] sm:$0xff]
      %v515 = vld [vmem:[#allocation3 + $0x18] sm:$0xff]
      %v516 = vld [vmem:[#allocation3 + $0x20] sm:$0xff]
      %v517 = vld [vmem:[#allocation3 + $0x28] sm:$0xff]
      %v518 = vld [vmem:[#allocation3 + $0x30] sm:$0xff]
      %v519 = vld [vmem:[#allocation3 + $0x38] sm:$0xff]
      %v520 = vadd.f32 %v512, %v482
      %v521 = vadd.f32 %v513, %v485
      %v522 = vadd.f32 %v514, %v490
      %v523 = vadd.f32 %v515, %v493
      %v524 = vadd.f32 %v516, %v498
      %v525 = vadd.f32 %v517, %v501
      %v526 = vadd.f32 %v518, %v506
      %v527 = vadd.f32 %v519, %v509
      %528 = vst.msk [vmem:[#allocation3] sm:$0xff] %vm283, %v520
      %529 = vst.msk [vmem:[#allocation3 + $0x8] sm:$0xff] %vm283, %v521
      %530 = vst.msk [vmem:[#allocation3 + $0x10] sm:$0xff] %vm283, %v522
      %531 = vst.msk [vmem:[#allocation3 + $0x18] sm:$0xff] %vm283, %v523
      %532 = vst.msk [vmem:[#allocation3 + $0x20] sm:$0xff] %vm283, %v524
      %533 = vst.msk [vmem:[#allocation3 + $0x28] sm:$0xff] %vm283, %v525
      %534 = vst.msk [vmem:[#allocation3 + $0x30] sm:$0xff] %vm283, %v526
      %535 = vst.msk [vmem:[#allocation3 + $0x38] sm:$0xff] %vm283, %v527
      %v536 = vld [vmem:[#allocation2 + $0x2] sm:$0xff]
      %v537 = vld [vmem:[#allocation2 + $0x12] sm:$0xff]
      %v538 = vld [vmem:[#allocation2 + $0x22] sm:$0xff]
      %v539 = vld [vmem:[#allocation2 + $0x32] sm:$0xff]
      %v540 = vld [vmem:[#allocation2 + $0x42] sm:$0xff]
      %v541 = vld [vmem:[#allocation2 + $0x52] sm:$0xff]
      %v542 = vld [vmem:[#allocation2 + $0x62] sm:$0xff]
      %v543 = vld [vmem:[#allocation2 + $0x72] sm:$0xff]
      %v544 = vpack.c.bf16 %v537, %v536
      %v545 = vpack.c.bf16 %v539, %v538
      %v546 = vpack.c.bf16 %v541, %v540
      %v547 = vpack.c.bf16 %v543, %v542
      %s548 = scalar_lea.vmem %s3, 8
      %v549 = vld [vmem:[%s548] sm:$0xf]
      %v551 = vsel %vm283, %v544, 0
      %v554 = vsel %vm283, %v545, 0
      %v557 = vsel %vm283, %v546, 0
      %v560 = vsel %vm283, %v547, 0
      %v563 = vsel %vm341, %v549, 0
      %565 = vmatprep.subr.bf16.mxu0 0
      %566 = vmatpush1.bf16.msra.mxu0 %v563
      %567 = vmatprep.subr.bf16.mxu0 0
      %568 = vmatpush1.bf16.msra.mxu0 0
      %569 = vmatprep.subr.bf16.mxu0 0
      %570 = vmatpush1.bf16.msra.mxu0 0
      %571 = vmatprep.subr.bf16.mxu0 0
      %572 = vmatpush1.bf16.msra.mxu0 0
      %573 = vmatprep.subr.bf16.mxu0 0
      %574 = vmatpush1.bf16.msra.mxu0 0
      %575 = vmatprep.subr.bf16.mxu0 0
      %576 = vmatpush1.bf16.msra.mxu0 0
      %577 = vmatprep.subr.bf16.mxu0 0
      %578 = vmatpush1.bf16.msra.mxu0 0
      %579 = vmatprep.subr.bf16.mxu0 0
      %580 = vmatpush1.bf16.msra.mxu0 0
      %581 = vmatprep.subr.bf16.mxu0 0
      %582 = vmatpush1.bf16.msra.mxu0 0
      %583 = vmatprep.subr.bf16.mxu0 0
      %584 = vmatpush1.bf16.msra.mxu0 0
      %585 = vmatprep.subr.bf16.mxu0 0
      %586 = vmatpush1.bf16.msra.mxu0 0
      %587 = vmatprep.subr.bf16.mxu0 0
      %588 = vmatpush1.bf16.msra.mxu0 0
      %589 = vmatprep.subr.bf16.mxu0 0
      %590 = vmatpush1.bf16.msra.mxu0 0
      %591 = vmatprep.subr.bf16.mxu0 0
      %592 = vmatpush1.bf16.msra.mxu0 0
      %593 = vmatprep.subr.bf16.mxu0 0
      %594 = vmatpush1.bf16.msra.mxu0 0
      %595 = vmatprep.subr.bf16.mxu0 0
      %596 = vmatpush1.bf16.msra.mxu0 0
      %597 = vmatprep.mubr.bf16.mxu0 0
      %598 = vmatmul.mubr.bf16.gmra.mrb[0].mxu0 %v551
      %v599 = vpop.f32.mrb[0].mxu0
      %v600 = vadd.f32 0.0, %v599
      %v601 = vpop.f32.mrb[0].mxu0
      %v602 = vpop.f32.mrb[0].mxu0
      %v603 = vadd.f32 0.0, %v602
      %v604 = vpop.f32.mrb[0].mxu0
      %605 = vmatprep.mubr.bf16.mxu0 0
      %606 = vmatmul.mubr.bf16.gmra.mrb[0].mxu0 %v554
      %v607 = vpop.f32.mrb[0].mxu0
      %v608 = vadd.f32 0.0, %v607
      %v609 = vpop.f32.mrb[0].mxu0
      %v610 = vpop.f32.mrb[0].mxu0
      %v611 = vadd.f32 0.0, %v610
      %v612 = vpop.f32.mrb[0].mxu0
      %613 = vmatprep.mubr.bf16.mxu0 0
      %614 = vmatmul.mubr.bf16.gmra.mrb[0].mxu0 %v557
      %v615 = vpop.f32.mrb[0].mxu0
      %v616 = vadd.f32 0.0, %v615
      %v617 = vpop.f32.mrb[0].mxu0
      %v618 = vpop.f32.mrb[0].mxu0
      %v619 = vadd.f32 0.0, %v618
      %v620 = vpop.f32.mrb[0].mxu0
      %621 = vmatprep.mubr.bf16.mxu0 0
      %622 = vmatmul.mubr.bf16.gmra.mrb[0].mxu0 %v560
      %v623 = vpop.f32.mrb[0].mxu0
      %v624 = vadd.f32 0.0, %v623
      %v625 = vpop.f32.mrb[0].mxu0
      %v626 = vpop.f32.mrb[0].mxu0
      %v627 = vadd.f32 0.0, %v626
      %v628 = vpop.f32.mrb[0].mxu0
      %629 = vdwg.mxu0
      %v630 = vld [vmem:[#allocation3] sm:$0xff]
      %v631 = vld [vmem:[#allocation3 + $0x8] sm:$0xff]
      %v632 = vld [vmem:[#allocation3 + $0x10] sm:$0xff]
      %v633 = vld [vmem:[#allocation3 + $0x18] sm:$0xff]
      %v634 = vld [vmem:[#allocation3 + $0x20] sm:$0xff]
      %v635 = vld [vmem:[#allocation3 + $0x28] sm:$0xff]
      %v636 = vld [vmem:[#allocation3 + $0x30] sm:$0xff]
      %v637 = vld [vmem:[#allocation3 + $0x38] sm:$0xff]
      %v638 = vadd.f32 %v630, %v600
      %v639 = vadd.f32 %v631, %v603
      %v640 = vadd.f32 %v632, %v608
      %v641 = vadd.f32 %v633, %v611
      %v642 = vadd.f32 %v634, %v616
      %v643 = vadd.f32 %v635, %v619
      %v644 = vadd.f32 %v636, %v624
      %v645 = vadd.f32 %v637, %v627
      %646 = vst.msk [vmem:[#allocation3] sm:$0xff] %vm283, %v638
      %647 = vst.msk [vmem:[#allocation3 + $0x8] sm:$0xff] %vm283, %v639
      %648 = vst.msk [vmem:[#allocation3 + $0x10] sm:$0xff] %vm283, %v640
      %649 = vst.msk [vmem:[#allocation3 + $0x18] sm:$0xff] %vm283, %v641
      %650 = vst.msk [vmem:[#allocation3 + $0x20] sm:$0xff] %vm283, %v642
      %651 = vst.msk [vmem:[#allocation3 + $0x28] sm:$0xff] %vm283, %v643
      %652 = vst.msk [vmem:[#allocation3 + $0x30] sm:$0xff] %vm283, %v644
      %653 = vst.msk [vmem:[#allocation3 + $0x38] sm:$0xff] %vm283, %v645
      %v654 = vld [vmem:[%s290] sm:$0xff]
      %v655 = vld [vmem:[%s290 + $0x10] sm:$0xff]
      %v656 = vld [vmem:[%s290 + $0x20] sm:$0xff]
      %v657 = vld [vmem:[%s290 + $0x30] sm:$0xff]
      %v658 = vld [vmem:[%s290 + $0x40] sm:$0xff]
      %v659 = vld [vmem:[%s290 + $0x50] sm:$0xff]
      %v660 = vld [vmem:[%s290 + $0x60] sm:$0xff]
      %v661 = vld [vmem:[%s290 + $0x70] sm:$0xff]
      %v662 = vpack.c.bf16 %v655, %v654
      %v663 = vpack.c.bf16 %v657, %v656
      %v664 = vpack.c.bf16 %v659, %v658
      %v665 = vpack.c.bf16 %v661, %v660
      %s666 = scalar_lea.vmem %s3, 12
      %v667 = vld [vmem:[%s666] sm:$0xf]
      %v669 = vsel %vm283, %v662, 0
      %v672 = vsel %vm283, %v663, 0
      %v675 = vsel %vm283, %v664, 0
      %v678 = vsel %vm283, %v665, 0
      %v681 = vsel %vm341, %v667, 0
      %683 = vmatprep.subr.bf16.mxu0 0
      %684 = vmatpush1.bf16.msra.mxu0 %v681
      %685 = vmatprep.subr.bf16.mxu0 0
      %686 = vmatpush1.bf16.msra.mxu0 0
      %687 = vmatprep.subr.bf16.mxu0 0
      %688 = vmatpush1.bf16.msra.mxu0 0
      %689 = vmatprep.subr.bf16.mxu0 0
      %690 = vmatpush1.bf16.msra.mxu0 0
      %691 = vmatprep.subr.bf16.mxu0 0
      %692 = vmatpush1.bf16.msra.mxu0 0
      %693 = vmatprep.subr.bf16.mxu0 0
      %694 = vmatpush1.bf16.msra.mxu0 0
      %695 = vmatprep.subr.bf16.mxu0 0
      %696 = vmatpush1.bf16.msra.mxu0 0
      %697 = vmatprep.subr.bf16.mxu0 0
      %698 = vmatpush1.bf16.msra.mxu0 0
      %699 = vmatprep.subr.bf16.mxu0 0
      %700 = vmatpush1.bf16.msra.mxu0 0
      %701 = vmatprep.subr.bf16.mxu0 0
      %702 = vmatpush1.bf16.msra.mxu0 0
      %703 = vmatprep.subr.bf16.mxu0 0
      %704 = vmatpush1.bf16.msra.mxu0 0
      %705 = vmatprep.subr.bf16.mxu0 0
      %706 = vmatpush1.bf16.msra.mxu0 0
      %707 = vmatprep.subr.bf16.mxu0 0
      %708 = vmatpush1.bf16.msra.mxu0 0
      %709 = vmatprep.subr.bf16.mxu0 0
      %710 = vmatpush1.bf16.msra.mxu0 0
      %711 = vmatprep.subr.bf16.mxu0 0
      %712 = vmatpush1.bf16.msra.mxu0 0
      %713 = vmatprep.subr.bf16.mxu0 0
      %714 = vmatpush1.bf16.msra.mxu0 0
      %715 = vmatprep.mubr.bf16.mxu0 0
      %716 = vmatmul.mubr.bf16.gmra.mrb[0].mxu0 %v669
      %v717 = vpop.f32.mrb[0].mxu0
      %v718 = vadd.f32 0.0, %v717
      %v719 = vpop.f32.mrb[0].mxu0
      %v720 = vpop.f32.mrb[0].mxu0
      %v721 = vadd.f32 0.0, %v720
      %v722 = vpop.f32.mrb[0].mxu0
      %723 = vmatprep.mubr.bf16.mxu0 0
      %724 = vmatmul.mubr.bf16.gmra.mrb[0].mxu0 %v672
      %v725 = vpop.f32.mrb[0].mxu0
      %v726 = vadd.f32 0.0, %v725
      %v727 = vpop.f32.mrb[0].mxu0
      %v728 = vpop.f32.mrb[0].mxu0
      %v729 = vadd.f32 0.0, %v728
      %v730 = vpop.f32.mrb[0].mxu0
      %731 = vmatprep.mubr.bf16.mxu0 0
      %732 = vmatmul.mubr.bf16.gmra.mrb[0].mxu0 %v675
      %v733 = vpop.f32.mrb[0].mxu0
      %v734 = vadd.f32 0.0, %v733
      %v735 = vpop.f32.mrb[0].mxu0
      %v736 = vpop.f32.mrb[0].mxu0
      %v737 = vadd.f32 0.0, %v736
      %v738 = vpop.f32.mrb[0].mxu0
      %739 = vmatprep.mubr.bf16.mxu0 0
      %740 = vmatmul.mubr.bf16.gmra.mrb[0].mxu0 %v678
      %v741 = vpop.f32.mrb[0].mxu0
      %v742 = vadd.f32 0.0, %v741
      %v743 = vpop.f32.mrb[0].mxu0
      %v744 = vpop.f32.mrb[0].mxu0
      %v745 = vadd.f32 0.0, %v744
      %v746 = vpop.f32.mrb[0].mxu0
      %747 = vdwg.mxu0
      %v748 = vld [vmem:[#allocation3] sm:$0xff]
      %v749 = vld [vmem:[#allocation3 + $0x8] sm:$0xff]
      %v750 = vld [vmem:[#allocation3 + $0x10] sm:$0xff]
      %v751 = vld [vmem:[#allocation3 + $0x18] sm:$0xff]
      %v752 = vld [vmem:[#allocation3 + $0x20] sm:$0xff]
      %v753 = vld [vmem:[#allocation3 + $0x28] sm:$0xff]
      %v754 = vld [vmem:[#allocation3 + $0x30] sm:$0xff]
      %v755 = vld [vmem:[#allocation3 + $0x38] sm:$0xff]
      %v756 = vadd.f32 %v748, %v718
      %v757 = vadd.f32 %v749, %v721
      %v758 = vadd.f32 %v750, %v726
      %v759 = vadd.f32 %v751, %v729
      %v760 = vadd.f32 %v752, %v734
      %v761 = vadd.f32 %v753, %v737
      %v762 = vadd.f32 %v754, %v742
      %v763 = vadd.f32 %v755, %v745
      %764 = vst.msk [vmem:[#allocation3] sm:$0xff] %vm283, %v756
      %765 = vst.msk [vmem:[#allocation3 + $0x8] sm:$0xff] %vm283, %v757
      %766 = vst.msk [vmem:[#allocation3 + $0x10] sm:$0xff] %vm283, %v758
      %767 = vst.msk [vmem:[#allocation3 + $0x18] sm:$0xff] %vm283, %v759
      %768 = vst.msk [vmem:[#allocation3 + $0x20] sm:$0xff] %vm283, %v760
      %769 = vst.msk [vmem:[#allocation3 + $0x28] sm:$0xff] %vm283, %v761
      %770 = vst.msk [vmem:[#allocation3 + $0x30] sm:$0xff] %vm283, %v762
      %771 = vst.msk [vmem:[#allocation3 + $0x38] sm:$0xff] %vm283, %v763
      %v772 = vld [vmem:[%s290 + $0x1] sm:$0xff]
      %v773 = vld [vmem:[%s290 + $0x11] sm:$0xff]
      %v774 = vld [vmem:[%s290 + $0x21] sm:$0xff]
      %v775 = vld [vmem:[%s290 + $0x31] sm:$0xff]
      %v776 = vld [vmem:[%s290 + $0x41] sm:$0xff]
      %v777 = vld [vmem:[%s290 + $0x51] sm:$0xff]
      %v778 = vld [vmem:[%s290 + $0x61] sm:$0xff]
      %v779 = vld [vmem:[%s290 + $0x71] sm:$0xff]
      %v780 = vpack.c.bf16 %v773, %v772
      %v781 = vpack.c.bf16 %v775, %v774
      %v782 = vpack.c.bf16 %v777, %v776
      %v783 = vpack.c.bf16 %v779, %v778
      %s784 = scalar_lea.vmem %s3, 16
      %v785 = vld [vmem:[%s784] sm:$0xf]
      %v787 = vsel %vm283, %v780, 0
      %v790 = vsel %vm283, %v781, 0
      %v793 = vsel %vm283, %v782, 0
      %v796 = vsel %vm283, %v783, 0
      %v799 = vsel %vm341, %v785, 0
      %801 = vmatprep.subr.bf16.mxu0 0
      %802 = vmatpush1.bf16.msra.mxu0 %v799
      %803 = vmatprep.subr.bf16.mxu0 0
      %804 = vmatpush1.bf16.msra.mxu0 0
      %805 = vmatprep.subr.bf16.mxu0 0
      %806 = vmatpush1.bf16.msra.mxu0 0
      %807 = vmatprep.subr.bf16.mxu0 0
      %808 = vmatpush1.bf16.msra.mxu0 0
      %809 = vmatprep.subr.bf16.mxu0 0
      %810 = vmatpush1.bf16.msra.mxu0 0
      %811 = vmatprep.subr.bf16.mxu0 0
      %812 = vmatpush1.bf16.msra.mxu0 0
      %813 = vmatprep.subr.bf16.mxu0 0
      %814 = vmatpush1.bf16.msra.mxu0 0
      %815 = vmatprep.subr.bf16.mxu0 0
      %816 = vmatpush1.bf16.msra.mxu0 0
      %817 = vmatprep.subr.bf16.mxu0 0
      %818 = vmatpush1.bf16.msra.mxu0 0
      %819 = vmatprep.subr.bf16.mxu0 0
      %820 = vmatpush1.bf16.msra.mxu0 0
      %821 = vmatprep.subr.bf16.mxu0 0
      %822 = vmatpush1.bf16.msra.mxu0 0
      %823 = vmatprep.subr.bf16.mxu0 0
      %824 = vmatpush1.bf16.msra.mxu0 0
      %825 = vmatprep.subr.bf16.mxu0 0
      %826 = vmatpush1.bf16.msra.mxu0 0
      %827 = vmatprep.subr.bf16.mxu0 0
      %828 = vmatpush1.bf16.msra.mxu0 0
      %829 = vmatprep.subr.bf16.mxu0 0
      %830 = vmatpush1.bf16.msra.mxu0 0
      %831 = vmatprep.subr.bf16.mxu0 0
      %832 = vmatpush1.bf16.msra.mxu0 0
      %833 = vmatprep.mubr.bf16.mxu0 0
      %834 = vmatmul.mubr.bf16.gmra.mrb[0].mxu0 %v787
      %v835 = vpop.f32.mrb[0].mxu0
      %v836 = vadd.f32 0.0, %v835
      %v837 = vpop.f32.mrb[0].mxu0
      %v838 = vpop.f32.mrb[0].mxu0
      %v839 = vadd.f32 0.0, %v838
      %v840 = vpop.f32.mrb[0].mxu0
      %841 = vmatprep.mubr.bf16.mxu0 0
      %842 = vmatmul.mubr.bf16.gmra.mrb[0].mxu0 %v790
      %v843 = vpop.f32.mrb[0].mxu0
      %v844 = vadd.f32 0.0, %v843
      %v845 = vpop.f32.mrb[0].mxu0
      %v846 = vpop.f32.mrb[0].mxu0
      %v847 = vadd.f32 0.0, %v846
      %v848 = vpop.f32.mrb[0].mxu0
      %849 = vmatprep.mubr.bf16.mxu0 0
      %850 = vmatmul.mubr.bf16.gmra.mrb[0].mxu0 %v793
      %v851 = vpop.f32.mrb[0].mxu0
      %v852 = vadd.f32 0.0, %v851
      %v853 = vpop.f32.mrb[0].mxu0
      %v854 = vpop.f32.mrb[0].mxu0
      %v855 = vadd.f32 0.0, %v854
      %v856 = vpop.f32.mrb[0].mxu0
      %857 = vmatprep.mubr.bf16.mxu0 0
      %858 = vmatmul.mubr.bf16.gmra.mrb[0].mxu0 %v796
      %v859 = vpop.f32.mrb[0].mxu0
      %v860 = vadd.f32 0.0, %v859
      %v861 = vpop.f32.mrb[0].mxu0
      %v862 = vpop.f32.mrb[0].mxu0
      %v863 = vadd.f32 0.0, %v862
      %v864 = vpop.f32.mrb[0].mxu0
      %865 = vdwg.mxu0
      %v866 = vld [vmem:[#allocation3] sm:$0xff]
      %v867 = vld [vmem:[#allocation3 + $0x8] sm:$0xff]
      %v868 = vld [vmem:[#allocation3 + $0x10] sm:$0xff]
      %v869 = vld [vmem:[#allocation3 + $0x18] sm:$0xff]
      %v870 = vld [vmem:[#allocation3 + $0x20] sm:$0xff]
      %v871 = vld [vmem:[#allocation3 + $0x28] sm:$0xff]
      %v872 = vld [vmem:[#allocation3 + $0x30] sm:$0xff]
      %v873 = vld [vmem:[#allocation3 + $0x38] sm:$0xff]
      %v874 = vadd.f32 %v866, %v836
      %v875 = vadd.f32 %v867, %v839
      %v876 = vadd.f32 %v868, %v844
      %v877 = vadd.f32 %v869, %v847
      %v878 = vadd.f32 %v870, %v852
      %v879 = vadd.f32 %v871, %v855
      %v880 = vadd.f32 %v872, %v860
      %v881 = vadd.f32 %v873, %v863
      %882 = vst.msk [vmem:[#allocation3] sm:$0xff] %vm283, %v874
      %883 = vst.msk [vmem:[#allocation3 + $0x8] sm:$0xff] %vm283, %v875
      %884 = vst.msk [vmem:[#allocation3 + $0x10] sm:$0xff] %vm283, %v876
      %885 = vst.msk [vmem:[#allocation3 + $0x18] sm:$0xff] %vm283, %v877
      %886 = vst.msk [vmem:[#allocation3 + $0x20] sm:$0xff] %vm283, %v878
      %887 = vst.msk [vmem:[#allocation3 + $0x28] sm:$0xff] %vm283, %v879
      %888 = vst.msk [vmem:[#allocation3 + $0x30] sm:$0xff] %vm283, %v880
      %889 = vst.msk [vmem:[#allocation3 + $0x38] sm:$0xff] %vm283, %v881
      %v890 = vld [vmem:[%s290 + $0x2] sm:$0xff]
      %v891 = vld [vmem:[%s290 + $0x12] sm:$0xff]
      %v892 = vld [vmem:[%s290 + $0x22] sm:$0xff]
      %v893 = vld [vmem:[%s290 + $0x32] sm:$0xff]
      %v894 = vld [vmem:[%s290 + $0x42] sm:$0xff]
      %v895 = vld [vmem:[%s290 + $0x52] sm:$0xff]
      %v896 = vld [vmem:[%s290 + $0x62] sm:$0xff]
      %v897 = vld [vmem:[%s290 + $0x72] sm:$0xff]
      %v898 = vpack.c.bf16 %v891, %v890
      %v899 = vpack.c.bf16 %v893, %v892
      %v900 = vpack.c.bf16 %v895, %v894
      %v901 = vpack.c.bf16 %v897, %v896
      %s902 = scalar_lea.vmem %s3, 20
      %v903 = vld [vmem:[%s902] sm:$0xf]
      %v905 = vsel %vm283, %v898, 0
      %v908 = vsel %vm283, %v899, 0
      %v911 = vsel %vm283, %v900, 0
      %v914 = vsel %vm283, %v901, 0
      %v917 = vsel %vm341, %v903, 0
      %919 = vmatprep.subr.bf16.mxu0 0
      %920 = vmatpush1.bf16.msra.mxu0 %v917
      %921 = vmatprep.subr.bf16.mxu0 0
      %922 = vmatpush1.bf16.msra.mxu0 0
      %923 = vmatprep.subr.bf16.mxu0 0
      %924 = vmatpush1.bf16.msra.mxu0 0
      %925 = vmatprep.subr.bf16.mxu0 0
      %926 = vmatpush1.bf16.msra.mxu0 0
      %927 = vmatprep.subr.bf16.mxu0 0
      %928 = vmatpush1.bf16.msra.mxu0 0
      %929 = vmatprep.subr.bf16.mxu0 0
      %930 = vmatpush1.bf16.msra.mxu0 0
      %931 = vmatprep.subr.bf16.mxu0 0
      %932 = vmatpush1.bf16.msra.mxu0 0
      %933 = vmatprep.subr.bf16.mxu0 0
      %934 = vmatpush1.bf16.msra.mxu0 0
      %935 = vmatprep.subr.bf16.mxu0 0
      %936 = vmatpush1.bf16.msra.mxu0 0
      %937 = vmatprep.subr.bf16.mxu0 0
      %938 = vmatpush1.bf16.msra.mxu0 0
      %939 = vmatprep.subr.bf16.mxu0 0
      %940 = vmatpush1.bf16.msra.mxu0 0
      %941 = vmatprep.subr.bf16.mxu0 0
      %942 = vmatpush1.bf16.msra.mxu0 0
      %943 = vmatprep.subr.bf16.mxu0 0
      %944 = vmatpush1.bf16.msra.mxu0 0
      %945 = vmatprep.subr.bf16.mxu0 0
      %946 = vmatpush1.bf16.msra.mxu0 0
      %947 = vmatprep.subr.bf16.mxu0 0
      %948 = vmatpush1.bf16.msra.mxu0 0
      %949 = vmatprep.subr.bf16.mxu0 0
      %950 = vmatpush1.bf16.msra.mxu0 0
      %951 = vmatprep.mubr.bf16.mxu0 0
      %952 = vmatmul.mubr.bf16.gmra.mrb[0].mxu0 %v905
      %v953 = vpop.f32.mrb[0].mxu0
      %v954 = vadd.f32 0.0, %v953
      %v955 = vpop.f32.mrb[0].mxu0
      %v956 = vpop.f32.mrb[0].mxu0
      %v957 = vadd.f32 0.0, %v956
      %v958 = vpop.f32.mrb[0].mxu0
      %959 = vmatprep.mubr.bf16.mxu0 0
      %960 = vmatmul.mubr.bf16.gmra.mrb[0].mxu0 %v908
      %v961 = vpop.f32.mrb[0].mxu0
      %v962 = vadd.f32 0.0, %v961
      %v963 = vpop.f32.mrb[0].mxu0
      %v964 = vpop.f32.mrb[0].mxu0
      %v965 = vadd.f32 0.0, %v964
      %v966 = vpop.f32.mrb[0].mxu0
      %967 = vmatprep.mubr.bf16.mxu0 0
      %968 = vmatmul.mubr.bf16.gmra.mrb[0].mxu0 %v911
      %v969 = vpop.f32.mrb[0].mxu0
      %v970 = vadd.f32 0.0, %v969
      %v971 = vpop.f32.mrb[0].mxu0
      %v972 = vpop.f32.mrb[0].mxu0
      %v973 = vadd.f32 0.0, %v972
      %v974 = vpop.f32.mrb[0].mxu0
      %975 = vmatprep.mubr.bf16.mxu0 0
      %976 = vmatmul.mubr.bf16.gmra.mrb[0].mxu0 %v914
      %v977 = vpop.f32.mrb[0].mxu0
      %v978 = vadd.f32 0.0, %v977
      %v979 = vpop.f32.mrb[0].mxu0
      %v980 = vpop.f32.mrb[0].mxu0
      %v981 = vadd.f32 0.0, %v980
      %v982 = vpop.f32.mrb[0].mxu0
      %983 = vdwg.mxu0
      %v984 = vld [vmem:[#allocation3] sm:$0xff]
      %v985 = vld [vmem:[#allocation3 + $0x8] sm:$0xff]
      %v986 = vld [vmem:[#allocation3 + $0x10] sm:$0xff]
      %v987 = vld [vmem:[#allocation3 + $0x18] sm:$0xff]
      %v988 = vld [vmem:[#allocation3 + $0x20] sm:$0xff]
      %v989 = vld [vmem:[#allocation3 + $0x28] sm:$0xff]
      %v990 = vld [vmem:[#allocation3 + $0x30] sm:$0xff]
      %v991 = vld [vmem:[#allocation3 + $0x38] sm:$0xff]
      %v992 = vadd.f32 %v984, %v954
      %v993 = vadd.f32 %v985, %v957
      %v994 = vadd.f32 %v986, %v962
      %v995 = vadd.f32 %v987, %v965
      %v996 = vadd.f32 %v988, %v970
      %v997 = vadd.f32 %v989, %v973
      %v998 = vadd.f32 %v990, %v978
      %v999 = vadd.f32 %v991, %v981
      %1000 = vst.msk [vmem:[#allocation3] sm:$0xff] %vm283, %v992
      %1001 = vst.msk [vmem:[#allocation3 + $0x8] sm:$0xff] %vm283, %v993
      %1002 = vst.msk [vmem:[#allocation3 + $0x10] sm:$0xff] %vm283, %v994
      %1003 = vst.msk [vmem:[#allocation3 + $0x18] sm:$0xff] %vm283, %v995
      %1004 = vst.msk [vmem:[#allocation3 + $0x20] sm:$0xff] %vm283, %v996
      %1005 = vst.msk [vmem:[#allocation3 + $0x28] sm:$0xff] %vm283, %v997
      %1006 = vst.msk [vmem:[#allocation3 + $0x30] sm:$0xff] %vm283, %v998
      %1007 = vst.msk [vmem:[#allocation3 + $0x38] sm:$0xff] %vm283, %v999
      %s1008 = scalar_lea.vmem [#allocation2], 32
      %v1009 = vld [vmem:[%s1008] sm:$0xff]
      %v1010 = vld [vmem:[%s1008 + $0x10] sm:$0xff]
      %v1011 = vld [vmem:[%s1008 + $0x20] sm:$0xff]
      %v1012 = vld [vmem:[%s1008 + $0x30] sm:$0xff]
      %v1013 = vld [vmem:[%s1008 + $0x40] sm:$0xff]
      %v1014 = vld [vmem:[%s1008 + $0x50] sm:$0xff]
      %v1015 = vld [vmem:[%s1008 + $0x60] sm:$0xff]
      %v1016 = vld [vmem:[%s1008 + $0x70] sm:$0xff]
      %v1017 = vpack.c.bf16 %v1010, %v1009
      %v1018 = vpack.c.bf16 %v1012, %v1011
      %v1019 = vpack.c.bf16 %v1014, %v1013
      %v1020 = vpack.c.bf16 %v1016, %v1015
      %s1021 = scalar_lea.vmem %s3, 24
      %v1022 = vld [vmem:[%s1021] sm:$0xf]
      %v1024 = vsel %vm283, %v1017, 0
      %v1027 = vsel %vm283, %v1018, 0
      %v1030 = vsel %vm283, %v1019, 0
      %v1033 = vsel %vm283, %v1020, 0
      %v1036 = vsel %vm341, %v1022, 0
      %1038 = vmatprep.subr.bf16.mxu0 0
      %1039 = vmatpush1.bf16.msra.mxu0 %v1036
      %1040 = vmatprep.subr.bf16.mxu0 0
      %1041 = vmatpush1.bf16.msra.mxu0 0
      %1042 = vmatprep.subr.bf16.mxu0 0
      %1043 = vmatpush1.bf16.msra.mxu0 0
      %1044 = vmatprep.subr.bf16.mxu0 0
      %1045 = vmatpush1.bf16.msra.mxu0 0
      %1046 = vmatprep.subr.bf16.mxu0 0
      %1047 = vmatpush1.bf16.msra.mxu0 0
      %1048 = vmatprep.subr.bf16.mxu0 0
      %1049 = vmatpush1.bf16.msra.mxu0 0
      %1050 = vmatprep.subr.bf16.mxu0 0
      %1051 = vmatpush1.bf16.msra.mxu0 0
      %1052 = vmatprep.subr.bf16.mxu0 0
      %1053 = vmatpush1.bf16.msra.mxu0 0
      %1054 = vmatprep.subr.bf16.mxu0 0
      %1055 = vmatpush1.bf16.msra.mxu0 0
      %1056 = vmatprep.subr.bf16.mxu0 0
      %1057 = vmatpush1.bf16.msra.mxu0 0
      %1058 = vmatprep.subr.bf16.mxu0 0
      %1059 = vmatpush1.bf16.msra.mxu0 0
      %1060 = vmatprep.subr.bf16.mxu0 0
      %1061 = vmatpush1.bf16.msra.mxu0 0
      %1062 = vmatprep.subr.bf16.mxu0 0
      %1063 = vmatpush1.bf16.msra.mxu0 0
      %1064 = vmatprep.subr.bf16.mxu0 0
      %1065 = vmatpush1.bf16.msra.mxu0 0
      %1066 = vmatprep.subr.bf16.mxu0 0
      %1067 = vmatpush1.bf16.msra.mxu0 0
      %1068 = vmatprep.subr.bf16.mxu0 0
      %1069 = vmatpush1.bf16.msra.mxu0 0
      %1070 = vmatprep.mubr.bf16.mxu0 0
      %1071 = vmatmul.mubr.bf16.gmra.mrb[0].mxu0 %v1024
      %v1072 = vpop.f32.mrb[0].mxu0
      %v1073 = vadd.f32 0.0, %v1072
      %v1074 = vpop.f32.mrb[0].mxu0
      %v1075 = vpop.f32.mrb[0].mxu0
      %v1076 = vadd.f32 0.0, %v1075
      %v1077 = vpop.f32.mrb[0].mxu0
      %1078 = vmatprep.mubr.bf16.mxu0 0
      %1079 = vmatmul.mubr.bf16.gmra.mrb[0].mxu0 %v1027
      %v1080 = vpop.f32.mrb[0].mxu0
      %v1081 = vadd.f32 0.0, %v1080
      %v1082 = vpop.f32.mrb[0].mxu0
      %v1083 = vpop.f32.mrb[0].mxu0
      %v1084 = vadd.f32 0.0, %v1083
      %v1085 = vpop.f32.mrb[0].mxu0
      %1086 = vmatprep.mubr.bf16.mxu0 0
      %1087 = vmatmul.mubr.bf16.gmra.mrb[0].mxu0 %v1030
      %v1088 = vpop.f32.mrb[0].mxu0
      %v1089 = vadd.f32 0.0, %v1088
      %v1090 = vpop.f32.mrb[0].mxu0
      %v1091 = vpop.f32.mrb[0].mxu0
      %v1092 = vadd.f32 0.0, %v1091
      %v1093 = vpop.f32.mrb[0].mxu0
      %1094 = vmatprep.mubr.bf16.mxu0 0
      %1095 = vmatmul.mubr.bf16.gmra.mrb[0].mxu0 %v1033
      %v1096 = vpop.f32.mrb[0].mxu0
      %v1097 = vadd.f32 0.0, %v1096
      %v1098 = vpop.f32.mrb[0].mxu0
      %v1099 = vpop.f32.mrb[0].mxu0
      %v1100 = vadd.f32 0.0, %v1099
      %v1101 = vpop.f32.mrb[0].mxu0
      %1102 = vdwg.mxu0
      %v1103 = vld [vmem:[#allocation3] sm:$0xff]
      %v1104 = vld [vmem:[#allocation3 + $0x8] sm:$0xff]
      %v1105 = vld [vmem:[#allocation3 + $0x10] sm:$0xff]
      %v1106 = vld [vmem:[#allocation3 + $0x18] sm:$0xff]
      %v1107 = vld [vmem:[#allocation3 + $0x20] sm:$0xff]
      %v1108 = vld [vmem:[#allocation3 + $0x28] sm:$0xff]
      %v1109 = vld [vmem:[#allocation3 + $0x30] sm:$0xff]
      %v1110 = vld [vmem:[#allocation3 + $0x38] sm:$0xff]
      %v1111 = vadd.f32 %v1103, %v1073
      %v1112 = vadd.f32 %v1104, %v1076
      %v1113 = vadd.f32 %v1105, %v1081
      %v1114 = vadd.f32 %v1106, %v1084
      %v1115 = vadd.f32 %v1107, %v1089
      %v1116 = vadd.f32 %v1108, %v1092
      %v1117 = vadd.f32 %v1109, %v1097
      %v1118 = vadd.f32 %v1110, %v1100
      %1119 = vst.msk [vmem:[#allocation3] sm:$0xff] %vm283, %v1111
      %1120 = vst.msk [vmem:[#allocation3 + $0x8] sm:$0xff] %vm283, %v1112
      %1121 = vst.msk [vmem:[#allocation3 + $0x10] sm:$0xff] %vm283, %v1113
      %1122 = vst.msk [vmem:[#allocation3 + $0x18] sm:$0xff] %vm283, %v1114
      %1123 = vst.msk [vmem:[#allocation3 + $0x20] sm:$0xff] %vm283, %v1115
      %1124 = vst.msk [vmem:[#allocation3 + $0x28] sm:$0xff] %vm283, %v1116
      %1125 = vst.msk [vmem:[#allocation3 + $0x30] sm:$0xff] %vm283, %v1117
      %1126 = vst.msk [vmem:[#allocation3 + $0x38] sm:$0xff] %vm283, %v1118
      %v1127 = vld [vmem:[%s1008 + $0x1] sm:$0xff]
      %v1128 = vld [vmem:[%s1008 + $0x11] sm:$0xff]
      %v1129 = vld [vmem:[%s1008 + $0x21] sm:$0xff]
      %v1130 = vld [vmem:[%s1008 + $0x31] sm:$0xff]
      %v1131 = vld [vmem:[%s1008 + $0x41] sm:$0xff]
      %v1132 = vld [vmem:[%s1008 + $0x51] sm:$0xff]
      %v1133 = vld [vmem:[%s1008 + $0x61] sm:$0xff]
      %v1134 = vld [vmem:[%s1008 + $0x71] sm:$0xff]
      %v1135 = vpack.c.bf16 %v1128, %v1127
      %v1136 = vpack.c.bf16 %v1130, %v1129
      %v1137 = vpack.c.bf16 %v1132, %v1131
      %v1138 = vpack.c.bf16 %v1134, %v1133
      %s1139 = scalar_lea.vmem %s3, 28
      %v1140 = vld [vmem:[%s1139] sm:$0xf]
      %v1142 = vsel %vm283, %v1135, 0
      %v1145 = vsel %vm283, %v1136, 0
      %v1148 = vsel %vm283, %v1137, 0
      %v1151 = vsel %vm283, %v1138, 0
      %v1154 = vsel %vm341, %v1140, 0
      %1156 = vmatprep.subr.bf16.mxu0 0
      %1157 = vmatpush1.bf16.msra.mxu0 %v1154
      %1158 = vmatprep.subr.bf16.mxu0 0
      %1159 = vmatpush1.bf16.msra.mxu0 0
      %1160 = vmatprep.subr.bf16.mxu0 0
      %1161 = vmatpush1.bf16.msra.mxu0 0
      %1162 = vmatprep.subr.bf16.mxu0 0
      %1163 = vmatpush1.bf16.msra.mxu0 0
      %1164 = vmatprep.subr.bf16.mxu0 0
      %1165 = vmatpush1.bf16.msra.mxu0 0
      %1166 = vmatprep.subr.bf16.mxu0 0
      %1167 = vmatpush1.bf16.msra.mxu0 0
      %1168 = vmatprep.subr.bf16.mxu0 0
      %1169 = vmatpush1.bf16.msra.mxu0 0
      %1170 = vmatprep.subr.bf16.mxu0 0
      %1171 = vmatpush1.bf16.msra.mxu0 0
      %1172 = vmatprep.subr.bf16.mxu0 0
      %1173 = vmatpush1.bf16.msra.mxu0 0
      %1174 = vmatprep.subr.bf16.mxu0 0
      %1175 = vmatpush1.bf16.msra.mxu0 0
      %1176 = vmatprep.subr.bf16.mxu0 0
      %1177 = vmatpush1.bf16.msra.mxu0 0
      %1178 = vmatprep.subr.bf16.mxu0 0
      %1179 = vmatpush1.bf16.msra.mxu0 0
      %1180 = vmatprep.subr.bf16.mxu0 0
      %1181 = vmatpush1.bf16.msra.mxu0 0
      %1182 = vmatprep.subr.bf16.mxu0 0
      %1183 = vmatpush1.bf16.msra.mxu0 0
      %1184 = vmatprep.subr.bf16.mxu0 0
      %1185 = vmatpush1.bf16.msra.mxu0 0
      %1186 = vmatprep.subr.bf16.mxu0 0
      %1187 = vmatpush1.bf16.msra.mxu0 0
      %1188 = vmatprep.mubr.bf16.mxu0 0
      %1189 = vmatmul.mubr.bf16.gmra.mrb[0].mxu0 %v1142
      %v1190 = vpop.f32.mrb[0].mxu0
      %v1191 = vadd.f32 0.0, %v1190
      %v1192 = vpop.f32.mrb[0].mxu0
      %v1193 = vpop.f32.mrb[0].mxu0
      %v1194 = vadd.f32 0.0, %v1193
      %v1195 = vpop.f32.mrb[0].mxu0
      %1196 = vmatprep.mubr.bf16.mxu0 0
      %1197 = vmatmul.mubr.bf16.gmra.mrb[0].mxu0 %v1145
      %v1198 = vpop.f32.mrb[0].mxu0
      %v1199 = vadd.f32 0.0, %v1198
      %v1200 = vpop.f32.mrb[0].mxu0
      %v1201 = vpop.f32.mrb[0].mxu0
      %v1202 = vadd.f32 0.0, %v1201
      %v1203 = vpop.f32.mrb[0].mxu0
      %1204 = vmatprep.mubr.bf16.mxu0 0
      %1205 = vmatmul.mubr.bf16.gmra.mrb[0].mxu0 %v1148
      %v1206 = vpop.f32.mrb[0].mxu0
      %v1207 = vadd.f32 0.0, %v1206
      %v1208 = vpop.f32.mrb[0].mxu0
      %v1209 = vpop.f32.mrb[0].mxu0
      %v1210 = vadd.f32 0.0, %v1209
      %v1211 = vpop.f32.mrb[0].mxu0
      %1212 = vmatprep.mubr.bf16.mxu0 0
      %1213 = vmatmul.mubr.bf16.gmra.mrb[0].mxu0 %v1151
      %v1214 = vpop.f32.mrb[0].mxu0
      %v1215 = vadd.f32 0.0, %v1214
      %v1216 = vpop.f32.mrb[0].mxu0
      %v1217 = vpop.f32.mrb[0].mxu0
      %v1218 = vadd.f32 0.0, %v1217
      %v1219 = vpop.f32.mrb[0].mxu0
      %1220 = vdwg.mxu0
      %v1221 = vld [vmem:[#allocation3] sm:$0xff]
      %v1222 = vld [vmem:[#allocation3 + $0x8] sm:$0xff]
      %v1223 = vld [vmem:[#allocation3 + $0x10] sm:$0xff]
      %v1224 = vld [vmem:[#allocation3 + $0x18] sm:$0xff]
      %v1225 = vld [vmem:[#allocation3 + $0x20] sm:$0xff]
      %v1226 = vld [vmem:[#allocation3 + $0x28] sm:$0xff]
      %v1227 = vld [vmem:[#allocation3 + $0x30] sm:$0xff]
      %v1228 = vld [vmem:[#allocation3 + $0x38] sm:$0xff]
      %v1229 = vadd.f32 %v1221, %v1191
      %v1230 = vadd.f32 %v1222, %v1194
      %v1231 = vadd.f32 %v1223, %v1199
      %v1232 = vadd.f32 %v1224, %v1202
      %v1233 = vadd.f32 %v1225, %v1207
      %v1234 = vadd.f32 %v1226, %v1210
      %v1235 = vadd.f32 %v1227, %v1215
      %v1236 = vadd.f32 %v1228, %v1218
      %1237 = vst.msk [vmem:[#allocation3] sm:$0xff] %vm283, %v1229
      %1238 = vst.msk [vmem:[#allocation3 + $0x8] sm:$0xff] %vm283, %v1230
      %1239 = vst.msk [vmem:[#allocation3 + $0x10] sm:$0xff] %vm283, %v1231
      %1240 = vst.msk [vmem:[#allocation3 + $0x18] sm:$0xff] %vm283, %v1232
      %1241 = vst.msk [vmem:[#allocation3 + $0x20] sm:$0xff] %vm283, %v1233
      %1242 = vst.msk [vmem:[#allocation3 + $0x28] sm:$0xff] %vm283, %v1234
      %1243 = vst.msk [vmem:[#allocation3 + $0x30] sm:$0xff] %vm283, %v1235
      %1244 = vst.msk [vmem:[#allocation3 + $0x38] sm:$0xff] %vm283, %v1236
      %v1245 = vld [vmem:[%s1008 + $0x2] sm:$0xff]
      %v1246 = vld [vmem:[%s1008 + $0x12] sm:$0xff]
      %v1247 = vld [vmem:[%s1008 + $0x22] sm:$0xff]
      %v1248 = vld [vmem:[%s1008 + $0x32] sm:$0xff]
      %v1249 = vld [vmem:[%s1008 + $0x42] sm:$0xff]
      %v1250 = vld [vmem:[%s1008 + $0x52] sm:$0xff]
      %v1251 = vld [vmem:[%s1008 + $0x62] sm:$0xff]
      %v1252 = vld [vmem:[%s1008 + $0x72] sm:$0xff]
      %v1253 = vpack.c.bf16 %v1246, %v1245
      %v1254 = vpack.c.bf16 %v1248, %v1247
      %v1255 = vpack.c.bf16 %v1250, %v1249
      %v1256 = vpack.c.bf16 %v1252, %v1251
      %s1257 = scalar_lea.vmem %s3, 32
      %v1258 = vld [vmem:[%s1257] sm:$0xf]
      %v1260 = vsel %vm283, %v1253, 0
      %v1263 = vsel %vm283, %v1254, 0
      %v1266 = vsel %vm283, %v1255, 0
      %v1269 = vsel %vm283, %v1256, 0
      %v1272 = vsel %vm341, %v1258, 0
      %1274 = vmatprep.subr.bf16.mxu0 0
      %1275 = vmatpush1.bf16.msra.mxu0 %v1272
      %1276 = vmatprep.subr.bf16.mxu0 0
      %1277 = vmatpush1.bf16.msra.mxu0 0
      %1278 = vmatprep.subr.bf16.mxu0 0
      %1279 = vmatpush1.bf16.msra.mxu0 0
      %1280 = vmatprep.subr.bf16.mxu0 0
      %1281 = vmatpush1.bf16.msra.mxu0 0
      %1282 = vmatprep.subr.bf16.mxu0 0
      %1283 = vmatpush1.bf16.msra.mxu0 0
      %1284 = vmatprep.subr.bf16.mxu0 0
      %1285 = vmatpush1.bf16.msra.mxu0 0
      %1286 = vmatprep.subr.bf16.mxu0 0
      %1287 = vmatpush1.bf16.msra.mxu0 0
      %1288 = vmatprep.subr.bf16.mxu0 0
      %1289 = vmatpush1.bf16.msra.mxu0 0
      %1290 = vmatprep.subr.bf16.mxu0 0
      %1291 = vmatpush1.bf16.msra.mxu0 0
      %1292 = vmatprep.subr.bf16.mxu0 0
      %1293 = vmatpush1.bf16.msra.mxu0 0
      %1294 = vmatprep.subr.bf16.mxu0 0
      %1295 = vmatpush1.bf16.msra.mxu0 0
      %1296 = vmatprep.subr.bf16.mxu0 0
      %1297 = vmatpush1.bf16.msra.mxu0 0
      %1298 = vmatprep.subr.bf16.mxu0 0
      %1299 = vmatpush1.bf16.msra.mxu0 0
      %1300 = vmatprep.subr.bf16.mxu0 0
      %1301 = vmatpush1.bf16.msra.mxu0 0
      %1302 = vmatprep.subr.bf16.mxu0 0
      %1303 = vmatpush1.bf16.msra.mxu0 0
      %1304 = vmatprep.subr.bf16.mxu0 0
      %1305 = vmatpush1.bf16.msra.mxu0 0
      %1306 = vmatprep.mubr.bf16.mxu0 0
      %1307 = vmatmul.mubr.bf16.gmra.mrb[0].mxu0 %v1260
      %v1308 = vpop.f32.mrb[0].mxu0
      %v1309 = vadd.f32 0.0, %v1308
      %v1310 = vpop.f32.mrb[0].mxu0
      %v1311 = vpop.f32.mrb[0].mxu0
      %v1312 = vadd.f32 0.0, %v1311
      %v1313 = vpop.f32.mrb[0].mxu0
      %1314 = vmatprep.mubr.bf16.mxu0 0
      %1315 = vmatmul.mubr.bf16.gmra.mrb[0].mxu0 %v1263
      %v1316 = vpop.f32.mrb[0].mxu0
      %v1317 = vadd.f32 0.0, %v1316
      %v1318 = vpop.f32.mrb[0].mxu0
      %v1319 = vpop.f32.mrb[0].mxu0
      %v1320 = vadd.f32 0.0, %v1319
      %v1321 = vpop.f32.mrb[0].mxu0
      %1322 = vmatprep.mubr.bf16.mxu0 0
      %1323 = vmatmul.mubr.bf16.gmra.mrb[0].mxu0 %v1266
      %v1324 = vpop.f32.mrb[0].mxu0
      %v1325 = vadd.f32 0.0, %v1324
      %v1326 = vpop.f32.mrb[0].mxu0
      %v1327 = vpop.f32.mrb[0].mxu0
      %v1328 = vadd.f32 0.0, %v1327
      %v1329 = vpop.f32.mrb[0].mxu0
      %1330 = vmatprep.mubr.bf16.mxu0 0
      %1331 = vmatmul.mubr.bf16.gmra.mrb[0].mxu0 %v1269
      %v1332 = vpop.f32.mrb[0].mxu0
      %v1333 = vadd.f32 0.0, %v1332
      %v1334 = vpop.f32.mrb[0].mxu0
      %v1335 = vpop.f32.mrb[0].mxu0
      %v1336 = vadd.f32 0.0, %v1335
      %v1337 = vpop.f32.mrb[0].mxu0
      %1338 = vdwg.mxu0
      %v1339 = vld [vmem:[#allocation3] sm:$0xff]
      %v1340 = vld [vmem:[#allocation3 + $0x8] sm:$0xff]
      %v1341 = vld [vmem:[#allocation3 + $0x10] sm:$0xff]
      %v1342 = vld [vmem:[#allocation3 + $0x18] sm:$0xff]
      %v1343 = vld [vmem:[#allocation3 + $0x20] sm:$0xff]
      %v1344 = vld [vmem:[#allocation3 + $0x28] sm:$0xff]
      %v1345 = vld [vmem:[#allocation3 + $0x30] sm:$0xff]
      %v1346 = vld [vmem:[#allocation3 + $0x38] sm:$0xff]
      %v1347 = vadd.f32 %v1339, %v1309
      %v1348 = vadd.f32 %v1340, %v1312
      %v1349 = vadd.f32 %v1341, %v1317
      %v1350 = vadd.f32 %v1342, %v1320
      %v1351 = vadd.f32 %v1343, %v1325
      %v1352 = vadd.f32 %v1344, %v1328
      %v1353 = vadd.f32 %v1345, %v1333
      %v1354 = vadd.f32 %v1346, %v1336
      %1355 = vst.msk [vmem:[#allocation3] sm:$0xff] %vm283, %v1347
      %1356 = vst.msk [vmem:[#allocation3 + $0x8] sm:$0xff] %vm283, %v1348
      %1357 = vst.msk [vmem:[#allocation3 + $0x10] sm:$0xff] %vm283, %v1349
      %1358 = vst.msk [vmem:[#allocation3 + $0x18] sm:$0xff] %vm283, %v1350
      %1359 = vst.msk [vmem:[#allocation3 + $0x20] sm:$0xff] %vm283, %v1351
      %1360 = vst.msk [vmem:[#allocation3 + $0x28] sm:$0xff] %vm283, %v1352
      %1361 = vst.msk [vmem:[#allocation3 + $0x30] sm:$0xff] %vm283, %v1353
      %1362 = vst.msk [vmem:[#allocation3 + $0x38] sm:$0xff] %vm283, %v1354
      %v1363 = vld [vmem:[#allocation3] sm:$0xff]
      %v1364 = vld [vmem:[#allocation3 + $0x8] sm:$0xff]
      %v1365 = vld [vmem:[#allocation3 + $0x10] sm:$0xff]
      %v1366 = vld [vmem:[#allocation3 + $0x18] sm:$0xff]
      %v1367 = vld [vmem:[#allocation3 + $0x20] sm:$0xff]
      %v1368 = vld [vmem:[#allocation3 + $0x28] sm:$0xff]
      %v1369 = vld [vmem:[#allocation3 + $0x30] sm:$0xff]
      %v1370 = vld [vmem:[#allocation3 + $0x38] sm:$0xff]
      %1371 = vst.msk [vmem:[%s231] sm:$0xff] %vm283, %v1363
      %1372 = vst.msk [vmem:[%s231 + $0x8] sm:$0xff] %vm283, %v1364
      %1373 = vst.msk [vmem:[%s231 + $0x10] sm:$0xff] %vm283, %v1365
      %1374 = vst.msk [vmem:[%s231 + $0x18] sm:$0xff] %vm283, %v1366
      %1375 = vst.msk [vmem:[%s231 + $0x20] sm:$0xff] %vm283, %v1367
      %1376 = vst.msk [vmem:[%s231 + $0x28] sm:$0xff] %vm283, %v1368
      %1377 = vst.msk [vmem:[%s231 + $0x30] sm:$0xff] %vm283, %v1369
      %1378 = vst.msk [vmem:[%s231 + $0x38] sm:$0xff] %vm283, %v1370
      %v1379 = vsel %vm283, %v1363, 0.0
      %v1380 = vsel %vm283, %v1364, 0.0
      %v1381 = vadd.f32 %v1379, %v1380
      %v1382 = vsel %vm283, %v1365, 0.0
      %v1383 = vadd.f32 %v1381, %v1382
      %v1384 = vsel %vm283, %v1366, 0.0
      %v1385 = vadd.f32 %v1383, %v1384
      %v1386 = vsel %vm283, %v1367, 0.0
      %v1387 = vadd.f32 %v1385, %v1386
      %v1388 = vsel %vm283, %v1368, 0.0
      %v1389 = vadd.f32 %v1387, %v1388
      %v1390 = vsel %vm283, %v1369, 0.0
      %v1391 = vadd.f32 %v1389, %v1390
      %v1392 = vsel %vm283, %v1370, 0.0
      %v1393 = vadd.f32 %v1391, %v1392
      %v1394 = vrot.slane %v1393, 4
      %v1395 = vadd.f32 %v1393, %v1394
      %v1396 = vrot.slane %v1395, 2
      %v1397 = vadd.f32 %v1395, %v1396
      %v1398 = vrot.slane %v1397, 1
      %v1399 = vadd.f32 %v1397, %v1398
      %1400 = vst.msk [vmem:[%s235] sm:$0x1] %vm291, %v1399
      %v1401 = vmul.f32 %v1363, %v1363
      %v1402 = vmul.f32 %v1364, %v1364
      %v1403 = vmul.f32 %v1365, %v1365
      %v1404 = vmul.f32 %v1366, %v1366
      %v1405 = vmul.f32 %v1367, %v1367
      %v1406 = vmul.f32 %v1368, %v1368
      %v1407 = vmul.f32 %v1369, %v1369
      %v1408 = vmul.f32 %v1370, %v1370
      %v1409 = vsel %vm283, %v1401, 0.0
      %v1410 = vsel %vm283, %v1402, 0.0
      %v1411 = vadd.f32 %v1409, %v1410
      %v1412 = vsel %vm283, %v1403, 0.0
      %v1413 = vadd.f32 %v1411, %v1412
      %v1414 = vsel %vm283, %v1404, 0.0
      %v1415 = vadd.f32 %v1413, %v1414
      %v1416 = vsel %vm283, %v1405, 0.0
      %v1417 = vadd.f32 %v1415, %v1416
      %v1418 = vsel %vm283, %v1406, 0.0
      %v1419 = vadd.f32 %v1417, %v1418
      %v1420 = vsel %vm283, %v1407, 0.0
      %v1421 = vadd.f32 %v1419, %v1420
      %v1422 = vsel %vm283, %v1408, 0.0
      %v1423 = vadd.f32 %v1421, %v1422
      %v1424 = vrot.slane %v1423, 4
      %v1425 = vadd.f32 %v1423, %v1424
      %v1426 = vrot.slane %v1425, 2
      %v1427 = vadd.f32 %v1425, %v1426
      %v1428 = vrot.slane %v1427, 1
      %v1429 = vadd.f32 %v1427, %v1428
      %1430 = vst.msk [vmem:[%s235 + $0x1] sm:$0x1] %vm291, %v1429
      %p1431 = scmp.lt.s32.totalorder %s17, 1
      %s1432 = scalar_select %p1431, %s17, 1
      %s1433 = smul.addr %s1432, 8
      %s1434 = smul.addr %s1433, 8
      %s1435 = scalar_lea.vmem %s4, %s1434
      %p1436 = scmp.lt.s32.totalorder %s17, 1
      %s1437 = scalar_select %p1436, %s17, 1
      %s1438 = smul.addr %s1437, 2
      %s1439 = scalar_lea.vmem %s5, %s1438
      // Predicated region
      $region37: #{bottleneck_forward.6} parent=35 // pred_check
        %p1440 = pneg %p124
      $region38: #{bottleneck_forward.6} parent=35 // pred_check_branch
        %1442 = sbr.rel (%p1440) target = $region40
      $region39: #{bottleneck_forward.6} parent=35 // pred_region
        _
      $region40: #{bottleneck_forward.6} parent=35 // pred_fallthru
        _
      // Predicated region
      $region41: #{bottleneck_forward.6} parent=35 // pred_check
        %p1443 = pneg %p150
      $region42: #{bottleneck_forward.6} parent=35 // pred_check_branch
        %1445 = sbr.rel (%p1443) target = $region44
      $region43: #{bottleneck_forward.6} parent=35 // pred_region
        _
      $region44: #{bottleneck_forward.6} parent=35 // pred_fallthru
        _
    $region36: #{bottleneck_forward.6} parent=5 // pred_fallthru
      _
    %p1446 = scmp.le.s32.totalorder 2, %s12
    // Predicated region
    $region45: #{bottleneck_forward.6} parent=5 // pred_check
      %p1447 = pneg %p1446
    $region46: #{bottleneck_forward.6} parent=5 // pred_check_branch
      %1449 = sbr.rel (%p1447) target = $region48
    $region47: #{bottleneck_forward.6} parent=5 // pred_region
      %s1450 = ssub.s32 %s12, 2
      // Predicated region
      $region49: #{bottleneck_forward.6} parent=47 // pred_check
        %p1451 = pneg %p130
      $region50: #{bottleneck_forward.6} parent=47 // pred_check_branch
        %1453 = sbr.rel (%p1451) target = $region52
      $region51: #{bottleneck_forward.6} parent=47 // pred_region
        %p1454 = scmp.lt.s32.totalorder %s18, 1
        %s1455 = scalar_select %p1454, %s18, 1
        %s1456 = smul.addr %s1455, 8
        %s1457 = smul.addr %s1456, 8
        %s1458 = scalar_lea.vmem %s4, %s1457
      $region52: #{bottleneck_forward.6} parent=47 // pred_fallthru
        _
      // Predicated region
      $region53: #{bottleneck_forward.6} parent=47 // pred_check
        %p1459 = pneg %p156
      $region54: #{bottleneck_forward.6} parent=47 // pred_check_branch
        %1461 = sbr.rel (%p1459) target = $region56
      $region55: #{bottleneck_forward.6} parent=47 // pred_region
        %p1462 = scmp.lt.s32.totalorder %s18, 1
        %s1463 = scalar_select %p1462, %s18, 1
        %s1464 = smul.addr %s1463, 2
        %s1465 = scalar_lea.vmem %s5, %s1464
      $region56: #{bottleneck_forward.6} parent=47 // pred_fallthru
        _
    $region48: #{bottleneck_forward.6} parent=5 // pred_fallthru
      _
  $region6: #{bottleneck_forward.6} parent=0 // loop_footer
    %s16 = sadd.s32 1, %s12
  $region7: #{bottleneck_forward.6} parent=0 // loop_footer_branch
    %11 = sbr.rel target = $region3
  $region8: #{bottleneck_forward.6} parent=0 // loop_exit
    _

// kernel: bottleneck_forward.9
$region0: #{bottleneck_forward.9}
  #allocation0 [shape = 'u32[]', space=smem, size = 0x4, offset = 0x4, fixed_abs, tag = 'smem constant byte address 0x4 - core index']
  #allocation1 [shape = 'u32[144,128]{1,0:T(1,128)}', space=vmem, size = 0x12000, scoped, tag = 'internal scratch']
  %s0 = inlined_call_operand.vmem [shape: f32[128,32], index: 0, kind: input, shape index: {}]
  %s1 = inlined_call_operand.vmem [shape: f32[128,32], index: 1, kind: input, shape index: {}]
  %s2 = inlined_call_operand.vmem [shape: f32[1,32], index: 2, kind: input, shape index: {}]
  %s3 = inlined_call_operand.vmem [shape: f32[1,32], index: 3, kind: input, shape index: {}]
  %s4 = inlined_call_operand.vmem [shape: f32[1,32], index: 4, kind: input, shape index: {}]
  %s5 = inlined_call_operand.vmem [shape: f32[1,32], index: 5, kind: input, shape index: {}]
  %s6 = inlined_call_operand.hbm [shape: f32[128,32], index: 6, kind: output, shape index: {}]
  %s7 = sld [smem:[#allocation0]]
  $region34: #{bottleneck_forward.9} parent=0
    _
  %s9 = ssub.s32 1, %s7
  %s10 = scalar_select 0, %s9, %s7
  $region1: #{bottleneck_forward.9} parent=0
    #allocation2 [shape = 'u8[65536]{0}', space=vmem, size = 0x10000, scoped, tag = 'output window, operand 0, single buffered']
    #allocation3 [shape = 's32[1]{0}', space=sflag, size = 0x4, scoped, tag = 'scoped memory for bottleneck_forward.9']
    %11 = vsyncpa [#allocation3], 0
    // Predicated region
    $region2: #{bottleneck_forward.9} parent=1 // pred_check
      _
    $region3: #{bottleneck_forward.9} parent=1 // pred_check_branch
      %13 = sbr.rel (0) target = $region5
    $region4: #{bottleneck_forward.9} parent=1 // pred_region
      _
    $region5: #{bottleneck_forward.9} parent=1 // pred_fallthru
      _
    // Predicated region
    $region6: #{bottleneck_forward.9} parent=1 // pred_check
      _
    $region7: #{bottleneck_forward.9} parent=1 // pred_check_branch
      %15 = sbr.rel (0) target = $region9
    $region8: #{bottleneck_forward.9} parent=1 // pred_region
      _
    $region9: #{bottleneck_forward.9} parent=1 // pred_fallthru
      _
    // Predicated region
    $region10: #{bottleneck_forward.9} parent=1 // pred_check
      _
    $region11: #{bottleneck_forward.9} parent=1 // pred_check_branch
      %17 = sbr.rel (0) target = $region13
    $region12: #{bottleneck_forward.9} parent=1 // pred_region
      _
    $region13: #{bottleneck_forward.9} parent=1 // pred_fallthru
      _
    // Predicated region
    $region14: #{bottleneck_forward.9} parent=1 // pred_check
      _
    $region15: #{bottleneck_forward.9} parent=1 // pred_check_branch
      %19 = sbr.rel (0) target = $region17
    $region16: #{bottleneck_forward.9} parent=1 // pred_region
      _
    $region17: #{bottleneck_forward.9} parent=1 // pred_fallthru
      _
    // Predicated region
    $region18: #{bottleneck_forward.9} parent=1 // pred_check
      _
    $region19: #{bottleneck_forward.9} parent=1 // pred_check_branch
      %21 = sbr.rel (0) target = $region21
    $region20: #{bottleneck_forward.9} parent=1 // pred_region
      _
    $region21: #{bottleneck_forward.9} parent=1 // pred_fallthru
      _
    // Predicated region
    $region22: #{bottleneck_forward.9} parent=1 // pred_check
      _
    $region23: #{bottleneck_forward.9} parent=1 // pred_check_branch
      %23 = sbr.rel (0) target = $region25
    $region24: #{bottleneck_forward.9} parent=1 // pred_region
      _
    $region25: #{bottleneck_forward.9} parent=1 // pred_fallthru
      _
    %v24 = vld [vmem:[%s0] sm:$0xff]
    %v25 = vld [vmem:[%s0 + $0x8] sm:$0xff]
    %v26 = vld [vmem:[%s0 + $0x10] sm:$0xff]
    %v27 = vld [vmem:[%s0 + $0x18] sm:$0xff]
    %v28 = vld [vmem:[%s0 + $0x20] sm:$0xff]
    %v29 = vld [vmem:[%s0 + $0x28] sm:$0xff]
    %v30 = vld [vmem:[%s0 + $0x30] sm:$0xff]
    %v31 = vld [vmem:[%s0 + $0x38] sm:$0xff]
    %v32 = vld [vmem:[%s0 + $0x40] sm:$0xff]
    %v33 = vld [vmem:[%s0 + $0x48] sm:$0xff]
    %v34 = vld [vmem:[%s0 + $0x50] sm:$0xff]
    %v35 = vld [vmem:[%s0 + $0x58] sm:$0xff]
    %v36 = vld [vmem:[%s0 + $0x60] sm:$0xff]
    %v37 = vld [vmem:[%s0 + $0x68] sm:$0xff]
    %v38 = vld [vmem:[%s0 + $0x70] sm:$0xff]
    %v39 = vld [vmem:[%s0 + $0x78] sm:$0xff]
    %v40 = vld [vmem:[%s2] sm:$0x1]
    %v42 = vlaneseq
    %v43 = vshrl.u32 %v42, 7
    %v44 = vsub.s32 0, %v43
    %v45 = vrot.slane %v40, %v44
    %v47 = vmul.f32 %v24, %v45
    %v48 = vmul.f32 %v25, %v45
    %v49 = vmul.f32 %v26, %v45
    %v50 = vmul.f32 %v27, %v45
    %v51 = vmul.f32 %v28, %v45
    %v52 = vmul.f32 %v29, %v45
    %v53 = vmul.f32 %v30, %v45
    %v54 = vmul.f32 %v31, %v45
    %v55 = vmul.f32 %v32, %v45
    %v56 = vmul.f32 %v33, %v45
    %v57 = vmul.f32 %v34, %v45
    %v58 = vmul.f32 %v35, %v45
    %v59 = vmul.f32 %v36, %v45
    %v60 = vmul.f32 %v37, %v45
    %v61 = vmul.f32 %v38, %v45
    %v62 = vmul.f32 %v39, %v45
    %v63 = vld [vmem:[%s3] sm:$0x1]
    %v65 = vlaneseq
    %v66 = vshrl.u32 %v65, 7
    %v67 = vsub.s32 0, %v66
    %v68 = vrot.slane %v63, %v67
    %v70 = vadd.f32 %v47, %v68
    %v71 = vadd.f32 %v48, %v68
    %v72 = vadd.f32 %v49, %v68
    %v73 = vadd.f32 %v50, %v68
    %v74 = vadd.f32 %v51, %v68
    %v75 = vadd.f32 %v52, %v68
    %v76 = vadd.f32 %v53, %v68
    %v77 = vadd.f32 %v54, %v68
    %v78 = vadd.f32 %v55, %v68
    %v79 = vadd.f32 %v56, %v68
    %v80 = vadd.f32 %v57, %v68
    %v81 = vadd.f32 %v58, %v68
    %v82 = vadd.f32 %v59, %v68
    %v83 = vadd.f32 %v60, %v68
    %v84 = vadd.f32 %v61, %v68
    %v85 = vadd.f32 %v62, %v68
    %v86 = vld [vmem:[%s1] sm:$0xff]
    %v87 = vld [vmem:[%s1 + $0x8] sm:$0xff]
    %v88 = vld [vmem:[%s1 + $0x10] sm:$0xff]
    %v89 = vld [vmem:[%s1 + $0x18] sm:$0xff]
    %v90 = vld [vmem:[%s1 + $0x20] sm:$0xff]
    %v91 = vld [vmem:[%s1 + $0x28] sm:$0xff]
    %v92 = vld [vmem:[%s1 + $0x30] sm:$0xff]
    %v93 = vld [vmem:[%s1 + $0x38] sm:$0xff]
    %v94 = vld [vmem:[%s1 + $0x40] sm:$0xff]
    %v95 = vld [vmem:[%s1 + $0x48] sm:$0xff]
    %v96 = vld [vmem:[%s1 + $0x50] sm:$0xff]
    %v97 = vld [vmem:[%s1 + $0x58] sm:$0xff]
    %v98 = vld [vmem:[%s1 + $0x60] sm:$0xff]
    %v99 = vld [vmem:[%s1 + $0x68] sm:$0xff]
    %v100 = vld [vmem:[%s1 + $0x70] sm:$0xff]
    %v101 = vld [vmem:[%s1 + $0x78] sm:$0xff]
    %v102 = vld [vmem:[%s4] sm:$0x1]
    %v104 = vlaneseq
    %v105 = vshrl.u32 %v104, 7
    %v106 = vsub.s32 0, %v105
    %v107 = vrot.slane %v102, %v106
    %v109 = vmul.f32 %v86, %v107
    %v110 = vmul.f32 %v87, %v107
    %v111 = vmul.f32 %v88, %v107
    %v112 = vmul.f32 %v89, %v107
    %v113 = vmul.f32 %v90, %v107
    %v114 = vmul.f32 %v91, %v107
    %v115 = vmul.f32 %v92, %v107
    %v116 = vmul.f32 %v93, %v107
    %v117 = vmul.f32 %v94, %v107
    %v118 = vmul.f32 %v95, %v107
    %v119 = vmul.f32 %v96, %v107
    %v120 = vmul.f32 %v97, %v107
    %v121 = vmul.f32 %v98, %v107
    %v122 = vmul.f32 %v99, %v107
    %v123 = vmul.f32 %v100, %v107
    %v124 = vmul.f32 %v101, %v107
    %v125 = vld [vmem:[%s5] sm:$0x1]
    %v127 = vlaneseq
    %v128 = vshrl.u32 %v127, 7
    %v129 = vsub.s32 0, %v128
    %v130 = vrot.slane %v125, %v129
    %v132 = vadd.f32 %v109, %v130
    %v133 = vadd.f32 %v110, %v130
    %v134 = vadd.f32 %v111, %v130
    %v135 = vadd.f32 %v112, %v130
    %v136 = vadd.f32 %v113, %v130
    %v137 = vadd.f32 %v114, %v130
    %v138 = vadd.f32 %v115, %v130
    %v139 = vadd.f32 %v116, %v130
    %v140 = vadd.f32 %v117, %v130
    %v141 = vadd.f32 %v118, %v130
    %v142 = vadd.f32 %v119, %v130
    %v143 = vadd.f32 %v120, %v130
    %v144 = vadd.f32 %v121, %v130
    %v145 = vadd.f32 %v122, %v130
    %v146 = vadd.f32 %v123, %v130
    %v147 = vadd.f32 %v124, %v130
    %v148 = vadd.f32 %v70, %v132
    %v149 = vadd.f32 %v71, %v133
    %v150 = vadd.f32 %v72, %v134
    %v151 = vadd.f32 %v73, %v135
    %v152 = vadd.f32 %v74, %v136
    %v153 = vadd.f32 %v75, %v137
    %v154 = vadd.f32 %v76, %v138
    %v155 = vadd.f32 %v77, %v139
    %v156 = vadd.f32 %v78, %v140
    %v157 = vadd.f32 %v79, %v141
    %v158 = vadd.f32 %v80, %v142
    %v159 = vadd.f32 %v81, %v143
    %v160 = vadd.f32 %v82, %v144
    %v161 = vadd.f32 %v83, %v145
    %v162 = vadd.f32 %v84, %v146
    %v163 = vadd.f32 %v85, %v147
    %v164 = vmax.f32 %v148, 0.0
    %v165 = vmax.f32 %v149, 0.0
    %v166 = vmax.f32 %v150, 0.0
    %v167 = vmax.f32 %v151, 0.0
    %v168 = vmax.f32 %v152, 0.0
    %v169 = vmax.f32 %v153, 0.0
    %v170 = vmax.f32 %v154, 0.0
    %v171 = vmax.f32 %v155, 0.0
    %v172 = vmax.f32 %v156, 0.0
    %v173 = vmax.f32 %v157, 0.0
    %v174 = vmax.f32 %v158, 0.0
    %v175 = vmax.f32 %v159, 0.0
    %v176 = vmax.f32 %v160, 0.0
    %v177 = vmax.f32 %v161, 0.0
    %v178 = vmax.f32 %v162, 0.0
    %v179 = vmax.f32 %v163, 0.0
    %vm180 = vcmask 261120
    %181 = vst.msk [vmem:[#allocation2] sm:$0xff] %vm180, %v164
    %182 = vst.msk [vmem:[#allocation2 + $0x8] sm:$0xff] %vm180, %v165
    %183 = vst.msk [vmem:[#allocation2 + $0x10] sm:$0xff] %vm180, %v166
    %184 = vst.msk [vmem:[#allocation2 + $0x18] sm:$0xff] %vm180, %v167
    %185 = vst.msk [vmem:[#allocation2 + $0x20] sm:$0xff] %vm180, %v168
    %186 = vst.msk [vmem:[#allocation2 + $0x28] sm:$0xff] %vm180, %v169
    %187 = vst.msk [vmem:[#allocation2 + $0x30] sm:$0xff] %vm180, %v170
    %188 = vst.msk [vmem:[#allocation2 + $0x38] sm:$0xff] %vm180, %v171
    %189 = vst.msk [vmem:[#allocation2 + $0x40] sm:$0xff] %vm180, %v172
    %190 = vst.msk [vmem:[#allocation2 + $0x48] sm:$0xff] %vm180, %v173
    %191 = vst.msk [vmem:[#allocation2 + $0x50] sm:$0xff] %vm180, %v174
    %192 = vst.msk [vmem:[#allocation2 + $0x58] sm:$0xff] %vm180, %v175
    %193 = vst.msk [vmem:[#allocation2 + $0x60] sm:$0xff] %vm180, %v176
    %194 = vst.msk [vmem:[#allocation2 + $0x68] sm:$0xff] %vm180, %v177
    %195 = vst.msk [vmem:[#allocation2 + $0x70] sm:$0xff] %vm180, %v178
    %196 = vst.msk [vmem:[#allocation2 + $0x78] sm:$0xff] %vm180, %v179
    // Predicated region
    $region26: #{bottleneck_forward.9} parent=1 // pred_check
      _
    $region27: #{bottleneck_forward.9} parent=1 // pred_check_branch
      %198 = sbr.rel (0) target = $region29
    $region28: #{bottleneck_forward.9} parent=1 // pred_region
      %s200 = ssub.s32 2048, 2048
      %201 = vsyncadd [#allocation3], %s200
      %s202 = sshll.u32 [#allocation2], 4
      %s203 = int_to_ptr.vmem [resolvable:$true] %s202
      %208 = dma.vmem_to_hbm [thread:$0]  %s203, 2048, %s6, [#allocation3], 128, 128, 8
    $region29: #{bottleneck_forward.9} parent=1 // pred_fallthru
      _
    // Predicated region
    $region30: #{bottleneck_forward.9} parent=1 // pred_check
      _
    $region31: #{bottleneck_forward.9} parent=1 // pred_check_branch
      %210 = sbr.rel (0) target = $region33
    $region32: #{bottleneck_forward.9} parent=1 // pred_region
      %211 = dma.done [#allocation3], 2048
    $region33: #{bottleneck_forward.9} parent=1 // pred_fallthru
      _
    %212 = vsyncpa [#allocation3], 1

</llo_original>
